<compile_context>
chip_gen: v6e
topology: v6e:2x2x1
jax: 0.10.0
libtpu: 0.0.40
codegen_flags: <defaults>
</compile_context>

<pallas_src>
import jax
import jax.numpy as jnp
import numpy as np
from jax import lax
from jax.experimental import pallas as pl
from jax.experimental.pallas import tpu as pltpu

SELU_ALPHA = 1.6732632423543772848170429916717
SELU_SCALE = 1.0507009873554804934193349852946
LN_EPS = 1e-5


def _round_up(x, m):
    return (x + m - 1) // m * m


def _selu(x):
    # f32 elementwise; exp goes to the EUP, select to the VPU.
    return SELU_SCALE * jnp.where(x > 0, x, SELU_ALPHA * (jnp.exp(x) - 1.0))


def _pad2(a, rows, cols):
    out = jnp.zeros((rows, cols), a.dtype)
    return out.at[: a.shape[0], : a.shape[1]].set(a)


def _pad3(a, d0, rows, cols):
    out = jnp.zeros((d0, rows, cols), a.dtype)
    return out.at[: a.shape[0], : a.shape[1], : a.shape[2]].set(a)


# ---------------------------------------------------------------------------
# Hardware-aware sizing helpers
# ---------------------------------------------------------------------------

def _vmem_capacity_bytes():
    try:
        return int(pltpu.get_tpu_info().vmem_capacity_bytes)
    except Exception:
        return 64 * 1024 * 1024          # conservative (v7x-sized) fallback


def _vmem_limit_bytes(vmem_needed, vmem_cap):
    if vmem_cap <= 64 * 1024 * 1024:     # v7x-class: leave compiler-scratch headroom
        hard_cap = vmem_cap - 8 * 1024 * 1024
    else:                                 # v5e / v6e: 128 MiB physical
        hard_cap = min(vmem_cap - 16 * 1024 * 1024, 100 * 1024 * 1024)
    want = max(int(1.5 * vmem_needed), 32 * 1024 * 1024)
    return int(max(min(want, hard_cap), 16 * 1024 * 1024))


def _choose_tb(b8, d_p, vmem_cap):
    """Pick the batch tile: big M on v5e/v6e, 256 on v7x, >=2 grid steps, low padding."""
    tb = 512 if vmem_cap > 80 * 1024 * 1024 else 256
    # keep the live f32 activation temporaries comfortably inside VMEM
    while tb > 128 and 6 * tb * d_p * 4 > vmem_cap // 4:
        tb //= 2
    tb = min(tb, _round_up(b8, 8))
    # shrink while the trailing tile would be mostly padding (wasted matmul rows)
    while tb > 64 and 2 * (_round_up(b8, tb) - b8) > tb:
        tb //= 2
    # ensure >= 2 grid steps so the "parallel" batch axis shards across v7x's two
    # TensorCores (one extra ~0.35us grid step is harmless on 1-TC v5e/v6e)
    if b8 > 8 and _round_up(b8, tb) == tb:
        tb = _round_up(b8, 16) // 2
    return max(8, tb)


# ---------------------------------------------------------------------------
# Kernel
# ---------------------------------------------------------------------------

def _make_kernel(out_dims, n_hidden, unroll_hidden):
    inv_n = np.float32(1.0 / out_dims)

    def layer_norm(t, gamma, beta):
        # One-pass moments over the REAL feature count: padded lanes of `t` are exactly
        # zero, so sums over all lanes equal sums over the real features.  gamma/beta
        # are zero in padded lanes, so the padding stays exactly zero on the way out.
        mu = jnp.sum(t, axis=-1, keepdims=True) * inv_n
        ex2 = jnp.sum(t * t, axis=-1, keepdims=True) * inv_n
        var = ex2 - mu * mu          # benign cancellation at LN activation scales (f32)
        return (t - mu) * lax.rsqrt(var + LN_EPS) * gamma + beta

    def kernel(x_ref, w_in_ref, b_in_ref, g_in_ref, bt_in_ref,
               w_h_ref, b_h_ref, g_h_ref, bt_h_ref,
               w_out_ref, b_out_ref, o_ref):
        cdt = w_in_ref.dtype                    # bf16 at the MXU inputs only

        def block(h_c, w, b, g, bt):
            t = jnp.dot(h_c, w, preferred_element_type=jnp.float32) + b
            return layer_norm(_selu(t), g, bt)

        # ---- input block: (tb, din_p) @ (din_p, d_p) ----
        h = block(x_ref[...], w_in_ref[...], b_in_ref[...],
                  g_in_ref[...], bt_in_ref[...])

        # ---- hidden blocks: (tb, d_p) @ (d_p, d_p), n_hidden times ----
        def body(l, hh):
            row = pl.ds(l, 1)
            return block(hh.astype(cdt), w_h_ref[l],
                         b_h_ref[row, :], g_h_ref[row, :], bt_h_ref[row, :])

        h = lax.fori_loop(0, n_hidden, body, h, unroll=unroll_hidden)

        # ---- final logit: (tb, d_p) @ (d_p, 128); only lane 0 is real.  Store just
        # that column: total output HBM traffic is B*4 bytes instead of B*512. ----
        y = jnp.dot(h.astype(cdt), w_out_ref[...],
                    preferred_element_type=jnp.float32) + b_out_ref[...]
        o_ref[...] = y[:, :1].astype(o_ref.dtype)

    return kernel


# ---------------------------------------------------------------------------
# Wrapper
# ---------------------------------------------------------------------------

def prepare_params(params, compute_dtype=jnp.bfloat16):
    """Pad feature dims to multiples of 128 and cast matmul weights to the compute
    dtype ONCE.  Re-run only when the weights change (per optimizer step), so the
    per-forward wrapper does no parameter re-padding / re-casting."""
    in_dims, out_dims = params["w_in"].shape
    n_hidden = params["w_h"].shape[0]
    din_p = _round_up(in_dims, 128)
    d_p = _round_up(out_dims, 128)

    return {
        "in_dims": in_dims, "out_dims": out_dims, "n_hidden": n_hidden,
        "din_p": din_p, "d_p": d_p,
        "w_in": _pad2(params["w_in"], din_p, d_p).astype(compute_dtype),
        "b_in": _pad2(params["b_in"], 1, d_p),
        "g_in": _pad2(params["g_in"], 1, d_p),
        "bt_in": _pad2(params["bt_in"], 1, d_p),
        "w_h": _pad3(params["w_h"], n_hidden, d_p, d_p).astype(compute_dtype),
        # 2-D stacks (no size-1 sublane dim that pads 8x in VMEM)
        "b_h": _pad2(params["b_h"].reshape(n_hidden, out_dims), n_hidden, d_p),
        "g_h": _pad2(params["g_h"].reshape(n_hidden, out_dims), n_hidden, d_p),
        "bt_h": _pad2(params["bt_h"].reshape(n_hidden, out_dims), n_hidden, d_p),
        "w_out": _pad2(params["w_out"], d_p, 128).astype(compute_dtype),
        "b_out": _pad2(params["b_out"], 1, 128),
    }


def _pallas_forward(x_p, prep, tb, single_buffer_weights, vmem_cap):
    din_p, d_p = prep["din_p"], prep["d_p"]
    out_dims, n_hidden = prep["out_dims"], prep["n_hidden"]
    b_p = x_p.shape[0]
    n_tiles = b_p // tb

    operands = (x_p, prep["w_in"], prep["b_in"], prep["g_in"], prep["bt_in"],
                prep["w_h"], prep["b_h"], prep["g_h"], prep["bt_h"],
                prep["w_out"], prep["b_out"])

    # Constant-index (weight) inputs: single-buffer when supported -- their index_map
    # never changes across the batch grid, so double-buffering is pure VMEM waste.
    const_kw = {"pipeline_mode": pl.Buffered(1)} if single_buffer_weights else {}

    act_map = lambda i: (i, 0)
    fix2 = lambda i: (0, 0)
    fix3 = lambda i: (0, 0, 0)

    in_specs = [
        pl.BlockSpec((tb, din_p), act_map),                       # x  (bf16)
        pl.BlockSpec((din_p, d_p), fix2, **const_kw),             # w_in (bf16)
        pl.BlockSpec((1, d_p), fix2, **const_kw),                 # b_in
        pl.BlockSpec((1, d_p), fix2, **const_kw),                 # ln gamma 0
        pl.BlockSpec((1, d_p), fix2, **const_kw),                 # ln beta 0
        pl.BlockSpec((n_hidden, d_p, d_p), fix3, **const_kw),     # w_h stacked (bf16)
        pl.BlockSpec((n_hidden, d_p), fix2, **const_kw),          # b_h
        pl.BlockSpec((n_hidden, d_p), fix2, **const_kw),          # ln gamma
        pl.BlockSpec((n_hidden, d_p), fix2, **const_kw),          # ln beta
        pl.BlockSpec((d_p, 128), fix2, **const_kw),               # w_out (bf16)
        pl.BlockSpec((1, 128), fix2, **const_kw),                 # b_out
    ]

    # Explicit VMEM budget: resident weights (x1 single- / x2 double-buffered),
    # pipelined activation tiles, and live f32 temporaries inside the layer loop.
    param_bytes = sum(int(a.size) * a.dtype.itemsize for a in operands[1:])
    tile_bytes = tb * din_p * x_p.dtype.itemsize + tb * 128 * 4
    act_scratch = 6 * tb * d_p * 4
    wf = 1 if single_buffer_weights else 2
    vmem_needed = wf * param_bytes + 2 * tile_bytes + act_scratch

    kernel = _make_kernel(out_dims, n_hidden, unroll_hidden=(n_hidden <= 4))

    return pl.pallas_call(
        kernel,
        out_shape=jax.ShapeDtypeStruct((b_p, 1), jnp.float32),
        grid_spec=pltpu.PrefetchScalarGridSpec(
            num_scalar_prefetch=0,
            grid=(n_tiles,),
            in_specs=in_specs,
            out_specs=pl.BlockSpec((tb, 1), act_map),
        ),
        compiler_params=pltpu.CompilerParams(
            dimension_semantics=("parallel",),
            vmem_limit_bytes=_vmem_limit_bytes(vmem_needed, vmem_cap)),
    )(*operands)


_SINGLE_BUFFER_WEIGHTS = None     # resolved once: does this JAX honor pl.Buffered(1)?


def discriminator_forward(x, prep, *, tb=None):
    """x: (B, in_dims) f32.  prep: output of prepare_params (padded / bf16 weights)."""
    global _SINGLE_BUFFER_WEIGHTS
    B, in_dims = x.shape
    assert in_dims == prep["in_dims"]

    vmem_cap = _vmem_capacity_bytes()
    b8 = _round_up(B, 8)
    if tb is None:
        tb = _choose_tb(b8, prep["d_p"], vmem_cap)
    else:
        tb = max(8, min(_round_up(tb, 8), _round_up(b8, 8)))
    b_p = _round_up(b8, tb)

    x_p = _pad2(x, b_p, prep["din_p"]).astype(prep["w_in"].dtype)

    if _SINGLE_BUFFER_WEIGHTS is None:
        try:
            out = jax.block_until_ready(
                _pallas_forward(x_p, prep, tb, True, vmem_cap))
            _SINGLE_BUFFER_WEIGHTS = True
        except Exception:
            _SINGLE_BUFFER_WEIGHTS = False
            out = _pallas_forward(x_p, prep, tb, False, vmem_cap)
    else:
        out = _pallas_forward(x_p, prep, tb, _SINGLE_BUFFER_WEIGHTS, vmem_cap)

    return out[:B]


# ---------------------------------------------------------------------------
# Parameter init + plain-JAX reference (matches the PyTorch module)
# ---------------------------------------------------------------------------

def init_params(key, in_dims, latent_multiplier, nb_layers):
    """Synthetic init matching torch.nn.Linear / LayerNorm defaults.
    Weights stored pre-transposed: (fan_in, fan_out)."""
    out_dims = in_dims * latent_multiplier
    n_hidden = nb_layers          # (nb_layers - 1) loop blocks + the extra out->out block
    k_in, k_out, k_h = jax.random.split(key, 3)

    def lin(k, fan_in, fan_out):
        bound = 1.0 / np.sqrt(fan_in)
        kw, kb = jax.random.split(k)
        w = jax.random.uniform(kw, (fan_in, fan_out), jnp.float32, -bound, bound)
        b = jax.random.uniform(kb, (1, fan_out), jnp.float32, -bound, bound)
        return w, b

    w_in, b_in = lin(k_in, in_dims, out_dims)
    w_out, b_out = lin(k_out, out_dims, 1)

    w_hs, b_hs = [], []
    for hk in jax.random.split(k_h, n_hidden):
        w, b = lin(hk, out_dims, out_dims)
        w_hs.append(w)
        b_hs.append(b)

    return {
        "w_in": w_in, "b_in": b_in,
        "g_in": jnp.ones((1, out_dims), jnp.float32),
        "bt_in": jnp.zeros((1, out_dims), jnp.float32),
        "w_h": jnp.stack(w_hs),          # (n_hidden, out_dims, out_dims)
        "b_h": jnp.stack(b_hs),          # (n_hidden, 1, out_dims)
        "g_h": jnp.ones((n_hidden, 1, out_dims), jnp.float32),
        "bt_h": jnp.zeros((n_hidden, 1, out_dims), jnp.float32),
        "w_out": w_out, "b_out": b_out,
    }


def reference_forward(x, params, compute_dtype=jnp.float32):
    def dot(a, w):
        return jnp.dot(a.astype(compute_dtype), w.astype(compute_dtype),
                       preferred_element_type=jnp.float32)

    def block(h, w, b, g, bt):
        t = dot(h, w) + b
        t = SELU_SCALE * jnp.where(t > 0, t, SELU_ALPHA * (jnp.exp(t) - 1.0))
        mu = jnp.mean(t, axis=-1, keepdims=True)
        var = jnp.mean((t - mu) ** 2, axis=-1, keepdims=True)
        return (t - mu) * jax.lax.rsqrt(var + LN_EPS) * g + bt

    h = block(x, params["w_in"], params["b_in"], params["g_in"], params["bt_in"])
    for l in range(params["w_h"].shape[0]):
        h = block(h, params["w_h"][l], params["b_h"][l],
                  params["g_h"][l], params["bt_h"][l])
    return dot(h, params["w_out"]) + params["b_out"]


if __name__ == "__main__":
    # Small shapes consistent with Discriminator(in_dims=8, latent_multiplier=4, nb_layers=3)
    B, in_dims, latent_multiplier, nb_layers = 16, 8, 4, 3

    key = jax.random.PRNGKey(0)
    kx, kp = jax.random.split(key)
    x = jax.random.normal(kx, (B, in_dims), jnp.float32)
    params = init_params(kp, in_dims, latent_multiplier, nb_layers)

    # Pad / cast the parameters ONCE (per weight update), not per forward call.
    prep = prepare_params(params)

    out = jax.block_until_ready(discriminator_forward(x, prep))
    assert out.shape == (B, 1), out.shape

    # Second call reuses the prepared params and the cached buffering decision.
    out2 = jax.block_until_ready(discriminator_forward(x, prep))
    np.testing.assert_allclose(np.asarray(out), np.asarray(out2))

    # Tight check vs. a plain-JAX reference using the same bf16 matmul-input precision.
    ref_bf16 = reference_forward(x, params, compute_dtype=jnp.bfloat16)
    np.testing.assert_allclose(np.asarray(out), np.asarray(ref_bf16),
                               rtol=2e-3, atol=2e-3)

    # Loose sanity check vs. the pure-f32 reference (bf16 matmul rounding only).
    ref_f32 = reference_forward(x, params, compute_dtype=jnp.float32)
    np.testing.assert_allclose(np.asarray(out), np.asarray(ref_f32),
                               rtol=1e-1, atol=1e-1)

    print("KERNEL_OK")
</pallas_src>

<mosaic_0001>
module attributes {stable_mosaic.version = 11 : i64} {
  func.func @kernel(%arg0: i32, %arg1: memref<8x128xbf16, #tpu.memory_space<vmem>>, %arg2: memref<128x128xbf16, #tpu.memory_space<vmem>>, %arg3: memref<1x128xf32, #tpu.memory_space<vmem>>, %arg4: memref<1x128xf32, #tpu.memory_space<vmem>>, %arg5: memref<1x128xf32, #tpu.memory_space<vmem>>, %arg6: memref<3x128x128xbf16, #tpu.memory_space<vmem>>, %arg7: memref<3x128xf32, #tpu.memory_space<vmem>>, %arg8: memref<3x128xf32, #tpu.memory_space<vmem>>, %arg9: memref<3x128xf32, #tpu.memory_space<vmem>>, %arg10: memref<128x128xbf16, #tpu.memory_space<vmem>>, %arg11: memref<1x128xf32, #tpu.memory_space<vmem>>, %arg12: memref<8x1xf32, #tpu.memory_space<vmem>>) attributes {dimension_semantics = [#tpu.dimension_semantics<parallel>], iteration_bounds = array<i64: 2>, scalar_prefetch = 0 : i64, scratch_operands = 0 : i64, tpu.core_type = #tpu.core_type<tc>, window_params = [{transform_indices = @transform_0, window_bounds = array<i64: 8, 128>}, {pipeline_mode = #tpu.pipeline_mode<synchronous>, transform_indices = @transform_1, window_bounds = array<i64: 128, 128>}, {pipeline_mode = #tpu.pipeline_mode<synchronous>, transform_indices = @transform_2, window_bounds = array<i64: 1, 128>}, {pipeline_mode = #tpu.pipeline_mode<synchronous>, transform_indices = @transform_3, window_bounds = array<i64: 1, 128>}, {pipeline_mode = #tpu.pipeline_mode<synchronous>, transform_indices = @transform_4, window_bounds = array<i64: 1, 128>}, {pipeline_mode = #tpu.pipeline_mode<synchronous>, transform_indices = @transform_5, window_bounds = array<i64: 3, 128, 128>}, {pipeline_mode = #tpu.pipeline_mode<synchronous>, transform_indices = @transform_6, window_bounds = array<i64: 3, 128>}, {pipeline_mode = #tpu.pipeline_mode<synchronous>, transform_indices = @transform_7, window_bounds = array<i64: 3, 128>}, {pipeline_mode = #tpu.pipeline_mode<synchronous>, transform_indices = @transform_8, window_bounds = array<i64: 3, 128>}, {pipeline_mode = #tpu.pipeline_mode<synchronous>, transform_indices = @transform_9, window_bounds = array<i64: 128, 128>}, {pipeline_mode = #tpu.pipeline_mode<synchronous>, transform_indices = @transform_10, window_bounds = array<i64: 1, 128>}, {transform_indices = @transform_11, window_bounds = array<i64: 8, 1>}]} {
    %c0 = arith.constant 0 : index
    %c0_0 = arith.constant 0 : index
    %0 = vector.load %arg1[%c0, %c0_0] : memref<8x128xbf16, #tpu.memory_space<vmem>>, vector<8x128xbf16>
    %c0_1 = arith.constant 0 : index
    %c0_2 = arith.constant 0 : index
    %1 = vector.load %arg2[%c0_1, %c0_2] : memref<128x128xbf16, #tpu.memory_space<vmem>>, vector<128x128xbf16>
    %c0_3 = arith.constant 0 : index
    %c0_4 = arith.constant 0 : index
    %2 = vector.load %arg3[%c0_3, %c0_4] : memref<1x128xf32, #tpu.memory_space<vmem>>, vector<1x128xf32>
    %c0_5 = arith.constant 0 : index
    %c0_6 = arith.constant 0 : index
    %3 = vector.load %arg4[%c0_5, %c0_6] : memref<1x128xf32, #tpu.memory_space<vmem>>, vector<1x128xf32>
    %c0_7 = arith.constant 0 : index
    %c0_8 = arith.constant 0 : index
    %4 = vector.load %arg5[%c0_7, %c0_8] : memref<1x128xf32, #tpu.memory_space<vmem>>, vector<1x128xf32>
    %cst = arith.constant dense<0.000000e+00> : vector<8x128xf32>
    %5 = tpu.matmul %0, %1, %cst {dimension_numbers = #tpu.dot_dimension_numbers<[1], [0], [0], [1], [0, 0, 1, 1], [], []>} : vector<8x128xbf16>, vector<128x128xbf16>, vector<8x128xf32> -> vector<8x128xf32>
    %6 = vector.broadcast %2 : vector<1x128xf32> to vector<8x128xf32>
    %7 = arith.addf %5, %6 : vector<8x128xf32>
    %cst_9 = arith.constant 0.000000e+00 : f32
    %8 = vector.broadcast %cst_9 : f32 to vector<8x128xf32>
    %9 = arith.cmpf ogt, %7, %8 : vector<8x128xf32>
    %10 = math.exp %7 : vector<8x128xf32>
    %cst_10 = arith.constant 1.000000e+00 : f32
    %11 = vector.broadcast %cst_10 : f32 to vector<8x128xf32>
    %12 = arith.subf %10, %11 : vector<8x128xf32>
    %cst_11 = arith.constant 1.67326319 : f32
    %13 = vector.broadcast %cst_11 : f32 to vector<8x128xf32>
    %14 = arith.mulf %13, %12 : vector<8x128xf32>
    %15 = arith.select %9, %7, %14 : vector<8x128xi1>, vector<8x128xf32>
    %cst_12 = arith.constant 1.05070102 : f32
    %16 = vector.broadcast %cst_12 : f32 to vector<8x128xf32>
    %17 = arith.mulf %16, %15 : vector<8x128xf32>
    %cst_13 = arith.constant dense<0.000000e+00> : vector<8xf32>
    %18 = vector.multi_reduction <add>, %17, %cst_13 [1] : vector<8x128xf32> to vector<8xf32>
    %19 = vector.shape_cast %18 : vector<8xf32> to vector<8x1xf32>
    %cst_14 = arith.constant 3.125000e-02 : f32
    %20 = vector.broadcast %cst_14 : f32 to vector<8x1xf32>
    %21 = arith.mulf %19, %20 : vector<8x1xf32>
    %22 = arith.mulf %17, %17 : vector<8x128xf32>
    %cst_15 = arith.constant dense<0.000000e+00> : vector<8xf32>
    %23 = vector.multi_reduction <add>, %22, %cst_15 [1] : vector<8x128xf32> to vector<8xf32>
    %24 = vector.shape_cast %23 : vector<8xf32> to vector<8x1xf32>
    %cst_16 = arith.constant 3.125000e-02 : f32
    %25 = vector.broadcast %cst_16 : f32 to vector<8x1xf32>
    %26 = arith.mulf %24, %25 : vector<8x1xf32>
    %27 = arith.mulf %21, %21 : vector<8x1xf32>
    %28 = arith.subf %26, %27 : vector<8x1xf32>
    %29 = vector.broadcast %21 : vector<8x1xf32> to vector<8x128xf32>
    %30 = arith.subf %17, %29 : vector<8x128xf32>
    %cst_17 = arith.constant 9.99999974E-6 : f32
    %31 = vector.broadcast %cst_17 : f32 to vector<8x1xf32>
    %32 = arith.addf %28, %31 : vector<8x1xf32>
    %33 = math.rsqrt %32 : vector<8x1xf32>
    %34 = vector.broadcast %33 : vector<8x1xf32> to vector<8x128xf32>
    %35 = arith.mulf %30, %34 : vector<8x128xf32>
    %36 = vector.broadcast %3 : vector<1x128xf32> to vector<8x128xf32>
    %37 = arith.mulf %35, %36 : vector<8x128xf32>
    %38 = vector.broadcast %4 : vector<1x128xf32> to vector<8x128xf32>
    %39 = arith.addf %37, %38 : vector<8x128xf32>
    %c0_i32 = arith.constant 0 : i32
    %40 = arith.truncf %39 : vector<8x128xf32> to vector<8x128xbf16>
    %41 = arith.index_cast %c0_i32 : i32 to index
    %c0_18 = arith.constant 0 : index
    %c0_19 = arith.constant 0 : index
    %42 = vector.load %arg6[%41, %c0_18, %c0_19] : memref<3x128x128xbf16, #tpu.memory_space<vmem>>, vector<1x128x128xbf16>
    %43 = vector.shape_cast %42 : vector<1x128x128xbf16> to vector<128x128xbf16>
    %44 = arith.index_cast %c0_i32 : i32 to index
    %c0_20 = arith.constant 0 : index
    %45 = vector.load %arg7[%44, %c0_20] : memref<3x128xf32, #tpu.memory_space<vmem>>, vector<1x128xf32>
    %46 = arith.index_cast %c0_i32 : i32 to index
    %c0_21 = arith.constant 0 : index
    %47 = vector.load %arg8[%46, %c0_21] : memref<3x128xf32, #tpu.memory_space<vmem>>, vector<1x128xf32>
    %48 = arith.index_cast %c0_i32 : i32 to index
    %c0_22 = arith.constant 0 : index
    %49 = vector.load %arg9[%48, %c0_22] : memref<3x128xf32, #tpu.memory_space<vmem>>, vector<1x128xf32>
    %cst_23 = arith.constant dense<0.000000e+00> : vector<8x128xf32>
    %50 = tpu.matmul %40, %43, %cst_23 {dimension_numbers = #tpu.dot_dimension_numbers<[1], [0], [0], [1], [0, 0, 1, 1], [], []>} : vector<8x128xbf16>, vector<128x128xbf16>, vector<8x128xf32> -> vector<8x128xf32>
    %51 = vector.broadcast %45 : vector<1x128xf32> to vector<8x128xf32>
    %52 = arith.addf %50, %51 : vector<8x128xf32>
    %cst_24 = arith.constant 0.000000e+00 : f32
    %53 = vector.broadcast %cst_24 : f32 to vector<8x128xf32>
    %54 = arith.cmpf ogt, %52, %53 : vector<8x128xf32>
    %55 = math.exp %52 : vector<8x128xf32>
    %cst_25 = arith.constant 1.000000e+00 : f32
    %56 = vector.broadcast %cst_25 : f32 to vector<8x128xf32>
    %57 = arith.subf %55, %56 : vector<8x128xf32>
    %cst_26 = arith.constant 1.67326319 : f32
    %58 = vector.broadcast %cst_26 : f32 to vector<8x128xf32>
    %59 = arith.mulf %58, %57 : vector<8x128xf32>
    %60 = arith.select %54, %52, %59 : vector<8x128xi1>, vector<8x128xf32>
    %cst_27 = arith.constant 1.05070102 : f32
    %61 = vector.broadcast %cst_27 : f32 to vector<8x128xf32>
    %62 = arith.mulf %61, %60 : vector<8x128xf32>
    %cst_28 = arith.constant dense<0.000000e+00> : vector<8xf32>
    %63 = vector.multi_reduction <add>, %62, %cst_28 [1] : vector<8x128xf32> to vector<8xf32>
    %64 = vector.shape_cast %63 : vector<8xf32> to vector<8x1xf32>
    %cst_29 = arith.constant 3.125000e-02 : f32
    %65 = vector.broadcast %cst_29 : f32 to vector<8x1xf32>
    %66 = arith.mulf %64, %65 : vector<8x1xf32>
    %67 = arith.mulf %62, %62 : vector<8x128xf32>
    %cst_30 = arith.constant dense<0.000000e+00> : vector<8xf32>
    %68 = vector.multi_reduction <add>, %67, %cst_30 [1] : vector<8x128xf32> to vector<8xf32>
    %69 = vector.shape_cast %68 : vector<8xf32> to vector<8x1xf32>
    %cst_31 = arith.constant 3.125000e-02 : f32
    %70 = vector.broadcast %cst_31 : f32 to vector<8x1xf32>
    %71 = arith.mulf %69, %70 : vector<8x1xf32>
    %72 = arith.mulf %66, %66 : vector<8x1xf32>
    %73 = arith.subf %71, %72 : vector<8x1xf32>
    %74 = vector.broadcast %66 : vector<8x1xf32> to vector<8x128xf32>
    %75 = arith.subf %62, %74 : vector<8x128xf32>
    %cst_32 = arith.constant 9.99999974E-6 : f32
    %76 = vector.broadcast %cst_32 : f32 to vector<8x1xf32>
    %77 = arith.addf %73, %76 : vector<8x1xf32>
    %78 = math.rsqrt %77 : vector<8x1xf32>
    %79 = vector.broadcast %78 : vector<8x1xf32> to vector<8x128xf32>
    %80 = arith.mulf %75, %79 : vector<8x128xf32>
    %81 = vector.broadcast %47 : vector<1x128xf32> to vector<8x128xf32>
    %82 = arith.mulf %80, %81 : vector<8x128xf32>
    %83 = vector.broadcast %49 : vector<1x128xf32> to vector<8x128xf32>
    %84 = arith.addf %82, %83 : vector<8x128xf32>
    %c1_i32 = arith.constant 1 : i32
    %85 = arith.truncf %84 : vector<8x128xf32> to vector<8x128xbf16>
    %86 = arith.index_cast %c1_i32 : i32 to index
    %c0_33 = arith.constant 0 : index
    %c0_34 = arith.constant 0 : index
    %87 = vector.load %arg6[%86, %c0_33, %c0_34] : memref<3x128x128xbf16, #tpu.memory_space<vmem>>, vector<1x128x128xbf16>
    %88 = vector.shape_cast %87 : vector<1x128x128xbf16> to vector<128x128xbf16>
    %89 = arith.index_cast %c1_i32 : i32 to index
    %c0_35 = arith.constant 0 : index
    %90 = vector.load %arg7[%89, %c0_35] : memref<3x128xf32, #tpu.memory_space<vmem>>, vector<1x128xf32>
    %91 = arith.index_cast %c1_i32 : i32 to index
    %c0_36 = arith.constant 0 : index
    %92 = vector.load %arg8[%91, %c0_36] : memref<3x128xf32, #tpu.memory_space<vmem>>, vector<1x128xf32>
    %93 = arith.index_cast %c1_i32 : i32 to index
    %c0_37 = arith.constant 0 : index
    %94 = vector.load %arg9[%93, %c0_37] : memref<3x128xf32, #tpu.memory_space<vmem>>, vector<1x128xf32>
    %cst_38 = arith.constant dense<0.000000e+00> : vector<8x128xf32>
    %95 = tpu.matmul %85, %88, %cst_38 {dimension_numbers = #tpu.dot_dimension_numbers<[1], [0], [0], [1], [0, 0, 1, 1], [], []>} : vector<8x128xbf16>, vector<128x128xbf16>, vector<8x128xf32> -> vector<8x128xf32>
    %96 = vector.broadcast %90 : vector<1x128xf32> to vector<8x128xf32>
    %97 = arith.addf %95, %96 : vector<8x128xf32>
    %cst_39 = arith.constant 0.000000e+00 : f32
    %98 = vector.broadcast %cst_39 : f32 to vector<8x128xf32>
    %99 = arith.cmpf ogt, %97, %98 : vector<8x128xf32>
    %100 = math.exp %97 : vector<8x128xf32>
    %cst_40 = arith.constant 1.000000e+00 : f32
    %101 = vector.broadcast %cst_40 : f32 to vector<8x128xf32>
    %102 = arith.subf %100, %101 : vector<8x128xf32>
    %cst_41 = arith.constant 1.67326319 : f32
    %103 = vector.broadcast %cst_41 : f32 to vector<8x128xf32>
    %104 = arith.mulf %103, %102 : vector<8x128xf32>
    %105 = arith.select %99, %97, %104 : vector<8x128xi1>, vector<8x128xf32>
    %cst_42 = arith.constant 1.05070102 : f32
    %106 = vector.broadcast %cst_42 : f32 to vector<8x128xf32>
    %107 = arith.mulf %106, %105 : vector<8x128xf32>
    %cst_43 = arith.constant dense<0.000000e+00> : vector<8xf32>
    %108 = vector.multi_reduction <add>, %107, %cst_43 [1] : vector<8x128xf32> to vector<8xf32>
    %109 = vector.shape_cast %108 : vector<8xf32> to vector<8x1xf32>
    %cst_44 = arith.constant 3.125000e-02 : f32
    %110 = vector.broadcast %cst_44 : f32 to vector<8x1xf32>
    %111 = arith.mulf %109, %110 : vector<8x1xf32>
    %112 = arith.mulf %107, %107 : vector<8x128xf32>
    %cst_45 = arith.constant dense<0.000000e+00> : vector<8xf32>
    %113 = vector.multi_reduction <add>, %112, %cst_45 [1] : vector<8x128xf32> to vector<8xf32>
    %114 = vector.shape_cast %113 : vector<8xf32> to vector<8x1xf32>
    %cst_46 = arith.constant 3.125000e-02 : f32
    %115 = vector.broadcast %cst_46 : f32 to vector<8x1xf32>
    %116 = arith.mulf %114, %115 : vector<8x1xf32>
    %117 = arith.mulf %111, %111 : vector<8x1xf32>
    %118 = arith.subf %116, %117 : vector<8x1xf32>
    %119 = vector.broadcast %111 : vector<8x1xf32> to vector<8x128xf32>
    %120 = arith.subf %107, %119 : vector<8x128xf32>
    %cst_47 = arith.constant 9.99999974E-6 : f32
    %121 = vector.broadcast %cst_47 : f32 to vector<8x1xf32>
    %122 = arith.addf %118, %121 : vector<8x1xf32>
    %123 = math.rsqrt %122 : vector<8x1xf32>
    %124 = vector.broadcast %123 : vector<8x1xf32> to vector<8x128xf32>
    %125 = arith.mulf %120, %124 : vector<8x128xf32>
    %126 = vector.broadcast %92 : vector<1x128xf32> to vector<8x128xf32>
    %127 = arith.mulf %125, %126 : vector<8x128xf32>
    %128 = vector.broadcast %94 : vector<1x128xf32> to vector<8x128xf32>
    %129 = arith.addf %127, %128 : vector<8x128xf32>
    %c2_i32 = arith.constant 2 : i32
    %130 = arith.truncf %129 : vector<8x128xf32> to vector<8x128xbf16>
    %131 = arith.index_cast %c2_i32 : i32 to index
    %c0_48 = arith.constant 0 : index
    %c0_49 = arith.constant 0 : index
    %132 = vector.load %arg6[%131, %c0_48, %c0_49] : memref<3x128x128xbf16, #tpu.memory_space<vmem>>, vector<1x128x128xbf16>
    %133 = vector.shape_cast %132 : vector<1x128x128xbf16> to vector<128x128xbf16>
    %134 = arith.index_cast %c2_i32 : i32 to index
    %c0_50 = arith.constant 0 : index
    %135 = vector.load %arg7[%134, %c0_50] : memref<3x128xf32, #tpu.memory_space<vmem>>, vector<1x128xf32>
    %136 = arith.index_cast %c2_i32 : i32 to index
    %c0_51 = arith.constant 0 : index
    %137 = vector.load %arg8[%136, %c0_51] : memref<3x128xf32, #tpu.memory_space<vmem>>, vector<1x128xf32>
    %138 = arith.index_cast %c2_i32 : i32 to index
    %c0_52 = arith.constant 0 : index
    %139 = vector.load %arg9[%138, %c0_52] : memref<3x128xf32, #tpu.memory_space<vmem>>, vector<1x128xf32>
    %cst_53 = arith.constant dense<0.000000e+00> : vector<8x128xf32>
    %140 = tpu.matmul %130, %133, %cst_53 {dimension_numbers = #tpu.dot_dimension_numbers<[1], [0], [0], [1], [0, 0, 1, 1], [], []>} : vector<8x128xbf16>, vector<128x128xbf16>, vector<8x128xf32> -> vector<8x128xf32>
    %141 = vector.broadcast %135 : vector<1x128xf32> to vector<8x128xf32>
    %142 = arith.addf %140, %141 : vector<8x128xf32>
    %cst_54 = arith.constant 0.000000e+00 : f32
    %143 = vector.broadcast %cst_54 : f32 to vector<8x128xf32>
    %144 = arith.cmpf ogt, %142, %143 : vector<8x128xf32>
    %145 = math.exp %142 : vector<8x128xf32>
    %cst_55 = arith.constant 1.000000e+00 : f32
    %146 = vector.broadcast %cst_55 : f32 to vector<8x128xf32>
    %147 = arith.subf %145, %146 : vector<8x128xf32>
    %cst_56 = arith.constant 1.67326319 : f32
    %148 = vector.broadcast %cst_56 : f32 to vector<8x128xf32>
    %149 = arith.mulf %148, %147 : vector<8x128xf32>
    %150 = arith.select %144, %142, %149 : vector<8x128xi1>, vector<8x128xf32>
    %cst_57 = arith.constant 1.05070102 : f32
    %151 = vector.broadcast %cst_57 : f32 to vector<8x128xf32>
    %152 = arith.mulf %151, %150 : vector<8x128xf32>
    %cst_58 = arith.constant dense<0.000000e+00> : vector<8xf32>
    %153 = vector.multi_reduction <add>, %152, %cst_58 [1] : vector<8x128xf32> to vector<8xf32>
    %154 = vector.shape_cast %153 : vector<8xf32> to vector<8x1xf32>
    %cst_59 = arith.constant 3.125000e-02 : f32
    %155 = vector.broadcast %cst_59 : f32 to vector<8x1xf32>
    %156 = arith.mulf %154, %155 : vector<8x1xf32>
    %157 = arith.mulf %152, %152 : vector<8x128xf32>
    %cst_60 = arith.constant dense<0.000000e+00> : vector<8xf32>
    %158 = vector.multi_reduction <add>, %157, %cst_60 [1] : vector<8x128xf32> to vector<8xf32>
    %159 = vector.shape_cast %158 : vector<8xf32> to vector<8x1xf32>
    %cst_61 = arith.constant 3.125000e-02 : f32
    %160 = vector.broadcast %cst_61 : f32 to vector<8x1xf32>
    %161 = arith.mulf %159, %160 : vector<8x1xf32>
    %162 = arith.mulf %156, %156 : vector<8x1xf32>
    %163 = arith.subf %161, %162 : vector<8x1xf32>
    %164 = vector.broadcast %156 : vector<8x1xf32> to vector<8x128xf32>
    %165 = arith.subf %152, %164 : vector<8x128xf32>
    %cst_62 = arith.constant 9.99999974E-6 : f32
    %166 = vector.broadcast %cst_62 : f32 to vector<8x1xf32>
    %167 = arith.addf %163, %166 : vector<8x1xf32>
    %168 = math.rsqrt %167 : vector<8x1xf32>
    %169 = vector.broadcast %168 : vector<8x1xf32> to vector<8x128xf32>
    %170 = arith.mulf %165, %169 : vector<8x128xf32>
    %171 = vector.broadcast %137 : vector<1x128xf32> to vector<8x128xf32>
    %172 = arith.mulf %170, %171 : vector<8x128xf32>
    %173 = vector.broadcast %139 : vector<1x128xf32> to vector<8x128xf32>
    %174 = arith.addf %172, %173 : vector<8x128xf32>
    %c3_i32 = arith.constant 3 : i32
    %175 = arith.truncf %174 : vector<8x128xf32> to vector<8x128xbf16>
    %c0_63 = arith.constant 0 : index
    %c0_64 = arith.constant 0 : index
    %176 = vector.load %arg10[%c0_63, %c0_64] : memref<128x128xbf16, #tpu.memory_space<vmem>>, vector<128x128xbf16>
    %cst_65 = arith.constant dense<0.000000e+00> : vector<8x128xf32>
    %177 = tpu.matmul %175, %176, %cst_65 {dimension_numbers = #tpu.dot_dimension_numbers<[1], [0], [0], [1], [0, 0, 1, 1], [], []>} : vector<8x128xbf16>, vector<128x128xbf16>, vector<8x128xf32> -> vector<8x128xf32>
    %c0_66 = arith.constant 0 : index
    %c0_67 = arith.constant 0 : index
    %178 = vector.load %arg11[%c0_66, %c0_67] : memref<1x128xf32, #tpu.memory_space<vmem>>, vector<1x128xf32>
    %179 = vector.broadcast %178 : vector<1x128xf32> to vector<8x128xf32>
    %180 = arith.addf %177, %179 : vector<8x128xf32>
    %181 = vector.extract_strided_slice %180 {offsets = [0, 0], sizes = [8, 1], strides = [1, 1]} : vector<8x128xf32> to vector<8x1xf32>
    %c0_68 = arith.constant 0 : index
    %c0_69 = arith.constant 0 : index
    %182 = vector.load %arg12[%c0_68, %c0_69] : memref<8x1xf32, #tpu.memory_space<vmem>>, vector<8x1xf32>
    tpu.vector_store %arg12[%c0_68, %c0_69], %181 {strides = array<i32>} : memref<8x1xf32, #tpu.memory_space<vmem>>, vector<8x1xf32>,
    return
  }
  func.func @transform_0(%arg0: i32) -> (i32, i32) {
    %c0_i32 = arith.constant 0 : i32
    %c0_i32_0 = arith.constant 0 : i32
    return %arg0, %c0_i32 : i32, i32
  }
  func.func @transform_1(%arg0: i32) -> (i32, i32) {
    %c0_i32 = arith.constant 0 : i32
    %c0_i32_0 = arith.constant 0 : i32
    %c0_i32_1 = arith.constant 0 : i32
    return %c0_i32, %c0_i32_0 : i32, i32
  }
  func.func @transform_2(%arg0: i32) -> (i32, i32) {
    %c0_i32 = arith.constant 0 : i32
    %c0_i32_0 = arith.constant 0 : i32
    %c0_i32_1 = arith.constant 0 : i32
    return %c0_i32, %c0_i32_0 : i32, i32
  }
  func.func @transform_3(%arg0: i32) -> (i32, i32) {
    %c0_i32 = arith.constant 0 : i32
    %c0_i32_0 = arith.constant 0 : i32
    %c0_i32_1 = arith.constant 0 : i32
    return %c0_i32, %c0_i32_0 : i32, i32
  }
  func.func @transform_4(%arg0: i32) -> (i32, i32) {
    %c0_i32 = arith.constant 0 : i32
    %c0_i32_0 = arith.constant 0 : i32
    %c0_i32_1 = arith.constant 0 : i32
    return %c0_i32, %c0_i32_0 : i32, i32
  }
  func.func @transform_5(%arg0: i32) -> (i32, i32, i32) {
    %c0_i32 = arith.constant 0 : i32
    %c0_i32_0 = arith.constant 0 : i32
    %c0_i32_1 = arith.constant 0 : i32
    %c0_i32_2 = arith.constant 0 : i32
    return %c0_i32, %c0_i32_0, %c0_i32_1 : i32, i32, i32
  }
  func.func @transform_6(%arg0: i32) -> (i32, i32) {
    %c0_i32 = arith.constant 0 : i32
    %c0_i32_0 = arith.constant 0 : i32
    %c0_i32_1 = arith.constant 0 : i32
    return %c0_i32, %c0_i32_0 : i32, i32
  }
  func.func @transform_7(%arg0: i32) -> (i32, i32) {
    %c0_i32 = arith.constant 0 : i32
    %c0_i32_0 = arith.constant 0 : i32
    %c0_i32_1 = arith.constant 0 : i32
    return %c0_i32, %c0_i32_0 : i32, i32
  }
  func.func @transform_8(%arg0: i32) -> (i32, i32) {
    %c0_i32 = arith.constant 0 : i32
    %c0_i32_0 = arith.constant 0 : i32
    %c0_i32_1 = arith.constant 0 : i32
    return %c0_i32, %c0_i32_0 : i32, i32
  }
  func.func @transform_9(%arg0: i32) -> (i32, i32) {
    %c0_i32 = arith.constant 0 : i32
    %c0_i32_0 = arith.constant 0 : i32
    %c0_i32_1 = arith.constant 0 : i32
    return %c0_i32, %c0_i32_0 : i32, i32
  }
  func.func @transform_10(%arg0: i32) -> (i32, i32) {
    %c0_i32 = arith.constant 0 : i32
    %c0_i32_0 = arith.constant 0 : i32
    %c0_i32_1 = arith.constant 0 : i32
    return %c0_i32, %c0_i32_0 : i32, i32
  }
  func.func @transform_11(%arg0: i32) -> (i32, i32) {
    %c0_i32 = arith.constant 0 : i32
    %c0_i32_0 = arith.constant 0 : i32
    return %arg0, %c0_i32 : i32, i32
  }
}

module attributes {stable_mosaic.version = 11 : i64} {
  func.func @kernel(%arg0: i32, %arg1: memref<8x128xbf16, #tpu.memory_space<vmem>>, %arg2: memref<128x128xbf16, #tpu.memory_space<vmem>>, %arg3: memref<1x128xf32, #tpu.memory_space<vmem>>, %arg4: memref<1x128xf32, #tpu.memory_space<vmem>>, %arg5: memref<1x128xf32, #tpu.memory_space<vmem>>, %arg6: memref<3x128x128xbf16, #tpu.memory_space<vmem>>, %arg7: memref<3x128xf32, #tpu.memory_space<vmem>>, %arg8: memref<3x128xf32, #tpu.memory_space<vmem>>, %arg9: memref<3x128xf32, #tpu.memory_space<vmem>>, %arg10: memref<128x128xbf16, #tpu.memory_space<vmem>>, %arg11: memref<1x128xf32, #tpu.memory_space<vmem>>, %arg12: memref<8x1xf32, #tpu.memory_space<vmem>>) attributes {dimension_semantics = [#tpu.dimension_semantics<parallel>], iteration_bounds = array<i64: 2>, scalar_prefetch = 0 : i64, scratch_operands = 0 : i64, tpu.core_type = #tpu.core_type<tc>, window_params = [{transform_indices = @transform_0, window_bounds = array<i64: 8, 128>}, {pipeline_mode = #tpu.pipeline_mode<synchronous>, transform_indices = @transform_1, window_bounds = array<i64: 128, 128>}, {pipeline_mode = #tpu.pipeline_mode<synchronous>, transform_indices = @transform_2, window_bounds = array<i64: 1, 128>}, {pipeline_mode = #tpu.pipeline_mode<synchronous>, transform_indices = @transform_3, window_bounds = array<i64: 1, 128>}, {pipeline_mode = #tpu.pipeline_mode<synchronous>, transform_indices = @transform_4, window_bounds = array<i64: 1, 128>}, {pipeline_mode = #tpu.pipeline_mode<synchronous>, transform_indices = @transform_5, window_bounds = array<i64: 3, 128, 128>}, {pipeline_mode = #tpu.pipeline_mode<synchronous>, transform_indices = @transform_6, window_bounds = array<i64: 3, 128>}, {pipeline_mode = #tpu.pipeline_mode<synchronous>, transform_indices = @transform_7, window_bounds = array<i64: 3, 128>}, {pipeline_mode = #tpu.pipeline_mode<synchronous>, transform_indices = @transform_8, window_bounds = array<i64: 3, 128>}, {pipeline_mode = #tpu.pipeline_mode<synchronous>, transform_indices = @transform_9, window_bounds = array<i64: 128, 128>}, {pipeline_mode = #tpu.pipeline_mode<synchronous>, transform_indices = @transform_10, window_bounds = array<i64: 1, 128>}, {transform_indices = @transform_11, window_bounds = array<i64: 8, 1>}]} {
    %c0 = arith.constant 0 : index
    %c0_0 = arith.constant 0 : index
    %0 = vector.load %arg1[%c0, %c0_0] : memref<8x128xbf16, #tpu.memory_space<vmem>>, vector<8x128xbf16>
    %c0_1 = arith.constant 0 : index
    %c0_2 = arith.constant 0 : index
    %1 = vector.load %arg2[%c0_1, %c0_2] : memref<128x128xbf16, #tpu.memory_space<vmem>>, vector<128x128xbf16>
    %c0_3 = arith.constant 0 : index
    %c0_4 = arith.constant 0 : index
    %2 = vector.load %arg3[%c0_3, %c0_4] : memref<1x128xf32, #tpu.memory_space<vmem>>, vector<1x128xf32>
    %c0_5 = arith.constant 0 : index
    %c0_6 = arith.constant 0 : index
    %3 = vector.load %arg4[%c0_5, %c0_6] : memref<1x128xf32, #tpu.memory_space<vmem>>, vector<1x128xf32>
    %c0_7 = arith.constant 0 : index
    %c0_8 = arith.constant 0 : index
    %4 = vector.load %arg5[%c0_7, %c0_8] : memref<1x128xf32, #tpu.memory_space<vmem>>, vector<1x128xf32>
    %cst = arith.constant dense<0.000000e+00> : vector<8x128xf32>
    %5 = tpu.matmul %0, %1, %cst {dimension_numbers = #tpu.dot_dimension_numbers<[1], [0], [0], [1], [0, 0, 1, 1], [], []>} : vector<8x128xbf16>, vector<128x128xbf16>, vector<8x128xf32> -> vector<8x128xf32>
    %6 = vector.broadcast %2 : vector<1x128xf32> to vector<8x128xf32>
    %7 = arith.addf %5, %6 : vector<8x128xf32>
    %cst_9 = arith.constant 0.000000e+00 : f32
    %8 = vector.broadcast %cst_9 : f32 to vector<8x128xf32>
    %9 = arith.cmpf ogt, %7, %8 : vector<8x128xf32>
    %10 = math.exp %7 : vector<8x128xf32>
    %cst_10 = arith.constant 1.000000e+00 : f32
    %11 = vector.broadcast %cst_10 : f32 to vector<8x128xf32>
    %12 = arith.subf %10, %11 : vector<8x128xf32>
    %cst_11 = arith.constant 1.67326319 : f32
    %13 = vector.broadcast %cst_11 : f32 to vector<8x128xf32>
    %14 = arith.mulf %13, %12 : vector<8x128xf32>
    %15 = arith.select %9, %7, %14 : vector<8x128xi1>, vector<8x128xf32>
    %cst_12 = arith.constant 1.05070102 : f32
    %16 = vector.broadcast %cst_12 : f32 to vector<8x128xf32>
    %17 = arith.mulf %16, %15 : vector<8x128xf32>
    %cst_13 = arith.constant dense<0.000000e+00> : vector<8xf32>
    %18 = vector.multi_reduction <add>, %17, %cst_13 [1] : vector<8x128xf32> to vector<8xf32>
    %19 = vector.shape_cast %18 : vector<8xf32> to vector<8x1xf32>
    %cst_14 = arith.constant 3.125000e-02 : f32
    %20 = vector.broadcast %cst_14 : f32 to vector<8x1xf32>
    %21 = arith.mulf %19, %20 : vector<8x1xf32>
    %22 = arith.mulf %17, %17 : vector<8x128xf32>
    %cst_15 = arith.constant dense<0.000000e+00> : vector<8xf32>
    %23 = vector.multi_reduction <add>, %22, %cst_15 [1] : vector<8x128xf32> to vector<8xf32>
    %24 = vector.shape_cast %23 : vector<8xf32> to vector<8x1xf32>
    %cst_16 = arith.constant 3.125000e-02 : f32
    %25 = vector.broadcast %cst_16 : f32 to vector<8x1xf32>
    %26 = arith.mulf %24, %25 : vector<8x1xf32>
    %27 = arith.mulf %21, %21 : vector<8x1xf32>
    %28 = arith.subf %26, %27 : vector<8x1xf32>
    %29 = vector.broadcast %21 : vector<8x1xf32> to vector<8x128xf32>
    %30 = arith.subf %17, %29 : vector<8x128xf32>
    %cst_17 = arith.constant 9.99999974E-6 : f32
    %31 = vector.broadcast %cst_17 : f32 to vector<8x1xf32>
    %32 = arith.addf %28, %31 : vector<8x1xf32>
    %33 = math.rsqrt %32 : vector<8x1xf32>
    %34 = vector.broadcast %33 : vector<8x1xf32> to vector<8x128xf32>
    %35 = arith.mulf %30, %34 : vector<8x128xf32>
    %36 = vector.broadcast %3 : vector<1x128xf32> to vector<8x128xf32>
    %37 = arith.mulf %35, %36 : vector<8x128xf32>
    %38 = vector.broadcast %4 : vector<1x128xf32> to vector<8x128xf32>
    %39 = arith.addf %37, %38 : vector<8x128xf32>
    %c0_i32 = arith.constant 0 : i32
    %40 = arith.truncf %39 : vector<8x128xf32> to vector<8x128xbf16>
    %41 = arith.index_cast %c0_i32 : i32 to index
    %c0_18 = arith.constant 0 : index
    %c0_19 = arith.constant 0 : index
    %42 = vector.load %arg6[%41, %c0_18, %c0_19] : memref<3x128x128xbf16, #tpu.memory_space<vmem>>, vector<1x128x128xbf16>
    %43 = vector.shape_cast %42 : vector<1x128x128xbf16> to vector<128x128xbf16>
    %44 = arith.index_cast %c0_i32 : i32 to index
    %c0_20 = arith.constant 0 : index
    %45 = vector.load %arg7[%44, %c0_20] : memref<3x128xf32, #tpu.memory_space<vmem>>, vector<1x128xf32>
    %46 = arith.index_cast %c0_i32 : i32 to index
    %c0_21 = arith.constant 0 : index
    %47 = vector.load %arg8[%46, %c0_21] : memref<3x128xf32, #tpu.memory_space<vmem>>, vector<1x128xf32>
    %48 = arith.index_cast %c0_i32 : i32 to index
    %c0_22 = arith.constant 0 : index
    %49 = vector.load %arg9[%48, %c0_22] : memref<3x128xf32, #tpu.memory_space<vmem>>, vector<1x128xf32>
    %cst_23 = arith.constant dense<0.000000e+00> : vector<8x128xf32>
    %50 = tpu.matmul %40, %43, %cst_23 {dimension_numbers = #tpu.dot_dimension_numbers<[1], [0], [0], [1], [0, 0, 1, 1], [], []>} : vector<8x128xbf16>, vector<128x128xbf16>, vector<8x128xf32> -> vector<8x128xf32>
    %51 = vector.broadcast %45 : vector<1x128xf32> to vector<8x128xf32>
    %52 = arith.addf %50, %51 : vector<8x128xf32>
    %cst_24 = arith.constant 0.000000e+00 : f32
    %53 = vector.broadcast %cst_24 : f32 to vector<8x128xf32>
    %54 = arith.cmpf ogt, %52, %53 : vector<8x128xf32>
    %55 = math.exp %52 : vector<8x128xf32>
    %cst_25 = arith.constant 1.000000e+00 : f32
    %56 = vector.broadcast %cst_25 : f32 to vector<8x128xf32>
    %57 = arith.subf %55, %56 : vector<8x128xf32>
    %cst_26 = arith.constant 1.67326319 : f32
    %58 = vector.broadcast %cst_26 : f32 to vector<8x128xf32>
    %59 = arith.mulf %58, %57 : vector<8x128xf32>
    %60 = arith.select %54, %52, %59 : vector<8x128xi1>, vector<8x128xf32>
    %cst_27 = arith.constant 1.05070102 : f32
    %61 = vector.broadcast %cst_27 : f32 to vector<8x128xf32>
    %62 = arith.mulf %61, %60 : vector<8x128xf32>
    %cst_28 = arith.constant dense<0.000000e+00> : vector<8xf32>
    %63 = vector.multi_reduction <add>, %62, %cst_28 [1] : vector<8x128xf32> to vector<8xf32>
    %64 = vector.shape_cast %63 : vector<8xf32> to vector<8x1xf32>
    %cst_29 = arith.constant 3.125000e-02 : f32
    %65 = vector.broadcast %cst_29 : f32 to vector<8x1xf32>
    %66 = arith.mulf %64, %65 : vector<8x1xf32>
    %67 = arith.mulf %62, %62 : vector<8x128xf32>
    %cst_30 = arith.constant dense<0.000000e+00> : vector<8xf32>
    %68 = vector.multi_reduction <add>, %67, %cst_30 [1] : vector<8x128xf32> to vector<8xf32>
    %69 = vector.shape_cast %68 : vector<8xf32> to vector<8x1xf32>
    %cst_31 = arith.constant 3.125000e-02 : f32
    %70 = vector.broadcast %cst_31 : f32 to vector<8x1xf32>
    %71 = arith.mulf %69, %70 : vector<8x1xf32>
    %72 = arith.mulf %66, %66 : vector<8x1xf32>
    %73 = arith.subf %71, %72 : vector<8x1xf32>
    %74 = vector.broadcast %66 : vector<8x1xf32> to vector<8x128xf32>
    %75 = arith.subf %62, %74 : vector<8x128xf32>
    %cst_32 = arith.constant 9.99999974E-6 : f32
    %76 = vector.broadcast %cst_32 : f32 to vector<8x1xf32>
    %77 = arith.addf %73, %76 : vector<8x1xf32>
    %78 = math.rsqrt %77 : vector<8x1xf32>
    %79 = vector.broadcast %78 : vector<8x1xf32> to vector<8x128xf32>
    %80 = arith.mulf %75, %79 : vector<8x128xf32>
    %81 = vector.broadcast %47 : vector<1x128xf32> to vector<8x128xf32>
    %82 = arith.mulf %80, %81 : vector<8x128xf32>
    %83 = vector.broadcast %49 : vector<1x128xf32> to vector<8x128xf32>
    %84 = arith.addf %82, %83 : vector<8x128xf32>
    %c1_i32 = arith.constant 1 : i32
    %85 = arith.truncf %84 : vector<8x128xf32> to vector<8x128xbf16>
    %86 = arith.index_cast %c1_i32 : i32 to index
    %c0_33 = arith.constant 0 : index
    %c0_34 = arith.constant 0 : index
    %87 = vector.load %arg6[%86, %c0_33, %c0_34] : memref<3x128x128xbf16, #tpu.memory_space<vmem>>, vector<1x128x128xbf16>
    %88 = vector.shape_cast %87 : vector<1x128x128xbf16> to vector<128x128xbf16>
    %89 = arith.index_cast %c1_i32 : i32 to index
    %c0_35 = arith.constant 0 : index
    %90 = vector.load %arg7[%89, %c0_35] : memref<3x128xf32, #tpu.memory_space<vmem>>, vector<1x128xf32>
    %91 = arith.index_cast %c1_i32 : i32 to index
    %c0_36 = arith.constant 0 : index
    %92 = vector.load %arg8[%91, %c0_36] : memref<3x128xf32, #tpu.memory_space<vmem>>, vector<1x128xf32>
    %93 = arith.index_cast %c1_i32 : i32 to index
    %c0_37 = arith.constant 0 : index
    %94 = vector.load %arg9[%93, %c0_37] : memref<3x128xf32, #tpu.memory_space<vmem>>, vector<1x128xf32>
    %cst_38 = arith.constant dense<0.000000e+00> : vector<8x128xf32>
    %95 = tpu.matmul %85, %88, %cst_38 {dimension_numbers = #tpu.dot_dimension_numbers<[1], [0], [0], [1], [0, 0, 1, 1], [], []>} : vector<8x128xbf16>, vector<128x128xbf16>, vector<8x128xf32> -> vector<8x128xf32>
    %96 = vector.broadcast %90 : vector<1x128xf32> to vector<8x128xf32>
    %97 = arith.addf %95, %96 : vector<8x128xf32>
    %cst_39 = arith.constant 0.000000e+00 : f32
    %98 = vector.broadcast %cst_39 : f32 to vector<8x128xf32>
    %99 = arith.cmpf ogt, %97, %98 : vector<8x128xf32>
    %100 = math.exp %97 : vector<8x128xf32>
    %cst_40 = arith.constant 1.000000e+00 : f32
    %101 = vector.broadcast %cst_40 : f32 to vector<8x128xf32>
    %102 = arith.subf %100, %101 : vector<8x128xf32>
    %cst_41 = arith.constant 1.67326319 : f32
    %103 = vector.broadcast %cst_41 : f32 to vector<8x128xf32>
    %104 = arith.mulf %103, %102 : vector<8x128xf32>
    %105 = arith.select %99, %97, %104 : vector<8x128xi1>, vector<8x128xf32>
    %cst_42 = arith.constant 1.05070102 : f32
    %106 = vector.broadcast %cst_42 : f32 to vector<8x128xf32>
    %107 = arith.mulf %106, %105 : vector<8x128xf32>
    %cst_43 = arith.constant dense<0.000000e+00> : vector<8xf32>
    %108 = vector.multi_reduction <add>, %107, %cst_43 [1] : vector<8x128xf32> to vector<8xf32>
    %109 = vector.shape_cast %108 : vector<8xf32> to vector<8x1xf32>
    %cst_44 = arith.constant 3.125000e-02 : f32
    %110 = vector.broadcast %cst_44 : f32 to vector<8x1xf32>
    %111 = arith.mulf %109, %110 : vector<8x1xf32>
    %112 = arith.mulf %107, %107 : vector<8x128xf32>
    %cst_45 = arith.constant dense<0.000000e+00> : vector<8xf32>
    %113 = vector.multi_reduction <add>, %112, %cst_45 [1] : vector<8x128xf32> to vector<8xf32>
    %114 = vector.shape_cast %113 : vector<8xf32> to vector<8x1xf32>
    %cst_46 = arith.constant 3.125000e-02 : f32
    %115 = vector.broadcast %cst_46 : f32 to vector<8x1xf32>
    %116 = arith.mulf %114, %115 : vector<8x1xf32>
    %117 = arith.mulf %111, %111 : vector<8x1xf32>
    %118 = arith.subf %116, %117 : vector<8x1xf32>
    %119 = vector.broadcast %111 : vector<8x1xf32> to vector<8x128xf32>
    %120 = arith.subf %107, %119 : vector<8x128xf32>
    %cst_47 = arith.constant 9.99999974E-6 : f32
    %121 = vector.broadcast %cst_47 : f32 to vector<8x1xf32>
    %122 = arith.addf %118, %121 : vector<8x1xf32>
    %123 = math.rsqrt %122 : vector<8x1xf32>
    %124 = vector.broadcast %123 : vector<8x1xf32> to vector<8x128xf32>
    %125 = arith.mulf %120, %124 : vector<8x128xf32>
    %126 = vector.broadcast %92 : vector<1x128xf32> to vector<8x128xf32>
    %127 = arith.mulf %125, %126 : vector<8x128xf32>
    %128 = vector.broadcast %94 : vector<1x128xf32> to vector<8x128xf32>
    %129 = arith.addf %127, %128 : vector<8x128xf32>
    %c2_i32 = arith.constant 2 : i32
    %130 = arith.truncf %129 : vector<8x128xf32> to vector<8x128xbf16>
    %131 = arith.index_cast %c2_i32 : i32 to index
    %c0_48 = arith.constant 0 : index
    %c0_49 = arith.constant 0 : index
    %132 = vector.load %arg6[%131, %c0_48, %c0_49] : memref<3x128x128xbf16, #tpu.memory_space<vmem>>, vector<1x128x128xbf16>
    %133 = vector.shape_cast %132 : vector<1x128x128xbf16> to vector<128x128xbf16>
    %134 = arith.index_cast %c2_i32 : i32 to index
    %c0_50 = arith.constant 0 : index
    %135 = vector.load %arg7[%134, %c0_50] : memref<3x128xf32, #tpu.memory_space<vmem>>, vector<1x128xf32>
    %136 = arith.index_cast %c2_i32 : i32 to index
    %c0_51 = arith.constant 0 : index
    %137 = vector.load %arg8[%136, %c0_51] : memref<3x128xf32, #tpu.memory_space<vmem>>, vector<1x128xf32>
    %138 = arith.index_cast %c2_i32 : i32 to index
    %c0_52 = arith.constant 0 : index
    %139 = vector.load %arg9[%138, %c0_52] : memref<3x128xf32, #tpu.memory_space<vmem>>, vector<1x128xf32>
    %cst_53 = arith.constant dense<0.000000e+00> : vector<8x128xf32>
    %140 = tpu.matmul %130, %133, %cst_53 {dimension_numbers = #tpu.dot_dimension_numbers<[1], [0], [0], [1], [0, 0, 1, 1], [], []>} : vector<8x128xbf16>, vector<128x128xbf16>, vector<8x128xf32> -> vector<8x128xf32>
    %141 = vector.broadcast %135 : vector<1x128xf32> to vector<8x128xf32>
    %142 = arith.addf %140, %141 : vector<8x128xf32>
    %cst_54 = arith.constant 0.000000e+00 : f32
    %143 = vector.broadcast %cst_54 : f32 to vector<8x128xf32>
    %144 = arith.cmpf ogt, %142, %143 : vector<8x128xf32>
    %145 = math.exp %142 : vector<8x128xf32>
    %cst_55 = arith.constant 1.000000e+00 : f32
    %146 = vector.broadcast %cst_55 : f32 to vector<8x128xf32>
    %147 = arith.subf %145, %146 : vector<8x128xf32>
    %cst_56 = arith.constant 1.67326319 : f32
    %148 = vector.broadcast %cst_56 : f32 to vector<8x128xf32>
    %149 = arith.mulf %148, %147 : vector<8x128xf32>
    %150 = arith.select %144, %142, %149 : vector<8x128xi1>, vector<8x128xf32>
    %cst_57 = arith.constant 1.05070102 : f32
    %151 = vector.broadcast %cst_57 : f32 to vector<8x128xf32>
    %152 = arith.mulf %151, %150 : vector<8x128xf32>
    %cst_58 = arith.constant dense<0.000000e+00> : vector<8xf32>
    %153 = vector.multi_reduction <add>, %152, %cst_58 [1] : vector<8x128xf32> to vector<8xf32>
    %154 = vector.shape_cast %153 : vector<8xf32> to vector<8x1xf32>
    %cst_59 = arith.constant 3.125000e-02 : f32
    %155 = vector.broadcast %cst_59 : f32 to vector<8x1xf32>
    %156 = arith.mulf %154, %155 : vector<8x1xf32>
    %157 = arith.mulf %152, %152 : vector<8x128xf32>
    %cst_60 = arith.constant dense<0.000000e+00> : vector<8xf32>
    %158 = vector.multi_reduction <add>, %157, %cst_60 [1] : vector<8x128xf32> to vector<8xf32>
    %159 = vector.shape_cast %158 : vector<8xf32> to vector<8x1xf32>
    %cst_61 = arith.constant 3.125000e-02 : f32
    %160 = vector.broadcast %cst_61 : f32 to vector<8x1xf32>
    %161 = arith.mulf %159, %160 : vector<8x1xf32>
    %162 = arith.mulf %156, %156 : vector<8x1xf32>
    %163 = arith.subf %161, %162 : vector<8x1xf32>
    %164 = vector.broadcast %156 : vector<8x1xf32> to vector<8x128xf32>
    %165 = arith.subf %152, %164 : vector<8x128xf32>
    %cst_62 = arith.constant 9.99999974E-6 : f32
    %166 = vector.broadcast %cst_62 : f32 to vector<8x1xf32>
    %167 = arith.addf %163, %166 : vector<8x1xf32>
    %168 = math.rsqrt %167 : vector<8x1xf32>
    %169 = vector.broadcast %168 : vector<8x1xf32> to vector<8x128xf32>
    %170 = arith.mulf %165, %169 : vector<8x128xf32>
    %171 = vector.broadcast %137 : vector<1x128xf32> to vector<8x128xf32>
    %172 = arith.mulf %170, %171 : vector<8x128xf32>
    %173 = vector.broadcast %139 : vector<1x128xf32> to vector<8x128xf32>
    %174 = arith.addf %172, %173 : vector<8x128xf32>
    %c3_i32 = arith.constant 3 : i32
    %175 = arith.truncf %174 : vector<8x128xf32> to vector<8x128xbf16>
    %c0_63 = arith.constant 0 : index
    %c0_64 = arith.constant 0 : index
    %176 = vector.load %arg10[%c0_63, %c0_64] : memref<128x128xbf16, #tpu.memory_space<vmem>>, vector<128x128xbf16>
    %cst_65 = arith.constant dense<0.000000e+00> : vector<8x128xf32>
    %177 = tpu.matmul %175, %176, %cst_65 {dimension_numbers = #tpu.dot_dimension_numbers<[1], [0], [0], [1], [0, 0, 1, 1], [], []>} : vector<8x128xbf16>, vector<128x128xbf16>, vector<8x128xf32> -> vector<8x128xf32>
    %c0_66 = arith.constant 0 : index
    %c0_67 = arith.constant 0 : index
    %178 = vector.load %arg11[%c0_66, %c0_67] : memref<1x128xf32, #tpu.memory_space<vmem>>, vector<1x128xf32>
    %179 = vector.broadcast %178 : vector<1x128xf32> to vector<8x128xf32>
    %180 = arith.addf %177, %179 : vector<8x128xf32>
    %181 = vector.extract_strided_slice %180 {offsets = [0, 0], sizes = [8, 1], strides = [1, 1]} : vector<8x128xf32> to vector<8x1xf32>
    %c0_68 = arith.constant 0 : index
    %c0_69 = arith.constant 0 : index
    %182 = vector.load %arg12[%c0_68, %c0_69] : memref<8x1xf32, #tpu.memory_space<vmem>>, vector<8x1xf32>
    tpu.vector_store %arg12[%c0_68, %c0_69], %181 {strides = array<i32>} : memref<8x1xf32, #tpu.memory_space<vmem>>, vector<8x1xf32>,
    return
  }
  func.func @transform_0(%arg0: i32) -> (i32, i32) {
    %c0_i32 = arith.constant 0 : i32
    %c0_i32_0 = arith.constant 0 : i32
    return %arg0, %c0_i32 : i32, i32
  }
  func.func @transform_1(%arg0: i32) -> (i32, i32) {
    %c0_i32 = arith.constant 0 : i32
    %c0_i32_0 = arith.constant 0 : i32
    %c0_i32_1 = arith.constant 0 : i32
    return %c0_i32, %c0_i32_0 : i32, i32
  }
  func.func @transform_2(%arg0: i32) -> (i32, i32) {
    %c0_i32 = arith.constant 0 : i32
    %c0_i32_0 = arith.constant 0 : i32
    %c0_i32_1 = arith.constant 0 : i32
    return %c0_i32, %c0_i32_0 : i32, i32
  }
  func.func @transform_3(%arg0: i32) -> (i32, i32) {
    %c0_i32 = arith.constant 0 : i32
    %c0_i32_0 = arith.constant 0 : i32
    %c0_i32_1 = arith.constant 0 : i32
    return %c0_i32, %c0_i32_0 : i32, i32
  }
  func.func @transform_4(%arg0: i32) -> (i32, i32) {
    %c0_i32 = arith.constant 0 : i32
    %c0_i32_0 = arith.constant 0 : i32
    %c0_i32_1 = arith.constant 0 : i32
    return %c0_i32, %c0_i32_0 : i32, i32
  }
  func.func @transform_5(%arg0: i32) -> (i32, i32, i32) {
    %c0_i32 = arith.constant 0 : i32
    %c0_i32_0 = arith.constant 0 : i32
    %c0_i32_1 = arith.constant 0 : i32
    %c0_i32_2 = arith.constant 0 : i32
    return %c0_i32, %c0_i32_0, %c0_i32_1 : i32, i32, i32
  }
  func.func @transform_6(%arg0: i32) -> (i32, i32) {
    %c0_i32 = arith.constant 0 : i32
    %c0_i32_0 = arith.constant 0 : i32
    %c0_i32_1 = arith.constant 0 : i32
    return %c0_i32, %c0_i32_0 : i32, i32
  }
  func.func @transform_7(%arg0: i32) -> (i32, i32) {
    %c0_i32 = arith.constant 0 : i32
    %c0_i32_0 = arith.constant 0 : i32
    %c0_i32_1 = arith.constant 0 : i32
    return %c0_i32, %c0_i32_0 : i32, i32
  }
  func.func @transform_8(%arg0: i32) -> (i32, i32) {
    %c0_i32 = arith.constant 0 : i32
    %c0_i32_0 = arith.constant 0 : i32
    %c0_i32_1 = arith.constant 0 : i32
    return %c0_i32, %c0_i32_0 : i32, i32
  }
  func.func @transform_9(%arg0: i32) -> (i32, i32) {
    %c0_i32 = arith.constant 0 : i32
    %c0_i32_0 = arith.constant 0 : i32
    %c0_i32_1 = arith.constant 0 : i32
    return %c0_i32, %c0_i32_0 : i32, i32
  }
  func.func @transform_10(%arg0: i32) -> (i32, i32) {
    %c0_i32 = arith.constant 0 : i32
    %c0_i32_0 = arith.constant 0 : i32
    %c0_i32_1 = arith.constant 0 : i32
    return %c0_i32, %c0_i32_0 : i32, i32
  }
  func.func @transform_11(%arg0: i32) -> (i32, i32) {
    %c0_i32 = arith.constant 0 : i32
    %c0_i32_0 = arith.constant 0 : i32
    return %arg0, %c0_i32 : i32, i32
  }
}

</mosaic_0001>

<llo_original>
// kernel: tpu_custom_call.1
$region0: #{tpu_custom_call.1}
  #allocation0 [shape = 'u32[]', space=smem, size = 0x4, offset = 0x4, fixed_abs, tag = 'smem constant byte address 0x4 - core index']
  #allocation1 [shape = 'u32[144,128]{1,0:T(1,128)}', space=vmem, size = 0x12000, scoped, tag = 'internal scratch']
  %s0 = inlined_call_operand.hbm [shape: bf16[16,128], index: 0, kind: input, shape index: {}]
  %s1 = inlined_call_operand.hbm [shape: bf16[128,128], index: 1, kind: input, shape index: {}]
  %s2 = inlined_call_operand.hbm [shape: f32[1,128], index: 2, kind: input, shape index: {}]
  %s3 = inlined_call_operand.hbm [shape: f32[1,128], index: 3, kind: input, shape index: {}]
  %s4 = inlined_call_operand.hbm [shape: f32[1,128], index: 4, kind: input, shape index: {}]
  %s5 = inlined_call_operand.hbm [shape: bf16[3,128,128], index: 5, kind: input, shape index: {}]
  %s6 = inlined_call_operand.vmem [shape: f32[3,128], index: 6, kind: input, shape index: {}]
  %s7 = inlined_call_operand.vmem [shape: f32[3,128], index: 7, kind: input, shape index: {}]
  %s8 = inlined_call_operand.vmem [shape: f32[3,128], index: 8, kind: input, shape index: {}]
  %s9 = inlined_call_operand.hbm [shape: bf16[128,128], index: 9, kind: input, shape index: {}]
  %s10 = inlined_call_operand.vmem [shape: f32[1,128], index: 10, kind: input, shape index: {}]
  %s11 = inlined_call_operand.vmem [shape: f32[16,1], index: 11, kind: output, shape index: {}]
  %s12 = sld [smem:[#allocation0]]
  $region105: #{tpu_custom_call.1} parent=0
    _
  %s14 = ssub.s32 1, %s12
  %s15 = scalar_select 0, %s14, %s12
  $region1: #{tpu_custom_call.1} parent=0
    #allocation2 [shape = 'u8[4096]{0}', space=vmem, size = 0x1000, scoped, tag = 'input window, operand 0']
    #allocation3 [shape = 's32[2]{0}', space=sflag, size = 0x8, scoped, tag = 'scoped memory for tpu_custom_call.1']
    #allocation4 [shape = 'u8[32768]{0}', space=vmem, size = 0x8000, scoped, tag = 'input window, operand 1, single buffered']
    #allocation5 [shape = 's32[1]{0}', space=sflag, size = 0x4, scoped, tag = 'scoped memory for tpu_custom_call.1']
    #allocation6 [shape = 'u8[512]{0}', space=vmem, size = 0x400, scoped, tag = 'input window, operand 2, single buffered']
    #allocation7 [shape = 'u8[512]{0}', space=vmem, size = 0x400, scoped, tag = 'input window, operand 3, single buffered']
    #allocation8 [shape = 's32[1]{0}', space=sflag, size = 0x4, scoped, tag = 'scoped memory for tpu_custom_call.1']
    #allocation9 [shape = 'u8[512]{0}', space=vmem, size = 0x400, scoped, tag = 'input window, operand 4, single buffered']
    #allocation10 [shape = 'u8[98304]{0}', space=vmem, size = 0x18000, scoped, tag = 'input window, operand 5, single buffered']
    #allocation11 [shape = 's32[1]{0}', space=sflag, size = 0x4, scoped, tag = 'scoped memory for tpu_custom_call.1']
    #allocation12 [shape = 'u8[32768]{0}', space=vmem, size = 0x8000, scoped, tag = 'input window, operand 9, single buffered']
    %16 = vsyncpa [#allocation3], 0
    %s17 = scalar_lea.sflag [#allocation3], 1
    %18 = vsyncpa %s17, 0
    %19 = vsyncpa [#allocation5], 0
    %20 = vsyncpa [#allocation8], 0
    %21 = vsyncpa [#allocation11], 0
    loop: start=0, step=1, limit=4
    $region2: #{tpu_custom_call.1} parent=1 // loop_pre_header
      _
    $region3: #{tpu_custom_call.1} parent=1 // loop_header
      %s23 = sphi 0, %s27
      %p24 = scmp.ge.s32.totalorder %s23, 4
      %s33 = sphi 0, %s35
      %s36 = sphi 0, %s33
      %s37 = sphi 0, %s36
      %s53 = sphi 0, %s37
      %s57 = sphi 0, %s57
      %s59 = sphi 0, %s57
      %s60 = sphi 0, %s59
      %s74 = sphi 0, %s60
      %s78 = sphi 0, %s78
      %s80 = sphi 0, %s78
      %s81 = sphi 0, %s80
      %s95 = sphi 0, %s81
      %s99 = sphi 0, %s99
      %s101 = sphi 0, %s99
      %s102 = sphi 0, %s101
      %s116 = sphi 0, %s102
      %s120 = sphi 0, %s120
      %s122 = sphi 0, %s120
      %s123 = sphi 0, %s122
      %s137 = sphi 0, %s123
      %s141 = sphi 0, %s141
      %s143 = sphi 0, %s141
      %s144 = sphi 0, %s143
      %s158 = sphi 0, %s144
      %s162 = sphi 0, %s162
      %s164 = sphi 0, %s162
      %s165 = sphi 0, %s164
      %s179 = sphi 0, %s165
      %s183 = sphi 0, %s183
      %s185 = sphi 0, %s183
      %s186 = sphi 0, %s185
      %s200 = sphi 0, %s186
      %s204 = sphi 0, %s204
      %s206 = sphi 0, %s204
      %s207 = sphi 0, %s206
      %s221 = sphi 0, %s207
      %s225 = sphi 0, %s225
      %s227 = sphi 0, %s225
      %s228 = sphi 0, %s227
      %s242 = sphi 0, %s228
      %s246 = sphi 0, %s246
      %s248 = sphi 0, %s246
      %s249 = sphi 0, %s248
      %s263 = sphi 0, %s249
      %s269 = sphi 0, %s271
      %s272 = sphi 0, %s269
      %s273 = sphi 0, %s272
      %s289 = sphi 0, %s273
    $region4: #{tpu_custom_call.1} parent=1 // loop_header_branch
      %26 = sbr.rel (%p24) target = $region8
    $region5: #{tpu_custom_call.1} parent=1 // loop_body
      %s28 = ssub.s32 %s23, 1
      %s29 = ssub.s32 %s23, 2
      %s30 = sadd.s32 %s23, 1
      %s31 = ssub.s32 %s23, %s30
      %p32 = scmp.eq.s32.totalorder %s31, 0
      %s34 = sadd.s32 %s33, 1
      %s35 = scalar_select %p32, %s33, %s34
      %p38 = pneg %p32
      %p39 = scmp.eq.s32.totalorder %s23, 1
      %p40 = por %p38, %p39
      %p41 = scmp.ne.s32.totalorder %s33, %s36
      %p42 = scmp.eq.s32.totalorder %s23, 0
      %p43 = por %p41, %p42
      %p44 = scmp.ne.s32.totalorder %s33, %s36
      %p45 = scmp.eq.s32.totalorder %s28, 1
      %p46 = por %p44, %p45
      %p47 = scmp.ne.s32.totalorder %s36, %s37
      %p48 = scmp.eq.s32.totalorder %s28, 0
      %p49 = por %p47, %p48
      %p50 = scmp.ne.s32.totalorder %s36, %s37
      %p51 = scmp.eq.s32.totalorder %s29, 1
      %p52 = por %p50, %p51
      %p54 = scmp.ne.s32.totalorder %s37, %s53
      %p55 = scmp.eq.s32.totalorder %s29, 0
      %p56 = por %p54, %p55
      %s58 = sadd.s32 %s57, 1
      %p61 = scmp.eq.s32.totalorder %s23, 1
      %p62 = scmp.ne.s32.totalorder %s57, %s59
      %p63 = scmp.eq.s32.totalorder %s23, 0
      %p64 = por %p62, %p63
      %p65 = scmp.ne.s32.totalorder %s57, %s59
      %p66 = scmp.eq.s32.totalorder %s28, 1
      %p67 = por %p65, %p66
      %p68 = scmp.ne.s32.totalorder %s59, %s60
      %p69 = scmp.eq.s32.totalorder %s28, 0
      %p70 = por %p68, %p69
      %p71 = scmp.ne.s32.totalorder %s59, %s60
      %p72 = scmp.eq.s32.totalorder %s29, 1
      %p73 = por %p71, %p72
      %p75 = scmp.ne.s32.totalorder %s60, %s74
      %p76 = scmp.eq.s32.totalorder %s29, 0
      %p77 = por %p75, %p76
      %s79 = sadd.s32 %s78, 1
      %p82 = scmp.eq.s32.totalorder %s23, 1
      %p83 = scmp.ne.s32.totalorder %s78, %s80
      %p84 = scmp.eq.s32.totalorder %s23, 0
      %p85 = por %p83, %p84
      %p86 = scmp.ne.s32.totalorder %s78, %s80
      %p87 = scmp.eq.s32.totalorder %s28, 1
      %p88 = por %p86, %p87
      %p89 = scmp.ne.s32.totalorder %s80, %s81
      %p90 = scmp.eq.s32.totalorder %s28, 0
      %p91 = por %p89, %p90
      %p92 = scmp.ne.s32.totalorder %s80, %s81
      %p93 = scmp.eq.s32.totalorder %s29, 1
      %p94 = por %p92, %p93
      %p96 = scmp.ne.s32.totalorder %s81, %s95
      %p97 = scmp.eq.s32.totalorder %s29, 0
      %p98 = por %p96, %p97
      %s100 = sadd.s32 %s99, 1
      %p103 = scmp.eq.s32.totalorder %s23, 1
      %p104 = scmp.ne.s32.totalorder %s99, %s101
      %p105 = scmp.eq.s32.totalorder %s23, 0
      %p106 = por %p104, %p105
      %p107 = scmp.ne.s32.totalorder %s99, %s101
      %p108 = scmp.eq.s32.totalorder %s28, 1
      %p109 = por %p107, %p108
      %p110 = scmp.ne.s32.totalorder %s101, %s102
      %p111 = scmp.eq.s32.totalorder %s28, 0
      %p112 = por %p110, %p111
      %p113 = scmp.ne.s32.totalorder %s101, %s102
      %p114 = scmp.eq.s32.totalorder %s29, 1
      %p115 = por %p113, %p114
      %p117 = scmp.ne.s32.totalorder %s102, %s116
      %p118 = scmp.eq.s32.totalorder %s29, 0
      %p119 = por %p117, %p118
      %s121 = sadd.s32 %s120, 1
      %p124 = scmp.eq.s32.totalorder %s23, 1
      %p125 = scmp.ne.s32.totalorder %s120, %s122
      %p126 = scmp.eq.s32.totalorder %s23, 0
      %p127 = por %p125, %p126
      %p128 = scmp.ne.s32.totalorder %s120, %s122
      %p129 = scmp.eq.s32.totalorder %s28, 1
      %p130 = por %p128, %p129
      %p131 = scmp.ne.s32.totalorder %s122, %s123
      %p132 = scmp.eq.s32.totalorder %s28, 0
      %p133 = por %p131, %p132
      %p134 = scmp.ne.s32.totalorder %s122, %s123
      %p135 = scmp.eq.s32.totalorder %s29, 1
      %p136 = por %p134, %p135
      %p138 = scmp.ne.s32.totalorder %s123, %s137
      %p139 = scmp.eq.s32.totalorder %s29, 0
      %p140 = por %p138, %p139
      %s142 = sadd.s32 %s141, 1
      %p145 = scmp.eq.s32.totalorder %s23, 1
      %p146 = scmp.ne.s32.totalorder %s141, %s143
      %p147 = scmp.eq.s32.totalorder %s23, 0
      %p148 = por %p146, %p147
      %p149 = scmp.ne.s32.totalorder %s141, %s143
      %p150 = scmp.eq.s32.totalorder %s28, 1
      %p151 = por %p149, %p150
      %p152 = scmp.ne.s32.totalorder %s143, %s144
      %p153 = scmp.eq.s32.totalorder %s28, 0
      %p154 = por %p152, %p153
      %p155 = scmp.ne.s32.totalorder %s143, %s144
      %p156 = scmp.eq.s32.totalorder %s29, 1
      %p157 = por %p155, %p156
      %p159 = scmp.ne.s32.totalorder %s144, %s158
      %p160 = scmp.eq.s32.totalorder %s29, 0
      %p161 = por %p159, %p160
      %s163 = sadd.s32 %s162, 1
      %p166 = scmp.eq.s32.totalorder %s23, 1
      %p167 = scmp.ne.s32.totalorder %s162, %s164
      %p168 = scmp.eq.s32.totalorder %s23, 0
      %p169 = por %p167, %p168
      %p170 = scmp.ne.s32.totalorder %s162, %s164
      %p171 = scmp.eq.s32.totalorder %s28, 1
      %p172 = por %p170, %p171
      %p173 = scmp.ne.s32.totalorder %s164, %s165
      %p174 = scmp.eq.s32.totalorder %s28, 0
      %p175 = por %p173, %p174
      %p176 = scmp.ne.s32.totalorder %s164, %s165
      %p177 = scmp.eq.s32.totalorder %s29, 1
      %p178 = por %p176, %p177
      %p180 = scmp.ne.s32.totalorder %s165, %s179
      %p181 = scmp.eq.s32.totalorder %s29, 0
      %p182 = por %p180, %p181
      %s184 = sadd.s32 %s183, 1
      %p187 = scmp.eq.s32.totalorder %s23, 1
      %p188 = scmp.ne.s32.totalorder %s183, %s185
      %p189 = scmp.eq.s32.totalorder %s23, 0
      %p190 = por %p188, %p189
      %p191 = scmp.ne.s32.totalorder %s183, %s185
      %p192 = scmp.eq.s32.totalorder %s28, 1
      %p193 = por %p191, %p192
      %p194 = scmp.ne.s32.totalorder %s185, %s186
      %p195 = scmp.eq.s32.totalorder %s28, 0
      %p196 = por %p194, %p195
      %p197 = scmp.ne.s32.totalorder %s185, %s186
      %p198 = scmp.eq.s32.totalorder %s29, 1
      %p199 = por %p197, %p198
      %p201 = scmp.ne.s32.totalorder %s186, %s200
      %p202 = scmp.eq.s32.totalorder %s29, 0
      %p203 = por %p201, %p202
      %s205 = sadd.s32 %s204, 1
      %p208 = scmp.eq.s32.totalorder %s23, 1
      %p209 = scmp.ne.s32.totalorder %s204, %s206
      %p210 = scmp.eq.s32.totalorder %s23, 0
      %p211 = por %p209, %p210
      %p212 = scmp.ne.s32.totalorder %s204, %s206
      %p213 = scmp.eq.s32.totalorder %s28, 1
      %p214 = por %p212, %p213
      %p215 = scmp.ne.s32.totalorder %s206, %s207
      %p216 = scmp.eq.s32.totalorder %s28, 0
      %p217 = por %p215, %p216
      %p218 = scmp.ne.s32.totalorder %s206, %s207
      %p219 = scmp.eq.s32.totalorder %s29, 1
      %p220 = por %p218, %p219
      %p222 = scmp.ne.s32.totalorder %s207, %s221
      %p223 = scmp.eq.s32.totalorder %s29, 0
      %p224 = por %p222, %p223
      %s226 = sadd.s32 %s225, 1
      %p229 = scmp.eq.s32.totalorder %s23, 1
      %p230 = scmp.ne.s32.totalorder %s225, %s227
      %p231 = scmp.eq.s32.totalorder %s23, 0
      %p232 = por %p230, %p231
      %p233 = scmp.ne.s32.totalorder %s225, %s227
      %p234 = scmp.eq.s32.totalorder %s28, 1
      %p235 = por %p233, %p234
      %p236 = scmp.ne.s32.totalorder %s227, %s228
      %p237 = scmp.eq.s32.totalorder %s28, 0
      %p238 = por %p236, %p237
      %p239 = scmp.ne.s32.totalorder %s227, %s228
      %p240 = scmp.eq.s32.totalorder %s29, 1
      %p241 = por %p239, %p240
      %p243 = scmp.ne.s32.totalorder %s228, %s242
      %p244 = scmp.eq.s32.totalorder %s29, 0
      %p245 = por %p243, %p244
      %s247 = sadd.s32 %s246, 1
      %p250 = scmp.eq.s32.totalorder %s23, 1
      %p251 = scmp.ne.s32.totalorder %s246, %s248
      %p252 = scmp.eq.s32.totalorder %s23, 0
      %p253 = por %p251, %p252
      %p254 = scmp.ne.s32.totalorder %s246, %s248
      %p255 = scmp.eq.s32.totalorder %s28, 1
      %p256 = por %p254, %p255
      %p257 = scmp.ne.s32.totalorder %s248, %s249
      %p258 = scmp.eq.s32.totalorder %s28, 0
      %p259 = por %p257, %p258
      %p260 = scmp.ne.s32.totalorder %s248, %s249
      %p261 = scmp.eq.s32.totalorder %s29, 1
      %p262 = por %p260, %p261
      %p264 = scmp.ne.s32.totalorder %s249, %s263
      %p265 = scmp.eq.s32.totalorder %s29, 0
      %p266 = por %p264, %p265
      %s267 = ssub.s32 %s23, %s30
      %p268 = scmp.eq.s32.totalorder %s267, 0
      %s270 = sadd.s32 %s269, 1
      %s271 = scalar_select %p268, %s269, %s270
      %p274 = pneg %p268
      %p275 = scmp.eq.s32.totalorder %s23, 1
      %p276 = por %p274, %p275
      %p277 = scmp.ne.s32.totalorder %s269, %s272
      %p278 = scmp.eq.s32.totalorder %s23, 0
      %p279 = por %p277, %p278
      %p280 = scmp.ne.s32.totalorder %s269, %s272
      %p281 = scmp.eq.s32.totalorder %s28, 1
      %p282 = por %p280, %p281
      %p283 = scmp.ne.s32.totalorder %s272, %s273
      %p284 = scmp.eq.s32.totalorder %s28, 0
      %p285 = por %p283, %p284
      %p286 = scmp.ne.s32.totalorder %s272, %s273
      %p287 = scmp.eq.s32.totalorder %s29, 1
      %p288 = por %p286, %p287
      %p290 = scmp.ne.s32.totalorder %s273, %s289
      %p291 = scmp.eq.s32.totalorder %s29, 0
      %p292 = por %p290, %p291
      %p293 = scmp.le.s32.totalorder 1, %s23
      %p294 = scmp.lt.s32.totalorder %s23, 3
      %p295 = pnand %p293, %p294
      %p296 = pneg %p295
      // Predicated region
      $region9: #{tpu_custom_call.1} parent=5 // pred_check
        _
      $region10: #{tpu_custom_call.1} parent=5 // pred_check_branch
        %298 = sbr.rel (%p295) target = $region12
      $region11: #{tpu_custom_call.1} parent=5 // pred_region
        %s299 = ssub.s32 %s23, 1
        // Predicated region
        $region13: #{tpu_custom_call.1} parent=11 // pred_check
          %p300 = pneg %p70
        $region14: #{tpu_custom_call.1} parent=11 // pred_check_branch
          %302 = sbr.rel (%p300) target = $region16
        $region15: #{tpu_custom_call.1} parent=11 // pred_region
          %s304 = ssub.s32 1024, 1024
          %305 = vsyncadd [#allocation5], %s304
          %s306 = sshll.u32 [#allocation4], 4
          %s307 = int_to_ptr.vmem [resolvable:$true] %s306
          %312 = dma.hbm_to_vmem [thread:$0]  %s1, 1024, %s307, [#allocation5], 64, 64, 4
        $region16: #{tpu_custom_call.1} parent=11 // pred_fallthru
          _
        // Predicated region
        $region17: #{tpu_custom_call.1} parent=11 // pred_check
          %p313 = pneg %p91
        $region18: #{tpu_custom_call.1} parent=11 // pred_check_branch
          %315 = sbr.rel (%p313) target = $region20
        $region19: #{tpu_custom_call.1} parent=11 // pred_region
          %s317 = ssub.s32 16, 16
          %318 = vsyncadd [#allocation5], %s317
          %s320 = sshll.u32 [#allocation6], 4
          %s321 = int_to_ptr.vmem [resolvable:$true] %s320
          %323 = dma.hbm_to_vmem [thread:$0]  %s2, 16, %s321, [#allocation5]
        $region20: #{tpu_custom_call.1} parent=11 // pred_fallthru
          _
        // Predicated region
        $region21: #{tpu_custom_call.1} parent=11 // pred_check
          %p324 = pneg %p112
        $region22: #{tpu_custom_call.1} parent=11 // pred_check_branch
          %326 = sbr.rel (%p324) target = $region24
        $region23: #{tpu_custom_call.1} parent=11 // pred_region
          %s328 = ssub.s32 16, 16
          %329 = vsyncadd [#allocation8], %s328
          %s331 = sshll.u32 [#allocation7], 4
          %s332 = int_to_ptr.vmem [resolvable:$true] %s331
          %334 = dma.hbm_to_vmem [thread:$0]  %s3, 16, %s332, [#allocation8]
        $region24: #{tpu_custom_call.1} parent=11 // pred_fallthru
          _
        // Predicated region
        $region25: #{tpu_custom_call.1} parent=11 // pred_check
          %p335 = pneg %p133
        $region26: #{tpu_custom_call.1} parent=11 // pred_check_branch
          %337 = sbr.rel (%p335) target = $region28
        $region27: #{tpu_custom_call.1} parent=11 // pred_region
          %s339 = ssub.s32 16, 16
          %340 = vsyncadd [#allocation8], %s339
          %s342 = sshll.u32 [#allocation9], 4
          %s343 = int_to_ptr.vmem [resolvable:$true] %s342
          %345 = dma.hbm_to_vmem [thread:$0]  %s4, 16, %s343, [#allocation8]
        $region28: #{tpu_custom_call.1} parent=11 // pred_fallthru
          _
        // Predicated region
        $region29: #{tpu_custom_call.1} parent=11 // pred_check
          %p346 = pneg %p154
        $region30: #{tpu_custom_call.1} parent=11 // pred_check_branch
          %348 = sbr.rel (%p346) target = $region32
        $region31: #{tpu_custom_call.1} parent=11 // pred_region
          %s350 = ssub.s32 3072, 3072
          %351 = vsyncadd [#allocation11], %s350
          %s352 = sshll.u32 [#allocation10], 4
          %s353 = int_to_ptr.vmem [resolvable:$true] %s352
          %358 = dma.hbm_to_vmem [thread:$0]  %s5, 3072, %s353, [#allocation11], 64, 64, 4
        $region32: #{tpu_custom_call.1} parent=11 // pred_fallthru
          _
        // Predicated region
        $region33: #{tpu_custom_call.1} parent=11 // pred_check
          %p359 = pneg %p175
        $region34: #{tpu_custom_call.1} parent=11 // pred_check_branch
          %361 = sbr.rel (%p359) target = $region36
        $region35: #{tpu_custom_call.1} parent=11 // pred_region
          _
        $region36: #{tpu_custom_call.1} parent=11 // pred_fallthru
          _
        // Predicated region
        $region37: #{tpu_custom_call.1} parent=11 // pred_check
          %p362 = pneg %p196
        $region38: #{tpu_custom_call.1} parent=11 // pred_check_branch
          %364 = sbr.rel (%p362) target = $region40
        $region39: #{tpu_custom_call.1} parent=11 // pred_region
          _
        $region40: #{tpu_custom_call.1} parent=11 // pred_fallthru
          _
        // Predicated region
        $region41: #{tpu_custom_call.1} parent=11 // pred_check
          %p365 = pneg %p217
        $region42: #{tpu_custom_call.1} parent=11 // pred_check_branch
          %367 = sbr.rel (%p365) target = $region44
        $region43: #{tpu_custom_call.1} parent=11 // pred_region
          _
        $region44: #{tpu_custom_call.1} parent=11 // pred_fallthru
          _
        // Predicated region
        $region45: #{tpu_custom_call.1} parent=11 // pred_check
          %p368 = pneg %p238
        $region46: #{tpu_custom_call.1} parent=11 // pred_check_branch
          %370 = sbr.rel (%p368) target = $region48
        $region47: #{tpu_custom_call.1} parent=11 // pred_region
          %s372 = ssub.s32 1024, 1024
          %373 = vsyncadd [#allocation11], %s372
          %s374 = sshll.u32 [#allocation12], 4
          %s375 = int_to_ptr.vmem [resolvable:$true] %s374
          %380 = dma.hbm_to_vmem [thread:$0]  %s9, 1024, %s375, [#allocation11], 64, 64, 4
        $region48: #{tpu_custom_call.1} parent=11 // pred_fallthru
          _
        // Predicated region
        $region49: #{tpu_custom_call.1} parent=11 // pred_check
          %p381 = pneg %p259
        $region50: #{tpu_custom_call.1} parent=11 // pred_check_branch
          %383 = sbr.rel (%p381) target = $region52
        $region51: #{tpu_custom_call.1} parent=11 // pred_region
          _
        $region52: #{tpu_custom_call.1} parent=11 // pred_fallthru
          _
      $region12: #{tpu_custom_call.1} parent=5 // pred_fallthru
        _
      %p384 = scmp.lt.s32.totalorder %s23, 2
      // Predicated region
      $region53: #{tpu_custom_call.1} parent=5 // pred_check
        %p385 = pneg %p384
      $region54: #{tpu_custom_call.1} parent=5 // pred_check_branch
        %387 = sbr.rel (%p385) target = $region56
      $region55: #{tpu_custom_call.1} parent=5 // pred_region
        // Predicated region
        $region57: #{tpu_custom_call.1} parent=55 // pred_check
          %p388 = pneg %p43
        $region58: #{tpu_custom_call.1} parent=55 // pred_check_branch
          %390 = sbr.rel (%p388) target = $region60
        $region59: #{tpu_custom_call.1} parent=55 // pred_region
          %s391 = sand.u32 %s33, 1
          %s392 = scalar_lea.sflag [#allocation3], %s391
          %s393 = sand.u32 %s33, 1
          %s394 = smul.addr %s393, 4
          %s395 = scalar_lea.vmem [#allocation2], %s394
          %s397 = ssub.s32 64, 64
          %398 = vsyncadd %s392, %s397
          %s399 = smul.addr %s23, 64
          %s400 = scalar_lea.hbm %s0, %s399
          %s402 = sshll.u32 %s395, 4
          %s403 = int_to_ptr.vmem [resolvable:$true] %s402
          %405 = dma.hbm_to_vmem [thread:$0]  %s400, 64, %s403, %s392
        $region60: #{tpu_custom_call.1} parent=55 // pred_fallthru
          _
      $region56: #{tpu_custom_call.1} parent=5 // pred_fallthru
        _
      %p406 = scmp.le.s32.totalorder 1, %s23
      %p407 = scmp.lt.s32.totalorder %s23, 3
      %p408 = pnand %p406, %p407
      %p409 = pneg %p408
      // Predicated region
      $region61: #{tpu_custom_call.1} parent=5 // pred_check
        _
      $region62: #{tpu_custom_call.1} parent=5 // pred_check_branch
        %411 = sbr.rel (%p408) target = $region64
      $region63: #{tpu_custom_call.1} parent=5 // pred_region
        %s412 = ssub.s32 %s23, 1
        %s413 = sand.u32 %s36, 1
        %s414 = scalar_lea.sflag [#allocation3], %s413
        %s415 = sand.u32 %s36, 1
        %s416 = smul.addr %s415, 4
        %s417 = scalar_lea.vmem [#allocation2], %s416
        // Predicated region
        $region65: #{tpu_custom_call.1} parent=63 // pred_check
          %p418 = pneg %p49
        $region66: #{tpu_custom_call.1} parent=63 // pred_check_branch
          %420 = sbr.rel (%p418) target = $region68
        $region67: #{tpu_custom_call.1} parent=63 // pred_region
          %421 = dma.done %s414, 64
        $region68: #{tpu_custom_call.1} parent=63 // pred_fallthru
          _
        // Predicated region
        $region69: #{tpu_custom_call.1} parent=63 // pred_check
          %p422 = pneg %p70
        $region70: #{tpu_custom_call.1} parent=63 // pred_check_branch
          %424 = sbr.rel (%p422) target = $region72
        $region71: #{tpu_custom_call.1} parent=63 // pred_region
          %425 = dma.done [#allocation5], 1024
        $region72: #{tpu_custom_call.1} parent=63 // pred_fallthru
          _
        // Predicated region
        $region73: #{tpu_custom_call.1} parent=63 // pred_check
          %p426 = pneg %p91
        $region74: #{tpu_custom_call.1} parent=63 // pred_check_branch
          %428 = sbr.rel (%p426) target = $region76
        $region75: #{tpu_custom_call.1} parent=63 // pred_region
          %429 = dma.done [#allocation5], 16
        $region76: #{tpu_custom_call.1} parent=63 // pred_fallthru
          _
        // Predicated region
        $region77: #{tpu_custom_call.1} parent=63 // pred_check
          %p430 = pneg %p112
        $region78: #{tpu_custom_call.1} parent=63 // pred_check_branch
          %432 = sbr.rel (%p430) target = $region80
        $region79: #{tpu_custom_call.1} parent=63 // pred_region
          %433 = dma.done [#allocation8], 16
        $region80: #{tpu_custom_call.1} parent=63 // pred_fallthru
          _
        // Predicated region
        $region81: #{tpu_custom_call.1} parent=63 // pred_check
          %p434 = pneg %p133
        $region82: #{tpu_custom_call.1} parent=63 // pred_check_branch
          %436 = sbr.rel (%p434) target = $region84
        $region83: #{tpu_custom_call.1} parent=63 // pred_region
          %437 = dma.done [#allocation8], 16
        $region84: #{tpu_custom_call.1} parent=63 // pred_fallthru
          _
        // Predicated region
        $region85: #{tpu_custom_call.1} parent=63 // pred_check
          %p438 = pneg %p154
        $region86: #{tpu_custom_call.1} parent=63 // pred_check_branch
          %440 = sbr.rel (%p438) target = $region88
        $region87: #{tpu_custom_call.1} parent=63 // pred_region
          %441 = dma.done [#allocation11], 3072
        $region88: #{tpu_custom_call.1} parent=63 // pred_fallthru
          _
        // Predicated region
        $region89: #{tpu_custom_call.1} parent=63 // pred_check
          %p442 = pneg %p238
        $region90: #{tpu_custom_call.1} parent=63 // pred_check_branch
          %444 = sbr.rel (%p442) target = $region92
        $region91: #{tpu_custom_call.1} parent=63 // pred_region
          %445 = dma.done [#allocation11], 1024
        $region92: #{tpu_custom_call.1} parent=63 // pred_fallthru
          _
        %s446 = sand.u32 %s36, 1
        %s447 = scalar_lea.sflag [#allocation3], %s446
        %s448 = sand.u32 %s36, 1
        %s449 = smul.addr %s448, 4
        %s450 = scalar_lea.vmem [#allocation2], %s449
        %p451 = pneg %p49
        %p452 = pneg %p46
        %p453 = pneg %p70
        %p454 = pneg %p67
        %p455 = pneg %p91
        %p456 = pneg %p88
        %p457 = pneg %p112
        %p458 = pneg %p109
        %p459 = pneg %p133
        %p460 = pneg %p130
        %p461 = pneg %p154
        %p462 = pneg %p151
        %p463 = pneg %p175
        %p464 = pneg %p172
        %p465 = pneg %p196
        %p466 = pneg %p193
        %p467 = pneg %p217
        %p468 = pneg %p214
        %p469 = pneg %p238
        %p470 = pneg %p235
        %p471 = pneg %p259
        %p472 = pneg %p256
        %p473 = pneg %p285
        %p474 = pneg %p282
        %p475 = scmp.lt.s32.totalorder %s28, 1
        %s476 = scalar_select %p475, %s28, 1
        %s477 = smul.addr %s476, 8
        %s478 = scalar_lea.vmem %s11, %s477
        %p479 = scmp.lt.s32.totalorder %s28, 1
        %s480 = scalar_select %p479, %s28, 1
        %s481 = smul.addr %s480, 8
        %s482 = scalar_lea.vmem %s11, %s481
        %v484 = vld [vmem:[%s417] sm:$0xf]
        %v485 = vld [vmem:[#allocation4] sm:$0xf]
        %v486 = vld [vmem:[#allocation4 + $0x4] sm:$0xf]
        %v487 = vld [vmem:[#allocation4 + $0x8] sm:$0xf]
        %v488 = vld [vmem:[#allocation4 + $0xc] sm:$0xf]
        %v489 = vld [vmem:[#allocation4 + $0x10] sm:$0xf]
        %v490 = vld [vmem:[#allocation4 + $0x14] sm:$0xf]
        %v491 = vld [vmem:[#allocation4 + $0x18] sm:$0xf]
        %v492 = vld [vmem:[#allocation4 + $0x1c] sm:$0xf]
        %v493 = vld [vmem:[#allocation4 + $0x20] sm:$0xf]
        %v494 = vld [vmem:[#allocation4 + $0x24] sm:$0xf]
        %v495 = vld [vmem:[#allocation4 + $0x28] sm:$0xf]
        %v496 = vld [vmem:[#allocation4 + $0x2c] sm:$0xf]
        %v497 = vld [vmem:[#allocation4 + $0x30] sm:$0xf]
        %v498 = vld [vmem:[#allocation4 + $0x34] sm:$0xf]
        %v499 = vld [vmem:[#allocation4 + $0x38] sm:$0xf]
        %v500 = vld [vmem:[#allocation4 + $0x3c] sm:$0xf]
        %v501 = vld [vmem:[#allocation6] sm:$0x1]
        %v502 = vld [vmem:[#allocation7] sm:$0x1]
        %v503 = vld [vmem:[#allocation9] sm:$0x1]
        %v505 = vlaneseq
        %v506 = vshrl.u32 %v505, 7
        %v507 = vsub.s32 0, %v506
        %v508 = vrot.slane %v501, %v507
        %v526 = vunpack.c.l.b16 %v485
        %v527 = vunpack.c.l.b16 %v486
        %v528 = vunpack.c.l.b16 %v487
        %v529 = vunpack.c.l.b16 %v488
        %v530 = vunpack.c.l.b16 %v489
        %v531 = vunpack.c.l.b16 %v490
        %v532 = vunpack.c.l.b16 %v491
        %v533 = vunpack.c.l.b16 %v492
        %v534 = vunpack.c.l.b16 %v493
        %v535 = vunpack.c.l.b16 %v494
        %v536 = vunpack.c.l.b16 %v495
        %v537 = vunpack.c.l.b16 %v496
        %v538 = vunpack.c.l.b16 %v497
        %v539 = vunpack.c.l.b16 %v498
        %v540 = vunpack.c.l.b16 %v499
        %v541 = vunpack.c.l.b16 %v500
        %v542 = vpack.c.b16 %v527, %v526
        %v543 = vpack.c.b16 %v529, %v528
        %v544 = vpack.c.b16 %v531, %v530
        %v545 = vpack.c.b16 %v533, %v532
        %v546 = vpack.c.b16 %v535, %v534
        %v547 = vpack.c.b16 %v537, %v536
        %v548 = vpack.c.b16 %v539, %v538
        %v549 = vpack.c.b16 %v541, %v540
        %558 = vmatprep.subr.bf16.mxu0 0
        %559 = vmatpush1.bf16.msra.mxu0 %v549
        %560 = vmatprep.subr.bf16.mxu0 0
        %561 = vmatpush1.bf16.msra.mxu0 %v548
        %562 = vmatprep.subr.bf16.mxu0 0
        %563 = vmatpush1.bf16.msra.mxu0 %v547
        %564 = vmatprep.subr.bf16.mxu0 0
        %565 = vmatpush1.bf16.msra.mxu0 %v546
        %566 = vmatprep.subr.bf16.mxu0 0
        %567 = vmatpush1.bf16.msra.mxu0 %v545
        %568 = vmatprep.subr.bf16.mxu0 0
        %569 = vmatpush1.bf16.msra.mxu0 %v544
        %570 = vmatprep.subr.bf16.mxu0 0
        %571 = vmatpush1.bf16.msra.mxu0 %v543
        %572 = vmatprep.subr.bf16.mxu0 0
        %573 = vmatpush1.bf16.msra.mxu0 %v542
        %574 = vmatprep.subr.bf16.mxu0 0
        %575 = vmatpush2.bf16.msra.mxu0 0
        %576 = vmatprep.subr.bf16.mxu0 0
        %577 = vmatpush2.bf16.msra.mxu0 0
        %578 = vmatprep.subr.bf16.mxu0 0
        %579 = vmatpush2.bf16.msra.mxu0 0
        %580 = vmatprep.subr.bf16.mxu0 0
        %581 = vmatpush2.bf16.msra.mxu0 0
        %582 = vmatprep.subr.bf16.mxu0 0
        %583 = vmatpush2.bf16.msra.mxu0 0
        %584 = vmatprep.subr.bf16.mxu0 0
        %585 = vmatpush2.bf16.msra.mxu0 0
        %586 = vmatprep.subr.bf16.mxu0 0
        %587 = vmatpush2.bf16.msra.mxu0 0
        %588 = vmatprep.subr.bf16.mxu0 0
        %589 = vmatpush2.bf16.msra.mxu0 0
        %590 = vmatprep.mubr.bf16.mxu0 0
        %591 = vmatmul.mubr.bf16.gmra.mxu0 %v484
        %v592 = vpop.f32.mrf.mxu0
        %v593 = vadd.f32 %v508, %v592
        %v594 = vpop.f32.mrf.mxu0
        %v595 = vpop.f32.mrf.mxu0
        %v596 = vpop.f32.mrf.mxu0
        %597 = vdwg.mxu0
        %vm598 = vcmp.gt.f32.partialorder %v593, 0.0
        %v599 = vmul.f32 %v593, 1.442695
        %v600 = vpow.pop %v599
        %v601 = vsub.f32 %v600, 1.0
        %v602 = vmul.f32 %v601, 1.6732632
        %v603 = vsel %vm598, %v593, %v602
        %v604 = vmul.f32 %v603, 1.050701
        %605 = vadd.xlane.f32.xlu0 %v604
        %v606 = vpop.xlane.xlu0 %605
        %v607 = vmul.f32 %v606, 0.03125
        %v608 = vmul.f32 %v604, %v604
        %609 = vadd.xlane.f32.xlu0 %v608
        %v610 = vpop.xlane.xlu0 %609
        %v611 = vmul.f32 %v610, 0.03125
        %v612 = vmul.f32 %v607, %v607
        %v613 = vsub.f32 %v611, %v612
        %v614 = vsub.f32 %v604, %v607
        %v615 = vadd.f32 %v613, 1e-05
        %v616 = vrsqrt.pop %v615
        %v617 = vmul.f32 %v614, %v616
        %v619 = vlaneseq
        %v620 = vshrl.u32 %v619, 7
        %v621 = vsub.s32 0, %v620
        %v622 = vrot.slane %v502, %v621
        %v624 = vmul.f32 %v617, %v622
        %v626 = vlaneseq
        %v627 = vshrl.u32 %v626, 7
        %v628 = vsub.s32 0, %v627
        %v629 = vrot.slane %v503, %v628
        %v631 = vadd.f32 %v624, %v629
        %v632 = vpack.c.bf16 %v631, %v631
        %v633 = vld [vmem:[#allocation10] sm:$0xf]
        %v634 = vld [vmem:[#allocation10 + $0x4] sm:$0xf]
        %v635 = vld [vmem:[#allocation10 + $0x8] sm:$0xf]
        %v636 = vld [vmem:[#allocation10 + $0xc] sm:$0xf]
        %v637 = vld [vmem:[#allocation10 + $0x10] sm:$0xf]
        %v638 = vld [vmem:[#allocation10 + $0x14] sm:$0xf]
        %v639 = vld [vmem:[#allocation10 + $0x18] sm:$0xf]
        %v640 = vld [vmem:[#allocation10 + $0x1c] sm:$0xf]
        %v641 = vld [vmem:[#allocation10 + $0x20] sm:$0xf]
        %v642 = vld [vmem:[#allocation10 + $0x24] sm:$0xf]
        %v643 = vld [vmem:[#allocation10 + $0x28] sm:$0xf]
        %v644 = vld [vmem:[#allocation10 + $0x2c] sm:$0xf]
        %v645 = vld [vmem:[#allocation10 + $0x30] sm:$0xf]
        %v646 = vld [vmem:[#allocation10 + $0x34] sm:$0xf]
        %v647 = vld [vmem:[#allocation10 + $0x38] sm:$0xf]
        %v648 = vld [vmem:[#allocation10 + $0x3c] sm:$0xf]
        %v649 = vld [vmem:[%s6] sm:$0x1]
        %v650 = vld [vmem:[%s7] sm:$0x1]
        %v651 = vld [vmem:[%s8] sm:$0x1]
        %v652 = vlaneseq
        %v653 = vshrl.u32 %v652, 7
        %v654 = vsub.s32 0, %v653
        %v655 = vrot.slane %v649, %v654
        %v672 = vunpack.c.l.b16 %v633
        %v673 = vunpack.c.l.b16 %v634
        %v674 = vunpack.c.l.b16 %v635
        %v675 = vunpack.c.l.b16 %v636
        %v676 = vunpack.c.l.b16 %v637
        %v677 = vunpack.c.l.b16 %v638
        %v678 = vunpack.c.l.b16 %v639
        %v679 = vunpack.c.l.b16 %v640
        %v680 = vunpack.c.l.b16 %v641
        %v681 = vunpack.c.l.b16 %v642
        %v682 = vunpack.c.l.b16 %v643
        %v683 = vunpack.c.l.b16 %v644
        %v684 = vunpack.c.l.b16 %v645
        %v685 = vunpack.c.l.b16 %v646
        %v686 = vunpack.c.l.b16 %v647
        %v687 = vunpack.c.l.b16 %v648
        %v688 = vpack.c.b16 %v673, %v672
        %v689 = vpack.c.b16 %v675, %v674
        %v690 = vpack.c.b16 %v677, %v676
        %v691 = vpack.c.b16 %v679, %v678
        %v692 = vpack.c.b16 %v681, %v680
        %v693 = vpack.c.b16 %v683, %v682
        %v694 = vpack.c.b16 %v685, %v684
        %v695 = vpack.c.b16 %v687, %v686
        %704 = vmatprep.subr.bf16.mxu0 0
        %705 = vmatpush1.bf16.msra.mxu0 %v695
        %706 = vmatprep.subr.bf16.mxu0 0
        %707 = vmatpush1.bf16.msra.mxu0 %v694
        %708 = vmatprep.subr.bf16.mxu0 0
        %709 = vmatpush1.bf16.msra.mxu0 %v693
        %710 = vmatprep.subr.bf16.mxu0 0
        %711 = vmatpush1.bf16.msra.mxu0 %v692
        %712 = vmatprep.subr.bf16.mxu0 0
        %713 = vmatpush1.bf16.msra.mxu0 %v691
        %714 = vmatprep.subr.bf16.mxu0 0
        %715 = vmatpush1.bf16.msra.mxu0 %v690
        %716 = vmatprep.subr.bf16.mxu0 0
        %717 = vmatpush1.bf16.msra.mxu0 %v689
        %718 = vmatprep.subr.bf16.mxu0 0
        %719 = vmatpush1.bf16.msra.mxu0 %v688
        %720 = vmatprep.subr.bf16.mxu0 0
        %721 = vmatpush2.bf16.msra.mxu0 0
        %722 = vmatprep.subr.bf16.mxu0 0
        %723 = vmatpush2.bf16.msra.mxu0 0
        %724 = vmatprep.subr.bf16.mxu0 0
        %725 = vmatpush2.bf16.msra.mxu0 0
        %726 = vmatprep.subr.bf16.mxu0 0
        %727 = vmatpush2.bf16.msra.mxu0 0
        %728 = vmatprep.subr.bf16.mxu0 0
        %729 = vmatpush2.bf16.msra.mxu0 0
        %730 = vmatprep.subr.bf16.mxu0 0
        %731 = vmatpush2.bf16.msra.mxu0 0
        %732 = vmatprep.subr.bf16.mxu0 0
        %733 = vmatpush2.bf16.msra.mxu0 0
        %734 = vmatprep.subr.bf16.mxu0 0
        %735 = vmatpush2.bf16.msra.mxu0 0
        %736 = vmatprep.mubr.bf16.mxu0 0
        %737 = vmatmul.mubr.bf16.gmra.mxu0 %v632
        %v738 = vpop.f32.mrf.mxu0
        %v739 = vadd.f32 %v655, %v738
        %v740 = vpop.f32.mrf.mxu0
        %v741 = vpop.f32.mrf.mxu0
        %v742 = vpop.f32.mrf.mxu0
        %743 = vdwg.mxu0
        %vm744 = vcmp.gt.f32.partialorder %v739, 0.0
        %v745 = vmul.f32 %v739, 1.442695
        %v746 = vpow.pop %v745
        %v747 = vsub.f32 %v746, 1.0
        %v748 = vmul.f32 %v747, 1.6732632
        %v749 = vsel %vm744, %v739, %v748
        %v750 = vmul.f32 %v749, 1.050701
        %751 = vadd.xlane.f32.xlu0 %v750
        %v752 = vpop.xlane.xlu0 %751
        %v753 = vmul.f32 %v752, 0.03125
        %v754 = vmul.f32 %v750, %v750
        %755 = vadd.xlane.f32.xlu0 %v754
        %v756 = vpop.xlane.xlu0 %755
        %v757 = vmul.f32 %v756, 0.03125
        %v758 = vmul.f32 %v753, %v753
        %v759 = vsub.f32 %v757, %v758
        %v760 = vsub.f32 %v750, %v753
        %v761 = vadd.f32 %v759, 1e-05
        %v762 = vrsqrt.pop %v761
        %v763 = vmul.f32 %v760, %v762
        %v764 = vlaneseq
        %v765 = vshrl.u32 %v764, 7
        %v766 = vsub.s32 0, %v765
        %v767 = vrot.slane %v650, %v766
        %v768 = vmul.f32 %v763, %v767
        %v769 = vlaneseq
        %v770 = vshrl.u32 %v769, 7
        %v771 = vsub.s32 0, %v770
        %v772 = vrot.slane %v651, %v771
        %v773 = vadd.f32 %v768, %v772
        %v774 = vpack.c.bf16 %v773, %v773
        %s775 = scalar_lea.vmem [#allocation10], 64
        %v776 = vld [vmem:[%s775] sm:$0xf]
        %v777 = vld [vmem:[%s775 + $0x4] sm:$0xf]
        %v778 = vld [vmem:[%s775 + $0x8] sm:$0xf]
        %v779 = vld [vmem:[%s775 + $0xc] sm:$0xf]
        %v780 = vld [vmem:[%s775 + $0x10] sm:$0xf]
        %v781 = vld [vmem:[%s775 + $0x14] sm:$0xf]
        %v782 = vld [vmem:[%s775 + $0x18] sm:$0xf]
        %v783 = vld [vmem:[%s775 + $0x1c] sm:$0xf]
        %v784 = vld [vmem:[%s775 + $0x20] sm:$0xf]
        %v785 = vld [vmem:[%s775 + $0x24] sm:$0xf]
        %v786 = vld [vmem:[%s775 + $0x28] sm:$0xf]
        %v787 = vld [vmem:[%s775 + $0x2c] sm:$0xf]
        %v788 = vld [vmem:[%s775 + $0x30] sm:$0xf]
        %v789 = vld [vmem:[%s775 + $0x34] sm:$0xf]
        %v790 = vld [vmem:[%s775 + $0x38] sm:$0xf]
        %v791 = vld [vmem:[%s775 + $0x3c] sm:$0xf]
        %v792 = vld [vmem:[%s6 + $0x1] sm:$0x1]
        %v793 = vld [vmem:[%s7 + $0x1] sm:$0x1]
        %v794 = vld [vmem:[%s8 + $0x1] sm:$0x1]
        %v795 = vlaneseq
        %v796 = vshrl.u32 %v795, 7
        %v797 = vsub.s32 0, %v796
        %v798 = vrot.slane %v792, %v797
        %v815 = vunpack.c.l.b16 %v776
        %v816 = vunpack.c.l.b16 %v777
        %v817 = vunpack.c.l.b16 %v778
        %v818 = vunpack.c.l.b16 %v779
        %v819 = vunpack.c.l.b16 %v780
        %v820 = vunpack.c.l.b16 %v781
        %v821 = vunpack.c.l.b16 %v782
        %v822 = vunpack.c.l.b16 %v783
        %v823 = vunpack.c.l.b16 %v784
        %v824 = vunpack.c.l.b16 %v785
        %v825 = vunpack.c.l.b16 %v786
        %v826 = vunpack.c.l.b16 %v787
        %v827 = vunpack.c.l.b16 %v788
        %v828 = vunpack.c.l.b16 %v789
        %v829 = vunpack.c.l.b16 %v790
        %v830 = vunpack.c.l.b16 %v791
        %v831 = vpack.c.b16 %v816, %v815
        %v832 = vpack.c.b16 %v818, %v817
        %v833 = vpack.c.b16 %v820, %v819
        %v834 = vpack.c.b16 %v822, %v821
        %v835 = vpack.c.b16 %v824, %v823
        %v836 = vpack.c.b16 %v826, %v825
        %v837 = vpack.c.b16 %v828, %v827
        %v838 = vpack.c.b16 %v830, %v829
        %847 = vmatprep.subr.bf16.mxu0 0
        %848 = vmatpush1.bf16.msra.mxu0 %v838
        %849 = vmatprep.subr.bf16.mxu0 0
        %850 = vmatpush1.bf16.msra.mxu0 %v837
        %851 = vmatprep.subr.bf16.mxu0 0
        %852 = vmatpush1.bf16.msra.mxu0 %v836
        %853 = vmatprep.subr.bf16.mxu0 0
        %854 = vmatpush1.bf16.msra.mxu0 %v835
        %855 = vmatprep.subr.bf16.mxu0 0
        %856 = vmatpush1.bf16.msra.mxu0 %v834
        %857 = vmatprep.subr.bf16.mxu0 0
        %858 = vmatpush1.bf16.msra.mxu0 %v833
        %859 = vmatprep.subr.bf16.mxu0 0
        %860 = vmatpush1.bf16.msra.mxu0 %v832
        %861 = vmatprep.subr.bf16.mxu0 0
        %862 = vmatpush1.bf16.msra.mxu0 %v831
        %863 = vmatprep.subr.bf16.mxu0 0
        %864 = vmatpush2.bf16.msra.mxu0 0
        %865 = vmatprep.subr.bf16.mxu0 0
        %866 = vmatpush2.bf16.msra.mxu0 0
        %867 = vmatprep.subr.bf16.mxu0 0
        %868 = vmatpush2.bf16.msra.mxu0 0
        %869 = vmatprep.subr.bf16.mxu0 0
        %870 = vmatpush2.bf16.msra.mxu0 0
        %871 = vmatprep.subr.bf16.mxu0 0
        %872 = vmatpush2.bf16.msra.mxu0 0
        %873 = vmatprep.subr.bf16.mxu0 0
        %874 = vmatpush2.bf16.msra.mxu0 0
        %875 = vmatprep.subr.bf16.mxu0 0
        %876 = vmatpush2.bf16.msra.mxu0 0
        %877 = vmatprep.subr.bf16.mxu0 0
        %878 = vmatpush2.bf16.msra.mxu0 0
        %879 = vmatprep.mubr.bf16.mxu0 0
        %880 = vmatmul.mubr.bf16.gmra.mxu0 %v774
        %v881 = vpop.f32.mrf.mxu0
        %v882 = vadd.f32 %v798, %v881
        %v883 = vpop.f32.mrf.mxu0
        %v884 = vpop.f32.mrf.mxu0
        %v885 = vpop.f32.mrf.mxu0
        %886 = vdwg.mxu0
        %vm887 = vcmp.gt.f32.partialorder %v882, 0.0
        %v888 = vmul.f32 %v882, 1.442695
        %v889 = vpow.pop %v888
        %v890 = vsub.f32 %v889, 1.0
        %v891 = vmul.f32 %v890, 1.6732632
        %v892 = vsel %vm887, %v882, %v891
        %v893 = vmul.f32 %v892, 1.050701
        %894 = vadd.xlane.f32.xlu0 %v893
        %v895 = vpop.xlane.xlu0 %894
        %v896 = vmul.f32 %v895, 0.03125
        %v897 = vmul.f32 %v893, %v893
        %898 = vadd.xlane.f32.xlu0 %v897
        %v899 = vpop.xlane.xlu0 %898
        %v900 = vmul.f32 %v899, 0.03125
        %v901 = vmul.f32 %v896, %v896
        %v902 = vsub.f32 %v900, %v901
        %v903 = vsub.f32 %v893, %v896
        %v904 = vadd.f32 %v902, 1e-05
        %v905 = vrsqrt.pop %v904
        %v906 = vmul.f32 %v903, %v905
        %v907 = vlaneseq
        %v908 = vshrl.u32 %v907, 7
        %v909 = vsub.s32 0, %v908
        %v910 = vrot.slane %v793, %v909
        %v911 = vmul.f32 %v906, %v910
        %v912 = vlaneseq
        %v913 = vshrl.u32 %v912, 7
        %v914 = vsub.s32 0, %v913
        %v915 = vrot.slane %v794, %v914
        %v916 = vadd.f32 %v911, %v915
        %v917 = vpack.c.bf16 %v916, %v916
        %s918 = scalar_lea.vmem [#allocation10], 128
        %v919 = vld [vmem:[%s918] sm:$0xf]
        %v920 = vld [vmem:[%s918 + $0x4] sm:$0xf]
        %v921 = vld [vmem:[%s918 + $0x8] sm:$0xf]
        %v922 = vld [vmem:[%s918 + $0xc] sm:$0xf]
        %v923 = vld [vmem:[%s918 + $0x10] sm:$0xf]
        %v924 = vld [vmem:[%s918 + $0x14] sm:$0xf]
        %v925 = vld [vmem:[%s918 + $0x18] sm:$0xf]
        %v926 = vld [vmem:[%s918 + $0x1c] sm:$0xf]
        %v927 = vld [vmem:[%s918 + $0x20] sm:$0xf]
        %v928 = vld [vmem:[%s918 + $0x24] sm:$0xf]
        %v929 = vld [vmem:[%s918 + $0x28] sm:$0xf]
        %v930 = vld [vmem:[%s918 + $0x2c] sm:$0xf]
        %v931 = vld [vmem:[%s918 + $0x30] sm:$0xf]
        %v932 = vld [vmem:[%s918 + $0x34] sm:$0xf]
        %v933 = vld [vmem:[%s918 + $0x38] sm:$0xf]
        %v934 = vld [vmem:[%s918 + $0x3c] sm:$0xf]
        %v935 = vld [vmem:[%s6 + $0x2] sm:$0x1]
        %v936 = vld [vmem:[%s7 + $0x2] sm:$0x1]
        %v937 = vld [vmem:[%s8 + $0x2] sm:$0x1]
        %v938 = vlaneseq
        %v939 = vshrl.u32 %v938, 7
        %v940 = vsub.s32 0, %v939
        %v941 = vrot.slane %v935, %v940
        %v958 = vunpack.c.l.b16 %v919
        %v959 = vunpack.c.l.b16 %v920
        %v960 = vunpack.c.l.b16 %v921
        %v961 = vunpack.c.l.b16 %v922
        %v962 = vunpack.c.l.b16 %v923
        %v963 = vunpack.c.l.b16 %v924
        %v964 = vunpack.c.l.b16 %v925
        %v965 = vunpack.c.l.b16 %v926
        %v966 = vunpack.c.l.b16 %v927
        %v967 = vunpack.c.l.b16 %v928
        %v968 = vunpack.c.l.b16 %v929
        %v969 = vunpack.c.l.b16 %v930
        %v970 = vunpack.c.l.b16 %v931
        %v971 = vunpack.c.l.b16 %v932
        %v972 = vunpack.c.l.b16 %v933
        %v973 = vunpack.c.l.b16 %v934
        %v974 = vpack.c.b16 %v959, %v958
        %v975 = vpack.c.b16 %v961, %v960
        %v976 = vpack.c.b16 %v963, %v962
        %v977 = vpack.c.b16 %v965, %v964
        %v978 = vpack.c.b16 %v967, %v966
        %v979 = vpack.c.b16 %v969, %v968
        %v980 = vpack.c.b16 %v971, %v970
        %v981 = vpack.c.b16 %v973, %v972
        %990 = vmatprep.subr.bf16.mxu0 0
        %991 = vmatpush1.bf16.msra.mxu0 %v981
        %992 = vmatprep.subr.bf16.mxu0 0
        %993 = vmatpush1.bf16.msra.mxu0 %v980
        %994 = vmatprep.subr.bf16.mxu0 0
        %995 = vmatpush1.bf16.msra.mxu0 %v979
        %996 = vmatprep.subr.bf16.mxu0 0
        %997 = vmatpush1.bf16.msra.mxu0 %v978
        %998 = vmatprep.subr.bf16.mxu0 0
        %999 = vmatpush1.bf16.msra.mxu0 %v977
        %1000 = vmatprep.subr.bf16.mxu0 0
        %1001 = vmatpush1.bf16.msra.mxu0 %v976
        %1002 = vmatprep.subr.bf16.mxu0 0
        %1003 = vmatpush1.bf16.msra.mxu0 %v975
        %1004 = vmatprep.subr.bf16.mxu0 0
        %1005 = vmatpush1.bf16.msra.mxu0 %v974
        %1006 = vmatprep.subr.bf16.mxu0 0
        %1007 = vmatpush2.bf16.msra.mxu0 0
        %1008 = vmatprep.subr.bf16.mxu0 0
        %1009 = vmatpush2.bf16.msra.mxu0 0
        %1010 = vmatprep.subr.bf16.mxu0 0
        %1011 = vmatpush2.bf16.msra.mxu0 0
        %1012 = vmatprep.subr.bf16.mxu0 0
        %1013 = vmatpush2.bf16.msra.mxu0 0
        %1014 = vmatprep.subr.bf16.mxu0 0
        %1015 = vmatpush2.bf16.msra.mxu0 0
        %1016 = vmatprep.subr.bf16.mxu0 0
        %1017 = vmatpush2.bf16.msra.mxu0 0
        %1018 = vmatprep.subr.bf16.mxu0 0
        %1019 = vmatpush2.bf16.msra.mxu0 0
        %1020 = vmatprep.subr.bf16.mxu0 0
        %1021 = vmatpush2.bf16.msra.mxu0 0
        %1022 = vmatprep.mubr.bf16.mxu0 0
        %1023 = vmatmul.mubr.bf16.gmra.mxu0 %v917
        %v1024 = vpop.f32.mrf.mxu0
        %v1025 = vadd.f32 %v941, %v1024
        %v1026 = vpop.f32.mrf.mxu0
        %v1027 = vpop.f32.mrf.mxu0
        %v1028 = vpop.f32.mrf.mxu0
        %1029 = vdwg.mxu0
        %vm1030 = vcmp.gt.f32.partialorder %v1025, 0.0
        %v1031 = vmul.f32 %v1025, 1.442695
        %v1032 = vpow.pop %v1031
        %v1033 = vsub.f32 %v1032, 1.0
        %v1034 = vmul.f32 %v1033, 1.6732632
        %v1035 = vsel %vm1030, %v1025, %v1034
        %v1036 = vmul.f32 %v1035, 1.050701
        %1037 = vadd.xlane.f32.xlu0 %v1036
        %v1038 = vpop.xlane.xlu0 %1037
        %v1039 = vmul.f32 %v1038, 0.03125
        %v1040 = vmul.f32 %v1036, %v1036
        %1041 = vadd.xlane.f32.xlu0 %v1040
        %v1042 = vpop.xlane.xlu0 %1041
        %v1043 = vmul.f32 %v1042, 0.03125
        %v1044 = vmul.f32 %v1039, %v1039
        %v1045 = vsub.f32 %v1043, %v1044
        %v1046 = vsub.f32 %v1036, %v1039
        %v1047 = vadd.f32 %v1045, 1e-05
        %v1048 = vrsqrt.pop %v1047
        %v1049 = vmul.f32 %v1046, %v1048
        %v1050 = vlaneseq
        %v1051 = vshrl.u32 %v1050, 7
        %v1052 = vsub.s32 0, %v1051
        %v1053 = vrot.slane %v936, %v1052
        %v1054 = vmul.f32 %v1049, %v1053
        %v1055 = vlaneseq
        %v1056 = vshrl.u32 %v1055, 7
        %v1057 = vsub.s32 0, %v1056
        %v1058 = vrot.slane %v937, %v1057
        %v1059 = vadd.f32 %v1054, %v1058
        %v1060 = vpack.c.bf16 %v1059, %v1059
        %v1061 = vld [vmem:[#allocation12] sm:$0xf]
        %v1062 = vld [vmem:[#allocation12 + $0x4] sm:$0xf]
        %v1063 = vld [vmem:[#allocation12 + $0x8] sm:$0xf]
        %v1064 = vld [vmem:[#allocation12 + $0xc] sm:$0xf]
        %v1065 = vld [vmem:[#allocation12 + $0x10] sm:$0xf]
        %v1066 = vld [vmem:[#allocation12 + $0x14] sm:$0xf]
        %v1067 = vld [vmem:[#allocation12 + $0x18] sm:$0xf]
        %v1068 = vld [vmem:[#allocation12 + $0x1c] sm:$0xf]
        %v1069 = vld [vmem:[#allocation12 + $0x20] sm:$0xf]
        %v1070 = vld [vmem:[#allocation12 + $0x24] sm:$0xf]
        %v1071 = vld [vmem:[#allocation12 + $0x28] sm:$0xf]
        %v1072 = vld [vmem:[#allocation12 + $0x2c] sm:$0xf]
        %v1073 = vld [vmem:[#allocation12 + $0x30] sm:$0xf]
        %v1074 = vld [vmem:[#allocation12 + $0x34] sm:$0xf]
        %v1075 = vld [vmem:[#allocation12 + $0x38] sm:$0xf]
        %v1076 = vld [vmem:[#allocation12 + $0x3c] sm:$0xf]
        %v1077 = vld [vmem:[%s10] sm:$0x1]
        %v1079 = vlaneseq
        %v1080 = vshrl.u32 %v1079, 7
        %v1081 = vsub.s32 0, %v1080
        %v1082 = vrot.slane %v1077, %v1081
        %v1100 = vunpack.c.l.b16 %v1061
        %v1101 = vunpack.c.l.b16 %v1062
        %v1102 = vunpack.c.l.b16 %v1063
        %v1103 = vunpack.c.l.b16 %v1064
        %v1104 = vunpack.c.l.b16 %v1065
        %v1105 = vunpack.c.l.b16 %v1066
        %v1106 = vunpack.c.l.b16 %v1067
        %v1107 = vunpack.c.l.b16 %v1068
        %v1108 = vunpack.c.l.b16 %v1069
        %v1109 = vunpack.c.l.b16 %v1070
        %v1110 = vunpack.c.l.b16 %v1071
        %v1111 = vunpack.c.l.b16 %v1072
        %v1112 = vunpack.c.l.b16 %v1073
        %v1113 = vunpack.c.l.b16 %v1074
        %v1114 = vunpack.c.l.b16 %v1075
        %v1115 = vunpack.c.l.b16 %v1076
        %v1116 = vpack.c.b16 %v1101, %v1100
        %v1117 = vpack.c.b16 %v1103, %v1102
        %v1118 = vpack.c.b16 %v1105, %v1104
        %v1119 = vpack.c.b16 %v1107, %v1106
        %v1120 = vpack.c.b16 %v1109, %v1108
        %v1121 = vpack.c.b16 %v1111, %v1110
        %v1122 = vpack.c.b16 %v1113, %v1112
        %v1123 = vpack.c.b16 %v1115, %v1114
        %1132 = vmatprep.subr.bf16.mxu0 0
        %1133 = vmatpush1.bf16.msra.mxu0 %v1123
        %1134 = vmatprep.subr.bf16.mxu0 0
        %1135 = vmatpush1.bf16.msra.mxu0 %v1122
        %1136 = vmatprep.subr.bf16.mxu0 0
        %1137 = vmatpush1.bf16.msra.mxu0 %v1121
        %1138 = vmatprep.subr.bf16.mxu0 0
        %1139 = vmatpush1.bf16.msra.mxu0 %v1120
        %1140 = vmatprep.subr.bf16.mxu0 0
        %1141 = vmatpush1.bf16.msra.mxu0 %v1119
        %1142 = vmatprep.subr.bf16.mxu0 0
        %1143 = vmatpush1.bf16.msra.mxu0 %v1118
        %1144 = vmatprep.subr.bf16.mxu0 0
        %1145 = vmatpush1.bf16.msra.mxu0 %v1117
        %1146 = vmatprep.subr.bf16.mxu0 0
        %1147 = vmatpush1.bf16.msra.mxu0 %v1116
        %1148 = vmatprep.subr.bf16.mxu0 0
        %1149 = vmatpush2.bf16.msra.mxu0 0
        %1150 = vmatprep.subr.bf16.mxu0 0
        %1151 = vmatpush2.bf16.msra.mxu0 0
        %1152 = vmatprep.subr.bf16.mxu0 0
        %1153 = vmatpush2.bf16.msra.mxu0 0
        %1154 = vmatprep.subr.bf16.mxu0 0
        %1155 = vmatpush2.bf16.msra.mxu0 0
        %1156 = vmatprep.subr.bf16.mxu0 0
        %1157 = vmatpush2.bf16.msra.mxu0 0
        %1158 = vmatprep.subr.bf16.mxu0 0
        %1159 = vmatpush2.bf16.msra.mxu0 0
        %1160 = vmatprep.subr.bf16.mxu0 0
        %1161 = vmatpush2.bf16.msra.mxu0 0
        %1162 = vmatprep.subr.bf16.mxu0 0
        %1163 = vmatpush2.bf16.msra.mxu0 0
        %1164 = vmatprep.mubr.bf16.mxu0 0
        %1165 = vmatmul.mubr.bf16.gmra.mxu0 %v1060
        %v1166 = vpop.f32.mrf.mxu0
        %v1167 = vadd.f32 %v1082, %v1166
        %v1168 = vpop.f32.mrf.mxu0
        %v1169 = vpop.f32.mrf.mxu0
        %v1170 = vpop.f32.mrf.mxu0
        %1171 = vdwg.mxu0
        %vm1172 = vcmask 7168
        %1173 = vst.msk [vmem:[%s482] sm:$0xff] %vm1172, %v1167
        %p1174 = scmp.lt.s32.totalorder %s28, 1
        %s1175 = scalar_select %p1174, %s28, 1
        %s1176 = smul.addr %s1175, 8
        %s1177 = scalar_lea.vmem %s11, %s1176
        // Predicated region
        $region93: #{tpu_custom_call.1} parent=63 // pred_check
          %p1178 = pneg %p282
        $region94: #{tpu_custom_call.1} parent=63 // pred_check_branch
          %1180 = sbr.rel (%p1178) target = $region96
        $region95: #{tpu_custom_call.1} parent=63 // pred_region
          _
        $region96: #{tpu_custom_call.1} parent=63 // pred_fallthru
          _
      $region64: #{tpu_custom_call.1} parent=5 // pred_fallthru
        _
      %p1181 = scmp.le.s32.totalorder 2, %s23
      // Predicated region
      $region97: #{tpu_custom_call.1} parent=5 // pred_check
        %p1182 = pneg %p1181
      $region98: #{tpu_custom_call.1} parent=5 // pred_check_branch
        %1184 = sbr.rel (%p1182) target = $region100
      $region99: #{tpu_custom_call.1} parent=5 // pred_region
        %s1185 = ssub.s32 %s23, 2
        // Predicated region
        $region101: #{tpu_custom_call.1} parent=99 // pred_check
          %p1186 = pneg %p288
        $region102: #{tpu_custom_call.1} parent=99 // pred_check_branch
          %1188 = sbr.rel (%p1186) target = $region104
        $region103: #{tpu_custom_call.1} parent=99 // pred_region
          %p1189 = scmp.lt.s32.totalorder %s29, 1
          %s1190 = scalar_select %p1189, %s29, 1
          %s1191 = smul.addr %s1190, 8
          %s1192 = scalar_lea.vmem %s11, %s1191
        $region104: #{tpu_custom_call.1} parent=99 // pred_fallthru
          _
      $region100: #{tpu_custom_call.1} parent=5 // pred_fallthru
        _
    $region6: #{tpu_custom_call.1} parent=1 // loop_footer
      %s27 = sadd.s32 1, %s23
    $region7: #{tpu_custom_call.1} parent=1 // loop_footer_branch
      %22 = sbr.rel target = $region3
    $region8: #{tpu_custom_call.1} parent=1 // loop_exit
      _
    %1193 = vsyncpa [#allocation3], 1
    %s1194 = scalar_lea.sflag [#allocation3], 1
    %1195 = vsyncpa %s1194, 1
    %1196 = vsyncpa [#allocation5], 1
    %1197 = vsyncpa [#allocation8], 1
    %1198 = vsyncpa [#allocation11], 1

// kernel: tpu_custom_call.1
$region0: #{tpu_custom_call.1}
  #allocation0 [shape = 'u32[]', space=smem, size = 0x4, offset = 0x4, fixed_abs, tag = 'smem constant byte address 0x4 - core index']
  #allocation1 [shape = 'u32[144,128]{1,0:T(1,128)}', space=vmem, size = 0x12000, scoped, tag = 'internal scratch']
  %s0 = inlined_call_operand.hbm [shape: bf16[16,128], index: 0, kind: input, shape index: {}]
  %s1 = inlined_call_operand.hbm [shape: bf16[128,128], index: 1, kind: input, shape index: {}]
  %s2 = inlined_call_operand.hbm [shape: f32[1,128], index: 2, kind: input, shape index: {}]
  %s3 = inlined_call_operand.hbm [shape: f32[1,128], index: 3, kind: input, shape index: {}]
  %s4 = inlined_call_operand.hbm [shape: f32[1,128], index: 4, kind: input, shape index: {}]
  %s5 = inlined_call_operand.hbm [shape: bf16[3,128,128], index: 5, kind: input, shape index: {}]
  %s6 = inlined_call_operand.vmem [shape: f32[3,128], index: 6, kind: input, shape index: {}]
  %s7 = inlined_call_operand.vmem [shape: f32[3,128], index: 7, kind: input, shape index: {}]
  %s8 = inlined_call_operand.vmem [shape: f32[3,128], index: 8, kind: input, shape index: {}]
  %s9 = inlined_call_operand.hbm [shape: bf16[128,128], index: 9, kind: input, shape index: {}]
  %s10 = inlined_call_operand.vmem [shape: f32[1,128], index: 10, kind: input, shape index: {}]
  %s11 = inlined_call_operand.vmem [shape: f32[16,1], index: 11, kind: output, shape index: {}]
  %s12 = sld [smem:[#allocation0]]
  $region105: #{tpu_custom_call.1} parent=0
    _
  %s14 = ssub.s32 1, %s12
  %s15 = scalar_select 0, %s14, %s12
  $region1: #{tpu_custom_call.1} parent=0
    #allocation2 [shape = 'u8[4096]{0}', space=vmem, size = 0x1000, scoped, tag = 'input window, operand 0']
    #allocation3 [shape = 's32[2]{0}', space=sflag, size = 0x8, scoped, tag = 'scoped memory for tpu_custom_call.1']
    #allocation4 [shape = 'u8[32768]{0}', space=vmem, size = 0x8000, scoped, tag = 'input window, operand 1, single buffered']
    #allocation5 [shape = 's32[1]{0}', space=sflag, size = 0x4, scoped, tag = 'scoped memory for tpu_custom_call.1']
    #allocation6 [shape = 'u8[512]{0}', space=vmem, size = 0x400, scoped, tag = 'input window, operand 2, single buffered']
    #allocation7 [shape = 'u8[512]{0}', space=vmem, size = 0x400, scoped, tag = 'input window, operand 3, single buffered']
    #allocation8 [shape = 's32[1]{0}', space=sflag, size = 0x4, scoped, tag = 'scoped memory for tpu_custom_call.1']
    #allocation9 [shape = 'u8[512]{0}', space=vmem, size = 0x400, scoped, tag = 'input window, operand 4, single buffered']
    #allocation10 [shape = 'u8[98304]{0}', space=vmem, size = 0x18000, scoped, tag = 'input window, operand 5, single buffered']
    #allocation11 [shape = 's32[1]{0}', space=sflag, size = 0x4, scoped, tag = 'scoped memory for tpu_custom_call.1']
    #allocation12 [shape = 'u8[32768]{0}', space=vmem, size = 0x8000, scoped, tag = 'input window, operand 9, single buffered']
    %16 = vsyncpa [#allocation3], 0
    %s17 = scalar_lea.sflag [#allocation3], 1
    %18 = vsyncpa %s17, 0
    %19 = vsyncpa [#allocation5], 0
    %20 = vsyncpa [#allocation8], 0
    %21 = vsyncpa [#allocation11], 0
    loop: start=0, step=1, limit=4
    $region2: #{tpu_custom_call.1} parent=1 // loop_pre_header
      _
    $region3: #{tpu_custom_call.1} parent=1 // loop_header
      %s23 = sphi 0, %s27
      %p24 = scmp.ge.s32.totalorder %s23, 4
      %s33 = sphi 0, %s35
      %s36 = sphi 0, %s33
      %s37 = sphi 0, %s36
      %s53 = sphi 0, %s37
      %s57 = sphi 0, %s57
      %s59 = sphi 0, %s57
      %s60 = sphi 0, %s59
      %s74 = sphi 0, %s60
      %s78 = sphi 0, %s78
      %s80 = sphi 0, %s78
      %s81 = sphi 0, %s80
      %s95 = sphi 0, %s81
      %s99 = sphi 0, %s99
      %s101 = sphi 0, %s99
      %s102 = sphi 0, %s101
      %s116 = sphi 0, %s102
      %s120 = sphi 0, %s120
      %s122 = sphi 0, %s120
      %s123 = sphi 0, %s122
      %s137 = sphi 0, %s123
      %s141 = sphi 0, %s141
      %s143 = sphi 0, %s141
      %s144 = sphi 0, %s143
      %s158 = sphi 0, %s144
      %s162 = sphi 0, %s162
      %s164 = sphi 0, %s162
      %s165 = sphi 0, %s164
      %s179 = sphi 0, %s165
      %s183 = sphi 0, %s183
      %s185 = sphi 0, %s183
      %s186 = sphi 0, %s185
      %s200 = sphi 0, %s186
      %s204 = sphi 0, %s204
      %s206 = sphi 0, %s204
      %s207 = sphi 0, %s206
      %s221 = sphi 0, %s207
      %s225 = sphi 0, %s225
      %s227 = sphi 0, %s225
      %s228 = sphi 0, %s227
      %s242 = sphi 0, %s228
      %s246 = sphi 0, %s246
      %s248 = sphi 0, %s246
      %s249 = sphi 0, %s248
      %s263 = sphi 0, %s249
      %s269 = sphi 0, %s271
      %s272 = sphi 0, %s269
      %s273 = sphi 0, %s272
      %s289 = sphi 0, %s273
    $region4: #{tpu_custom_call.1} parent=1 // loop_header_branch
      %26 = sbr.rel (%p24) target = $region8
    $region5: #{tpu_custom_call.1} parent=1 // loop_body
      %s28 = ssub.s32 %s23, 1
      %s29 = ssub.s32 %s23, 2
      %s30 = sadd.s32 %s23, 1
      %s31 = ssub.s32 %s23, %s30
      %p32 = scmp.eq.s32.totalorder %s31, 0
      %s34 = sadd.s32 %s33, 1
      %s35 = scalar_select %p32, %s33, %s34
      %p38 = pneg %p32
      %p39 = scmp.eq.s32.totalorder %s23, 1
      %p40 = por %p38, %p39
      %p41 = scmp.ne.s32.totalorder %s33, %s36
      %p42 = scmp.eq.s32.totalorder %s23, 0
      %p43 = por %p41, %p42
      %p44 = scmp.ne.s32.totalorder %s33, %s36
      %p45 = scmp.eq.s32.totalorder %s28, 1
      %p46 = por %p44, %p45
      %p47 = scmp.ne.s32.totalorder %s36, %s37
      %p48 = scmp.eq.s32.totalorder %s28, 0
      %p49 = por %p47, %p48
      %p50 = scmp.ne.s32.totalorder %s36, %s37
      %p51 = scmp.eq.s32.totalorder %s29, 1
      %p52 = por %p50, %p51
      %p54 = scmp.ne.s32.totalorder %s37, %s53
      %p55 = scmp.eq.s32.totalorder %s29, 0
      %p56 = por %p54, %p55
      %s58 = sadd.s32 %s57, 1
      %p61 = scmp.eq.s32.totalorder %s23, 1
      %p62 = scmp.ne.s32.totalorder %s57, %s59
      %p63 = scmp.eq.s32.totalorder %s23, 0
      %p64 = por %p62, %p63
      %p65 = scmp.ne.s32.totalorder %s57, %s59
      %p66 = scmp.eq.s32.totalorder %s28, 1
      %p67 = por %p65, %p66
      %p68 = scmp.ne.s32.totalorder %s59, %s60
      %p69 = scmp.eq.s32.totalorder %s28, 0
      %p70 = por %p68, %p69
      %p71 = scmp.ne.s32.totalorder %s59, %s60
      %p72 = scmp.eq.s32.totalorder %s29, 1
      %p73 = por %p71, %p72
      %p75 = scmp.ne.s32.totalorder %s60, %s74
      %p76 = scmp.eq.s32.totalorder %s29, 0
      %p77 = por %p75, %p76
      %s79 = sadd.s32 %s78, 1
      %p82 = scmp.eq.s32.totalorder %s23, 1
      %p83 = scmp.ne.s32.totalorder %s78, %s80
      %p84 = scmp.eq.s32.totalorder %s23, 0
      %p85 = por %p83, %p84
      %p86 = scmp.ne.s32.totalorder %s78, %s80
      %p87 = scmp.eq.s32.totalorder %s28, 1
      %p88 = por %p86, %p87
      %p89 = scmp.ne.s32.totalorder %s80, %s81
      %p90 = scmp.eq.s32.totalorder %s28, 0
      %p91 = por %p89, %p90
      %p92 = scmp.ne.s32.totalorder %s80, %s81
      %p93 = scmp.eq.s32.totalorder %s29, 1
      %p94 = por %p92, %p93
      %p96 = scmp.ne.s32.totalorder %s81, %s95
      %p97 = scmp.eq.s32.totalorder %s29, 0
      %p98 = por %p96, %p97
      %s100 = sadd.s32 %s99, 1
      %p103 = scmp.eq.s32.totalorder %s23, 1
      %p104 = scmp.ne.s32.totalorder %s99, %s101
      %p105 = scmp.eq.s32.totalorder %s23, 0
      %p106 = por %p104, %p105
      %p107 = scmp.ne.s32.totalorder %s99, %s101
      %p108 = scmp.eq.s32.totalorder %s28, 1
      %p109 = por %p107, %p108
      %p110 = scmp.ne.s32.totalorder %s101, %s102
      %p111 = scmp.eq.s32.totalorder %s28, 0
      %p112 = por %p110, %p111
      %p113 = scmp.ne.s32.totalorder %s101, %s102
      %p114 = scmp.eq.s32.totalorder %s29, 1
      %p115 = por %p113, %p114
      %p117 = scmp.ne.s32.totalorder %s102, %s116
      %p118 = scmp.eq.s32.totalorder %s29, 0
      %p119 = por %p117, %p118
      %s121 = sadd.s32 %s120, 1
      %p124 = scmp.eq.s32.totalorder %s23, 1
      %p125 = scmp.ne.s32.totalorder %s120, %s122
      %p126 = scmp.eq.s32.totalorder %s23, 0
      %p127 = por %p125, %p126
      %p128 = scmp.ne.s32.totalorder %s120, %s122
      %p129 = scmp.eq.s32.totalorder %s28, 1
      %p130 = por %p128, %p129
      %p131 = scmp.ne.s32.totalorder %s122, %s123
      %p132 = scmp.eq.s32.totalorder %s28, 0
      %p133 = por %p131, %p132
      %p134 = scmp.ne.s32.totalorder %s122, %s123
      %p135 = scmp.eq.s32.totalorder %s29, 1
      %p136 = por %p134, %p135
      %p138 = scmp.ne.s32.totalorder %s123, %s137
      %p139 = scmp.eq.s32.totalorder %s29, 0
      %p140 = por %p138, %p139
      %s142 = sadd.s32 %s141, 1
      %p145 = scmp.eq.s32.totalorder %s23, 1
      %p146 = scmp.ne.s32.totalorder %s141, %s143
      %p147 = scmp.eq.s32.totalorder %s23, 0
      %p148 = por %p146, %p147
      %p149 = scmp.ne.s32.totalorder %s141, %s143
      %p150 = scmp.eq.s32.totalorder %s28, 1
      %p151 = por %p149, %p150
      %p152 = scmp.ne.s32.totalorder %s143, %s144
      %p153 = scmp.eq.s32.totalorder %s28, 0
      %p154 = por %p152, %p153
      %p155 = scmp.ne.s32.totalorder %s143, %s144
      %p156 = scmp.eq.s32.totalorder %s29, 1
      %p157 = por %p155, %p156
      %p159 = scmp.ne.s32.totalorder %s144, %s158
      %p160 = scmp.eq.s32.totalorder %s29, 0
      %p161 = por %p159, %p160
      %s163 = sadd.s32 %s162, 1
      %p166 = scmp.eq.s32.totalorder %s23, 1
      %p167 = scmp.ne.s32.totalorder %s162, %s164
      %p168 = scmp.eq.s32.totalorder %s23, 0
      %p169 = por %p167, %p168
      %p170 = scmp.ne.s32.totalorder %s162, %s164
      %p171 = scmp.eq.s32.totalorder %s28, 1
      %p172 = por %p170, %p171
      %p173 = scmp.ne.s32.totalorder %s164, %s165
      %p174 = scmp.eq.s32.totalorder %s28, 0
      %p175 = por %p173, %p174
      %p176 = scmp.ne.s32.totalorder %s164, %s165
      %p177 = scmp.eq.s32.totalorder %s29, 1
      %p178 = por %p176, %p177
      %p180 = scmp.ne.s32.totalorder %s165, %s179
      %p181 = scmp.eq.s32.totalorder %s29, 0
      %p182 = por %p180, %p181
      %s184 = sadd.s32 %s183, 1
      %p187 = scmp.eq.s32.totalorder %s23, 1
      %p188 = scmp.ne.s32.totalorder %s183, %s185
      %p189 = scmp.eq.s32.totalorder %s23, 0
      %p190 = por %p188, %p189
      %p191 = scmp.ne.s32.totalorder %s183, %s185
      %p192 = scmp.eq.s32.totalorder %s28, 1
      %p193 = por %p191, %p192
      %p194 = scmp.ne.s32.totalorder %s185, %s186
      %p195 = scmp.eq.s32.totalorder %s28, 0
      %p196 = por %p194, %p195
      %p197 = scmp.ne.s32.totalorder %s185, %s186
      %p198 = scmp.eq.s32.totalorder %s29, 1
      %p199 = por %p197, %p198
      %p201 = scmp.ne.s32.totalorder %s186, %s200
      %p202 = scmp.eq.s32.totalorder %s29, 0
      %p203 = por %p201, %p202
      %s205 = sadd.s32 %s204, 1
      %p208 = scmp.eq.s32.totalorder %s23, 1
      %p209 = scmp.ne.s32.totalorder %s204, %s206
      %p210 = scmp.eq.s32.totalorder %s23, 0
      %p211 = por %p209, %p210
      %p212 = scmp.ne.s32.totalorder %s204, %s206
      %p213 = scmp.eq.s32.totalorder %s28, 1
      %p214 = por %p212, %p213
      %p215 = scmp.ne.s32.totalorder %s206, %s207
      %p216 = scmp.eq.s32.totalorder %s28, 0
      %p217 = por %p215, %p216
      %p218 = scmp.ne.s32.totalorder %s206, %s207
      %p219 = scmp.eq.s32.totalorder %s29, 1
      %p220 = por %p218, %p219
      %p222 = scmp.ne.s32.totalorder %s207, %s221
      %p223 = scmp.eq.s32.totalorder %s29, 0
      %p224 = por %p222, %p223
      %s226 = sadd.s32 %s225, 1
      %p229 = scmp.eq.s32.totalorder %s23, 1
      %p230 = scmp.ne.s32.totalorder %s225, %s227
      %p231 = scmp.eq.s32.totalorder %s23, 0
      %p232 = por %p230, %p231
      %p233 = scmp.ne.s32.totalorder %s225, %s227
      %p234 = scmp.eq.s32.totalorder %s28, 1
      %p235 = por %p233, %p234
      %p236 = scmp.ne.s32.totalorder %s227, %s228
      %p237 = scmp.eq.s32.totalorder %s28, 0
      %p238 = por %p236, %p237
      %p239 = scmp.ne.s32.totalorder %s227, %s228
      %p240 = scmp.eq.s32.totalorder %s29, 1
      %p241 = por %p239, %p240
      %p243 = scmp.ne.s32.totalorder %s228, %s242
      %p244 = scmp.eq.s32.totalorder %s29, 0
      %p245 = por %p243, %p244
      %s247 = sadd.s32 %s246, 1
      %p250 = scmp.eq.s32.totalorder %s23, 1
      %p251 = scmp.ne.s32.totalorder %s246, %s248
      %p252 = scmp.eq.s32.totalorder %s23, 0
      %p253 = por %p251, %p252
      %p254 = scmp.ne.s32.totalorder %s246, %s248
      %p255 = scmp.eq.s32.totalorder %s28, 1
      %p256 = por %p254, %p255
      %p257 = scmp.ne.s32.totalorder %s248, %s249
      %p258 = scmp.eq.s32.totalorder %s28, 0
      %p259 = por %p257, %p258
      %p260 = scmp.ne.s32.totalorder %s248, %s249
      %p261 = scmp.eq.s32.totalorder %s29, 1
      %p262 = por %p260, %p261
      %p264 = scmp.ne.s32.totalorder %s249, %s263
      %p265 = scmp.eq.s32.totalorder %s29, 0
      %p266 = por %p264, %p265
      %s267 = ssub.s32 %s23, %s30
      %p268 = scmp.eq.s32.totalorder %s267, 0
      %s270 = sadd.s32 %s269, 1
      %s271 = scalar_select %p268, %s269, %s270
      %p274 = pneg %p268
      %p275 = scmp.eq.s32.totalorder %s23, 1
      %p276 = por %p274, %p275
      %p277 = scmp.ne.s32.totalorder %s269, %s272
      %p278 = scmp.eq.s32.totalorder %s23, 0
      %p279 = por %p277, %p278
      %p280 = scmp.ne.s32.totalorder %s269, %s272
      %p281 = scmp.eq.s32.totalorder %s28, 1
      %p282 = por %p280, %p281
      %p283 = scmp.ne.s32.totalorder %s272, %s273
      %p284 = scmp.eq.s32.totalorder %s28, 0
      %p285 = por %p283, %p284
      %p286 = scmp.ne.s32.totalorder %s272, %s273
      %p287 = scmp.eq.s32.totalorder %s29, 1
      %p288 = por %p286, %p287
      %p290 = scmp.ne.s32.totalorder %s273, %s289
      %p291 = scmp.eq.s32.totalorder %s29, 0
      %p292 = por %p290, %p291
      %p293 = scmp.le.s32.totalorder 1, %s23
      %p294 = scmp.lt.s32.totalorder %s23, 3
      %p295 = pnand %p293, %p294
      %p296 = pneg %p295
      // Predicated region
      $region9: #{tpu_custom_call.1} parent=5 // pred_check
        _
      $region10: #{tpu_custom_call.1} parent=5 // pred_check_branch
        %298 = sbr.rel (%p295) target = $region12
      $region11: #{tpu_custom_call.1} parent=5 // pred_region
        %s299 = ssub.s32 %s23, 1
        // Predicated region
        $region13: #{tpu_custom_call.1} parent=11 // pred_check
          %p300 = pneg %p70
        $region14: #{tpu_custom_call.1} parent=11 // pred_check_branch
          %302 = sbr.rel (%p300) target = $region16
        $region15: #{tpu_custom_call.1} parent=11 // pred_region
          %s304 = ssub.s32 1024, 1024
          %305 = vsyncadd [#allocation5], %s304
          %s306 = sshll.u32 [#allocation4], 4
          %s307 = int_to_ptr.vmem [resolvable:$true] %s306
          %312 = dma.hbm_to_vmem [thread:$0]  %s1, 1024, %s307, [#allocation5], 64, 64, 4
        $region16: #{tpu_custom_call.1} parent=11 // pred_fallthru
          _
        // Predicated region
        $region17: #{tpu_custom_call.1} parent=11 // pred_check
          %p313 = pneg %p91
        $region18: #{tpu_custom_call.1} parent=11 // pred_check_branch
          %315 = sbr.rel (%p313) target = $region20
        $region19: #{tpu_custom_call.1} parent=11 // pred_region
          %s317 = ssub.s32 16, 16
          %318 = vsyncadd [#allocation5], %s317
          %s320 = sshll.u32 [#allocation6], 4
          %s321 = int_to_ptr.vmem [resolvable:$true] %s320
          %323 = dma.hbm_to_vmem [thread:$0]  %s2, 16, %s321, [#allocation5]
        $region20: #{tpu_custom_call.1} parent=11 // pred_fallthru
          _
        // Predicated region
        $region21: #{tpu_custom_call.1} parent=11 // pred_check
          %p324 = pneg %p112
        $region22: #{tpu_custom_call.1} parent=11 // pred_check_branch
          %326 = sbr.rel (%p324) target = $region24
        $region23: #{tpu_custom_call.1} parent=11 // pred_region
          %s328 = ssub.s32 16, 16
          %329 = vsyncadd [#allocation8], %s328
          %s331 = sshll.u32 [#allocation7], 4
          %s332 = int_to_ptr.vmem [resolvable:$true] %s331
          %334 = dma.hbm_to_vmem [thread:$0]  %s3, 16, %s332, [#allocation8]
        $region24: #{tpu_custom_call.1} parent=11 // pred_fallthru
          _
        // Predicated region
        $region25: #{tpu_custom_call.1} parent=11 // pred_check
          %p335 = pneg %p133
        $region26: #{tpu_custom_call.1} parent=11 // pred_check_branch
          %337 = sbr.rel (%p335) target = $region28
        $region27: #{tpu_custom_call.1} parent=11 // pred_region
          %s339 = ssub.s32 16, 16
          %340 = vsyncadd [#allocation8], %s339
          %s342 = sshll.u32 [#allocation9], 4
          %s343 = int_to_ptr.vmem [resolvable:$true] %s342
          %345 = dma.hbm_to_vmem [thread:$0]  %s4, 16, %s343, [#allocation8]
        $region28: #{tpu_custom_call.1} parent=11 // pred_fallthru
          _
        // Predicated region
        $region29: #{tpu_custom_call.1} parent=11 // pred_check
          %p346 = pneg %p154
        $region30: #{tpu_custom_call.1} parent=11 // pred_check_branch
          %348 = sbr.rel (%p346) target = $region32
        $region31: #{tpu_custom_call.1} parent=11 // pred_region
          %s350 = ssub.s32 3072, 3072
          %351 = vsyncadd [#allocation11], %s350
          %s352 = sshll.u32 [#allocation10], 4
          %s353 = int_to_ptr.vmem [resolvable:$true] %s352
          %358 = dma.hbm_to_vmem [thread:$0]  %s5, 3072, %s353, [#allocation11], 64, 64, 4
        $region32: #{tpu_custom_call.1} parent=11 // pred_fallthru
          _
        // Predicated region
        $region33: #{tpu_custom_call.1} parent=11 // pred_check
          %p359 = pneg %p175
        $region34: #{tpu_custom_call.1} parent=11 // pred_check_branch
          %361 = sbr.rel (%p359) target = $region36
        $region35: #{tpu_custom_call.1} parent=11 // pred_region
          _
        $region36: #{tpu_custom_call.1} parent=11 // pred_fallthru
          _
        // Predicated region
        $region37: #{tpu_custom_call.1} parent=11 // pred_check
          %p362 = pneg %p196
        $region38: #{tpu_custom_call.1} parent=11 // pred_check_branch
          %364 = sbr.rel (%p362) target = $region40
        $region39: #{tpu_custom_call.1} parent=11 // pred_region
          _
        $region40: #{tpu_custom_call.1} parent=11 // pred_fallthru
          _
        // Predicated region
        $region41: #{tpu_custom_call.1} parent=11 // pred_check
          %p365 = pneg %p217
        $region42: #{tpu_custom_call.1} parent=11 // pred_check_branch
          %367 = sbr.rel (%p365) target = $region44
        $region43: #{tpu_custom_call.1} parent=11 // pred_region
          _
        $region44: #{tpu_custom_call.1} parent=11 // pred_fallthru
          _
        // Predicated region
        $region45: #{tpu_custom_call.1} parent=11 // pred_check
          %p368 = pneg %p238
        $region46: #{tpu_custom_call.1} parent=11 // pred_check_branch
          %370 = sbr.rel (%p368) target = $region48
        $region47: #{tpu_custom_call.1} parent=11 // pred_region
          %s372 = ssub.s32 1024, 1024
          %373 = vsyncadd [#allocation11], %s372
          %s374 = sshll.u32 [#allocation12], 4
          %s375 = int_to_ptr.vmem [resolvable:$true] %s374
          %380 = dma.hbm_to_vmem [thread:$0]  %s9, 1024, %s375, [#allocation11], 64, 64, 4
        $region48: #{tpu_custom_call.1} parent=11 // pred_fallthru
          _
        // Predicated region
        $region49: #{tpu_custom_call.1} parent=11 // pred_check
          %p381 = pneg %p259
        $region50: #{tpu_custom_call.1} parent=11 // pred_check_branch
          %383 = sbr.rel (%p381) target = $region52
        $region51: #{tpu_custom_call.1} parent=11 // pred_region
          _
        $region52: #{tpu_custom_call.1} parent=11 // pred_fallthru
          _
      $region12: #{tpu_custom_call.1} parent=5 // pred_fallthru
        _
      %p384 = scmp.lt.s32.totalorder %s23, 2
      // Predicated region
      $region53: #{tpu_custom_call.1} parent=5 // pred_check
        %p385 = pneg %p384
      $region54: #{tpu_custom_call.1} parent=5 // pred_check_branch
        %387 = sbr.rel (%p385) target = $region56
      $region55: #{tpu_custom_call.1} parent=5 // pred_region
        // Predicated region
        $region57: #{tpu_custom_call.1} parent=55 // pred_check
          %p388 = pneg %p43
        $region58: #{tpu_custom_call.1} parent=55 // pred_check_branch
          %390 = sbr.rel (%p388) target = $region60
        $region59: #{tpu_custom_call.1} parent=55 // pred_region
          %s391 = sand.u32 %s33, 1
          %s392 = scalar_lea.sflag [#allocation3], %s391
          %s393 = sand.u32 %s33, 1
          %s394 = smul.addr %s393, 4
          %s395 = scalar_lea.vmem [#allocation2], %s394
          %s397 = ssub.s32 64, 64
          %398 = vsyncadd %s392, %s397
          %s399 = smul.addr %s23, 64
          %s400 = scalar_lea.hbm %s0, %s399
          %s402 = sshll.u32 %s395, 4
          %s403 = int_to_ptr.vmem [resolvable:$true] %s402
          %405 = dma.hbm_to_vmem [thread:$0]  %s400, 64, %s403, %s392
        $region60: #{tpu_custom_call.1} parent=55 // pred_fallthru
          _
      $region56: #{tpu_custom_call.1} parent=5 // pred_fallthru
        _
      %p406 = scmp.le.s32.totalorder 1, %s23
      %p407 = scmp.lt.s32.totalorder %s23, 3
      %p408 = pnand %p406, %p407
      %p409 = pneg %p408
      // Predicated region
      $region61: #{tpu_custom_call.1} parent=5 // pred_check
        _
      $region62: #{tpu_custom_call.1} parent=5 // pred_check_branch
        %411 = sbr.rel (%p408) target = $region64
      $region63: #{tpu_custom_call.1} parent=5 // pred_region
        %s412 = ssub.s32 %s23, 1
        %s413 = sand.u32 %s36, 1
        %s414 = scalar_lea.sflag [#allocation3], %s413
        %s415 = sand.u32 %s36, 1
        %s416 = smul.addr %s415, 4
        %s417 = scalar_lea.vmem [#allocation2], %s416
        // Predicated region
        $region65: #{tpu_custom_call.1} parent=63 // pred_check
          %p418 = pneg %p49
        $region66: #{tpu_custom_call.1} parent=63 // pred_check_branch
          %420 = sbr.rel (%p418) target = $region68
        $region67: #{tpu_custom_call.1} parent=63 // pred_region
          %421 = dma.done %s414, 64
        $region68: #{tpu_custom_call.1} parent=63 // pred_fallthru
          _
        // Predicated region
        $region69: #{tpu_custom_call.1} parent=63 // pred_check
          %p422 = pneg %p70
        $region70: #{tpu_custom_call.1} parent=63 // pred_check_branch
          %424 = sbr.rel (%p422) target = $region72
        $region71: #{tpu_custom_call.1} parent=63 // pred_region
          %425 = dma.done [#allocation5], 1024
        $region72: #{tpu_custom_call.1} parent=63 // pred_fallthru
          _
        // Predicated region
        $region73: #{tpu_custom_call.1} parent=63 // pred_check
          %p426 = pneg %p91
        $region74: #{tpu_custom_call.1} parent=63 // pred_check_branch
          %428 = sbr.rel (%p426) target = $region76
        $region75: #{tpu_custom_call.1} parent=63 // pred_region
          %429 = dma.done [#allocation5], 16
        $region76: #{tpu_custom_call.1} parent=63 // pred_fallthru
          _
        // Predicated region
        $region77: #{tpu_custom_call.1} parent=63 // pred_check
          %p430 = pneg %p112
        $region78: #{tpu_custom_call.1} parent=63 // pred_check_branch
          %432 = sbr.rel (%p430) target = $region80
        $region79: #{tpu_custom_call.1} parent=63 // pred_region
          %433 = dma.done [#allocation8], 16
        $region80: #{tpu_custom_call.1} parent=63 // pred_fallthru
          _
        // Predicated region
        $region81: #{tpu_custom_call.1} parent=63 // pred_check
          %p434 = pneg %p133
        $region82: #{tpu_custom_call.1} parent=63 // pred_check_branch
          %436 = sbr.rel (%p434) target = $region84
        $region83: #{tpu_custom_call.1} parent=63 // pred_region
          %437 = dma.done [#allocation8], 16
        $region84: #{tpu_custom_call.1} parent=63 // pred_fallthru
          _
        // Predicated region
        $region85: #{tpu_custom_call.1} parent=63 // pred_check
          %p438 = pneg %p154
        $region86: #{tpu_custom_call.1} parent=63 // pred_check_branch
          %440 = sbr.rel (%p438) target = $region88
        $region87: #{tpu_custom_call.1} parent=63 // pred_region
          %441 = dma.done [#allocation11], 3072
        $region88: #{tpu_custom_call.1} parent=63 // pred_fallthru
          _
        // Predicated region
        $region89: #{tpu_custom_call.1} parent=63 // pred_check
          %p442 = pneg %p238
        $region90: #{tpu_custom_call.1} parent=63 // pred_check_branch
          %444 = sbr.rel (%p442) target = $region92
        $region91: #{tpu_custom_call.1} parent=63 // pred_region
          %445 = dma.done [#allocation11], 1024
        $region92: #{tpu_custom_call.1} parent=63 // pred_fallthru
          _
        %s446 = sand.u32 %s36, 1
        %s447 = scalar_lea.sflag [#allocation3], %s446
        %s448 = sand.u32 %s36, 1
        %s449 = smul.addr %s448, 4
        %s450 = scalar_lea.vmem [#allocation2], %s449
        %p451 = pneg %p49
        %p452 = pneg %p46
        %p453 = pneg %p70
        %p454 = pneg %p67
        %p455 = pneg %p91
        %p456 = pneg %p88
        %p457 = pneg %p112
        %p458 = pneg %p109
        %p459 = pneg %p133
        %p460 = pneg %p130
        %p461 = pneg %p154
        %p462 = pneg %p151
        %p463 = pneg %p175
        %p464 = pneg %p172
        %p465 = pneg %p196
        %p466 = pneg %p193
        %p467 = pneg %p217
        %p468 = pneg %p214
        %p469 = pneg %p238
        %p470 = pneg %p235
        %p471 = pneg %p259
        %p472 = pneg %p256
        %p473 = pneg %p285
        %p474 = pneg %p282
        %p475 = scmp.lt.s32.totalorder %s28, 1
        %s476 = scalar_select %p475, %s28, 1
        %s477 = smul.addr %s476, 8
        %s478 = scalar_lea.vmem %s11, %s477
        %p479 = scmp.lt.s32.totalorder %s28, 1
        %s480 = scalar_select %p479, %s28, 1
        %s481 = smul.addr %s480, 8
        %s482 = scalar_lea.vmem %s11, %s481
        %v484 = vld [vmem:[%s417] sm:$0xf]
        %v485 = vld [vmem:[#allocation4] sm:$0xf]
        %v486 = vld [vmem:[#allocation4 + $0x4] sm:$0xf]
        %v487 = vld [vmem:[#allocation4 + $0x8] sm:$0xf]
        %v488 = vld [vmem:[#allocation4 + $0xc] sm:$0xf]
        %v489 = vld [vmem:[#allocation4 + $0x10] sm:$0xf]
        %v490 = vld [vmem:[#allocation4 + $0x14] sm:$0xf]
        %v491 = vld [vmem:[#allocation4 + $0x18] sm:$0xf]
        %v492 = vld [vmem:[#allocation4 + $0x1c] sm:$0xf]
        %v493 = vld [vmem:[#allocation4 + $0x20] sm:$0xf]
        %v494 = vld [vmem:[#allocation4 + $0x24] sm:$0xf]
        %v495 = vld [vmem:[#allocation4 + $0x28] sm:$0xf]
        %v496 = vld [vmem:[#allocation4 + $0x2c] sm:$0xf]
        %v497 = vld [vmem:[#allocation4 + $0x30] sm:$0xf]
        %v498 = vld [vmem:[#allocation4 + $0x34] sm:$0xf]
        %v499 = vld [vmem:[#allocation4 + $0x38] sm:$0xf]
        %v500 = vld [vmem:[#allocation4 + $0x3c] sm:$0xf]
        %v501 = vld [vmem:[#allocation6] sm:$0x1]
        %v502 = vld [vmem:[#allocation7] sm:$0x1]
        %v503 = vld [vmem:[#allocation9] sm:$0x1]
        %v505 = vlaneseq
        %v506 = vshrl.u32 %v505, 7
        %v507 = vsub.s32 0, %v506
        %v508 = vrot.slane %v501, %v507
        %v526 = vunpack.c.l.b16 %v485
        %v527 = vunpack.c.l.b16 %v486
        %v528 = vunpack.c.l.b16 %v487
        %v529 = vunpack.c.l.b16 %v488
        %v530 = vunpack.c.l.b16 %v489
        %v531 = vunpack.c.l.b16 %v490
        %v532 = vunpack.c.l.b16 %v491
        %v533 = vunpack.c.l.b16 %v492
        %v534 = vunpack.c.l.b16 %v493
        %v535 = vunpack.c.l.b16 %v494
        %v536 = vunpack.c.l.b16 %v495
        %v537 = vunpack.c.l.b16 %v496
        %v538 = vunpack.c.l.b16 %v497
        %v539 = vunpack.c.l.b16 %v498
        %v540 = vunpack.c.l.b16 %v499
        %v541 = vunpack.c.l.b16 %v500
        %v542 = vpack.c.b16 %v527, %v526
        %v543 = vpack.c.b16 %v529, %v528
        %v544 = vpack.c.b16 %v531, %v530
        %v545 = vpack.c.b16 %v533, %v532
        %v546 = vpack.c.b16 %v535, %v534
        %v547 = vpack.c.b16 %v537, %v536
        %v548 = vpack.c.b16 %v539, %v538
        %v549 = vpack.c.b16 %v541, %v540
        %558 = vmatprep.subr.bf16.mxu0 0
        %559 = vmatpush1.bf16.msra.mxu0 %v549
        %560 = vmatprep.subr.bf16.mxu0 0
        %561 = vmatpush1.bf16.msra.mxu0 %v548
        %562 = vmatprep.subr.bf16.mxu0 0
        %563 = vmatpush1.bf16.msra.mxu0 %v547
        %564 = vmatprep.subr.bf16.mxu0 0
        %565 = vmatpush1.bf16.msra.mxu0 %v546
        %566 = vmatprep.subr.bf16.mxu0 0
        %567 = vmatpush1.bf16.msra.mxu0 %v545
        %568 = vmatprep.subr.bf16.mxu0 0
        %569 = vmatpush1.bf16.msra.mxu0 %v544
        %570 = vmatprep.subr.bf16.mxu0 0
        %571 = vmatpush1.bf16.msra.mxu0 %v543
        %572 = vmatprep.subr.bf16.mxu0 0
        %573 = vmatpush1.bf16.msra.mxu0 %v542
        %574 = vmatprep.subr.bf16.mxu0 0
        %575 = vmatpush2.bf16.msra.mxu0 0
        %576 = vmatprep.subr.bf16.mxu0 0
        %577 = vmatpush2.bf16.msra.mxu0 0
        %578 = vmatprep.subr.bf16.mxu0 0
        %579 = vmatpush2.bf16.msra.mxu0 0
        %580 = vmatprep.subr.bf16.mxu0 0
        %581 = vmatpush2.bf16.msra.mxu0 0
        %582 = vmatprep.subr.bf16.mxu0 0
        %583 = vmatpush2.bf16.msra.mxu0 0
        %584 = vmatprep.subr.bf16.mxu0 0
        %585 = vmatpush2.bf16.msra.mxu0 0
        %586 = vmatprep.subr.bf16.mxu0 0
        %587 = vmatpush2.bf16.msra.mxu0 0
        %588 = vmatprep.subr.bf16.mxu0 0
        %589 = vmatpush2.bf16.msra.mxu0 0
        %590 = vmatprep.mubr.bf16.mxu0 0
        %591 = vmatmul.mubr.bf16.gmra.mxu0 %v484
        %v592 = vpop.f32.mrf.mxu0
        %v593 = vadd.f32 %v508, %v592
        %v594 = vpop.f32.mrf.mxu0
        %v595 = vpop.f32.mrf.mxu0
        %v596 = vpop.f32.mrf.mxu0
        %597 = vdwg.mxu0
        %vm598 = vcmp.gt.f32.partialorder %v593, 0.0
        %v599 = vmul.f32 %v593, 1.442695
        %v600 = vpow.pop %v599
        %v601 = vsub.f32 %v600, 1.0
        %v602 = vmul.f32 %v601, 1.6732632
        %v603 = vsel %vm598, %v593, %v602
        %v604 = vmul.f32 %v603, 1.050701
        %605 = vadd.xlane.f32.xlu0 %v604
        %v606 = vpop.xlane.xlu0 %605
        %v607 = vmul.f32 %v606, 0.03125
        %v608 = vmul.f32 %v604, %v604
        %609 = vadd.xlane.f32.xlu0 %v608
        %v610 = vpop.xlane.xlu0 %609
        %v611 = vmul.f32 %v610, 0.03125
        %v612 = vmul.f32 %v607, %v607
        %v613 = vsub.f32 %v611, %v612
        %v614 = vsub.f32 %v604, %v607
        %v615 = vadd.f32 %v613, 1e-05
        %v616 = vrsqrt.pop %v615
        %v617 = vmul.f32 %v614, %v616
        %v619 = vlaneseq
        %v620 = vshrl.u32 %v619, 7
        %v621 = vsub.s32 0, %v620
        %v622 = vrot.slane %v502, %v621
        %v624 = vmul.f32 %v617, %v622
        %v626 = vlaneseq
        %v627 = vshrl.u32 %v626, 7
        %v628 = vsub.s32 0, %v627
        %v629 = vrot.slane %v503, %v628
        %v631 = vadd.f32 %v624, %v629
        %v632 = vpack.c.bf16 %v631, %v631
        %v633 = vld [vmem:[#allocation10] sm:$0xf]
        %v634 = vld [vmem:[#allocation10 + $0x4] sm:$0xf]
        %v635 = vld [vmem:[#allocation10 + $0x8] sm:$0xf]
        %v636 = vld [vmem:[#allocation10 + $0xc] sm:$0xf]
        %v637 = vld [vmem:[#allocation10 + $0x10] sm:$0xf]
        %v638 = vld [vmem:[#allocation10 + $0x14] sm:$0xf]
        %v639 = vld [vmem:[#allocation10 + $0x18] sm:$0xf]
        %v640 = vld [vmem:[#allocation10 + $0x1c] sm:$0xf]
        %v641 = vld [vmem:[#allocation10 + $0x20] sm:$0xf]
        %v642 = vld [vmem:[#allocation10 + $0x24] sm:$0xf]
        %v643 = vld [vmem:[#allocation10 + $0x28] sm:$0xf]
        %v644 = vld [vmem:[#allocation10 + $0x2c] sm:$0xf]
        %v645 = vld [vmem:[#allocation10 + $0x30] sm:$0xf]
        %v646 = vld [vmem:[#allocation10 + $0x34] sm:$0xf]
        %v647 = vld [vmem:[#allocation10 + $0x38] sm:$0xf]
        %v648 = vld [vmem:[#allocation10 + $0x3c] sm:$0xf]
        %v649 = vld [vmem:[%s6] sm:$0x1]
        %v650 = vld [vmem:[%s7] sm:$0x1]
        %v651 = vld [vmem:[%s8] sm:$0x1]
        %v652 = vlaneseq
        %v653 = vshrl.u32 %v652, 7
        %v654 = vsub.s32 0, %v653
        %v655 = vrot.slane %v649, %v654
        %v672 = vunpack.c.l.b16 %v633
        %v673 = vunpack.c.l.b16 %v634
        %v674 = vunpack.c.l.b16 %v635
        %v675 = vunpack.c.l.b16 %v636
        %v676 = vunpack.c.l.b16 %v637
        %v677 = vunpack.c.l.b16 %v638
        %v678 = vunpack.c.l.b16 %v639
        %v679 = vunpack.c.l.b16 %v640
        %v680 = vunpack.c.l.b16 %v641
        %v681 = vunpack.c.l.b16 %v642
        %v682 = vunpack.c.l.b16 %v643
        %v683 = vunpack.c.l.b16 %v644
        %v684 = vunpack.c.l.b16 %v645
        %v685 = vunpack.c.l.b16 %v646
        %v686 = vunpack.c.l.b16 %v647
        %v687 = vunpack.c.l.b16 %v648
        %v688 = vpack.c.b16 %v673, %v672
        %v689 = vpack.c.b16 %v675, %v674
        %v690 = vpack.c.b16 %v677, %v676
        %v691 = vpack.c.b16 %v679, %v678
        %v692 = vpack.c.b16 %v681, %v680
        %v693 = vpack.c.b16 %v683, %v682
        %v694 = vpack.c.b16 %v685, %v684
        %v695 = vpack.c.b16 %v687, %v686
        %704 = vmatprep.subr.bf16.mxu0 0
        %705 = vmatpush1.bf16.msra.mxu0 %v695
        %706 = vmatprep.subr.bf16.mxu0 0
        %707 = vmatpush1.bf16.msra.mxu0 %v694
        %708 = vmatprep.subr.bf16.mxu0 0
        %709 = vmatpush1.bf16.msra.mxu0 %v693
        %710 = vmatprep.subr.bf16.mxu0 0
        %711 = vmatpush1.bf16.msra.mxu0 %v692
        %712 = vmatprep.subr.bf16.mxu0 0
        %713 = vmatpush1.bf16.msra.mxu0 %v691
        %714 = vmatprep.subr.bf16.mxu0 0
        %715 = vmatpush1.bf16.msra.mxu0 %v690
        %716 = vmatprep.subr.bf16.mxu0 0
        %717 = vmatpush1.bf16.msra.mxu0 %v689
        %718 = vmatprep.subr.bf16.mxu0 0
        %719 = vmatpush1.bf16.msra.mxu0 %v688
        %720 = vmatprep.subr.bf16.mxu0 0
        %721 = vmatpush2.bf16.msra.mxu0 0
        %722 = vmatprep.subr.bf16.mxu0 0
        %723 = vmatpush2.bf16.msra.mxu0 0
        %724 = vmatprep.subr.bf16.mxu0 0
        %725 = vmatpush2.bf16.msra.mxu0 0
        %726 = vmatprep.subr.bf16.mxu0 0
        %727 = vmatpush2.bf16.msra.mxu0 0
        %728 = vmatprep.subr.bf16.mxu0 0
        %729 = vmatpush2.bf16.msra.mxu0 0
        %730 = vmatprep.subr.bf16.mxu0 0
        %731 = vmatpush2.bf16.msra.mxu0 0
        %732 = vmatprep.subr.bf16.mxu0 0
        %733 = vmatpush2.bf16.msra.mxu0 0
        %734 = vmatprep.subr.bf16.mxu0 0
        %735 = vmatpush2.bf16.msra.mxu0 0
        %736 = vmatprep.mubr.bf16.mxu0 0
        %737 = vmatmul.mubr.bf16.gmra.mxu0 %v632
        %v738 = vpop.f32.mrf.mxu0
        %v739 = vadd.f32 %v655, %v738
        %v740 = vpop.f32.mrf.mxu0
        %v741 = vpop.f32.mrf.mxu0
        %v742 = vpop.f32.mrf.mxu0
        %743 = vdwg.mxu0
        %vm744 = vcmp.gt.f32.partialorder %v739, 0.0
        %v745 = vmul.f32 %v739, 1.442695
        %v746 = vpow.pop %v745
        %v747 = vsub.f32 %v746, 1.0
        %v748 = vmul.f32 %v747, 1.6732632
        %v749 = vsel %vm744, %v739, %v748
        %v750 = vmul.f32 %v749, 1.050701
        %751 = vadd.xlane.f32.xlu0 %v750
        %v752 = vpop.xlane.xlu0 %751
        %v753 = vmul.f32 %v752, 0.03125
        %v754 = vmul.f32 %v750, %v750
        %755 = vadd.xlane.f32.xlu0 %v754
        %v756 = vpop.xlane.xlu0 %755
        %v757 = vmul.f32 %v756, 0.03125
        %v758 = vmul.f32 %v753, %v753
        %v759 = vsub.f32 %v757, %v758
        %v760 = vsub.f32 %v750, %v753
        %v761 = vadd.f32 %v759, 1e-05
        %v762 = vrsqrt.pop %v761
        %v763 = vmul.f32 %v760, %v762
        %v764 = vlaneseq
        %v765 = vshrl.u32 %v764, 7
        %v766 = vsub.s32 0, %v765
        %v767 = vrot.slane %v650, %v766
        %v768 = vmul.f32 %v763, %v767
        %v769 = vlaneseq
        %v770 = vshrl.u32 %v769, 7
        %v771 = vsub.s32 0, %v770
        %v772 = vrot.slane %v651, %v771
        %v773 = vadd.f32 %v768, %v772
        %v774 = vpack.c.bf16 %v773, %v773
        %s775 = scalar_lea.vmem [#allocation10], 64
        %v776 = vld [vmem:[%s775] sm:$0xf]
        %v777 = vld [vmem:[%s775 + $0x4] sm:$0xf]
        %v778 = vld [vmem:[%s775 + $0x8] sm:$0xf]
        %v779 = vld [vmem:[%s775 + $0xc] sm:$0xf]
        %v780 = vld [vmem:[%s775 + $0x10] sm:$0xf]
        %v781 = vld [vmem:[%s775 + $0x14] sm:$0xf]
        %v782 = vld [vmem:[%s775 + $0x18] sm:$0xf]
        %v783 = vld [vmem:[%s775 + $0x1c] sm:$0xf]
        %v784 = vld [vmem:[%s775 + $0x20] sm:$0xf]
        %v785 = vld [vmem:[%s775 + $0x24] sm:$0xf]
        %v786 = vld [vmem:[%s775 + $0x28] sm:$0xf]
        %v787 = vld [vmem:[%s775 + $0x2c] sm:$0xf]
        %v788 = vld [vmem:[%s775 + $0x30] sm:$0xf]
        %v789 = vld [vmem:[%s775 + $0x34] sm:$0xf]
        %v790 = vld [vmem:[%s775 + $0x38] sm:$0xf]
        %v791 = vld [vmem:[%s775 + $0x3c] sm:$0xf]
        %v792 = vld [vmem:[%s6 + $0x1] sm:$0x1]
        %v793 = vld [vmem:[%s7 + $0x1] sm:$0x1]
        %v794 = vld [vmem:[%s8 + $0x1] sm:$0x1]
        %v795 = vlaneseq
        %v796 = vshrl.u32 %v795, 7
        %v797 = vsub.s32 0, %v796
        %v798 = vrot.slane %v792, %v797
        %v815 = vunpack.c.l.b16 %v776
        %v816 = vunpack.c.l.b16 %v777
        %v817 = vunpack.c.l.b16 %v778
        %v818 = vunpack.c.l.b16 %v779
        %v819 = vunpack.c.l.b16 %v780
        %v820 = vunpack.c.l.b16 %v781
        %v821 = vunpack.c.l.b16 %v782
        %v822 = vunpack.c.l.b16 %v783
        %v823 = vunpack.c.l.b16 %v784
        %v824 = vunpack.c.l.b16 %v785
        %v825 = vunpack.c.l.b16 %v786
        %v826 = vunpack.c.l.b16 %v787
        %v827 = vunpack.c.l.b16 %v788
        %v828 = vunpack.c.l.b16 %v789
        %v829 = vunpack.c.l.b16 %v790
        %v830 = vunpack.c.l.b16 %v791
        %v831 = vpack.c.b16 %v816, %v815
        %v832 = vpack.c.b16 %v818, %v817
        %v833 = vpack.c.b16 %v820, %v819
        %v834 = vpack.c.b16 %v822, %v821
        %v835 = vpack.c.b16 %v824, %v823
        %v836 = vpack.c.b16 %v826, %v825
        %v837 = vpack.c.b16 %v828, %v827
        %v838 = vpack.c.b16 %v830, %v829
        %847 = vmatprep.subr.bf16.mxu0 0
        %848 = vmatpush1.bf16.msra.mxu0 %v838
        %849 = vmatprep.subr.bf16.mxu0 0
        %850 = vmatpush1.bf16.msra.mxu0 %v837
        %851 = vmatprep.subr.bf16.mxu0 0
        %852 = vmatpush1.bf16.msra.mxu0 %v836
        %853 = vmatprep.subr.bf16.mxu0 0
        %854 = vmatpush1.bf16.msra.mxu0 %v835
        %855 = vmatprep.subr.bf16.mxu0 0
        %856 = vmatpush1.bf16.msra.mxu0 %v834
        %857 = vmatprep.subr.bf16.mxu0 0
        %858 = vmatpush1.bf16.msra.mxu0 %v833
        %859 = vmatprep.subr.bf16.mxu0 0
        %860 = vmatpush1.bf16.msra.mxu0 %v832
        %861 = vmatprep.subr.bf16.mxu0 0
        %862 = vmatpush1.bf16.msra.mxu0 %v831
        %863 = vmatprep.subr.bf16.mxu0 0
        %864 = vmatpush2.bf16.msra.mxu0 0
        %865 = vmatprep.subr.bf16.mxu0 0
        %866 = vmatpush2.bf16.msra.mxu0 0
        %867 = vmatprep.subr.bf16.mxu0 0
        %868 = vmatpush2.bf16.msra.mxu0 0
        %869 = vmatprep.subr.bf16.mxu0 0
        %870 = vmatpush2.bf16.msra.mxu0 0
        %871 = vmatprep.subr.bf16.mxu0 0
        %872 = vmatpush2.bf16.msra.mxu0 0
        %873 = vmatprep.subr.bf16.mxu0 0
        %874 = vmatpush2.bf16.msra.mxu0 0
        %875 = vmatprep.subr.bf16.mxu0 0
        %876 = vmatpush2.bf16.msra.mxu0 0
        %877 = vmatprep.subr.bf16.mxu0 0
        %878 = vmatpush2.bf16.msra.mxu0 0
        %879 = vmatprep.mubr.bf16.mxu0 0
        %880 = vmatmul.mubr.bf16.gmra.mxu0 %v774
        %v881 = vpop.f32.mrf.mxu0
        %v882 = vadd.f32 %v798, %v881
        %v883 = vpop.f32.mrf.mxu0
        %v884 = vpop.f32.mrf.mxu0
        %v885 = vpop.f32.mrf.mxu0
        %886 = vdwg.mxu0
        %vm887 = vcmp.gt.f32.partialorder %v882, 0.0
        %v888 = vmul.f32 %v882, 1.442695
        %v889 = vpow.pop %v888
        %v890 = vsub.f32 %v889, 1.0
        %v891 = vmul.f32 %v890, 1.6732632
        %v892 = vsel %vm887, %v882, %v891
        %v893 = vmul.f32 %v892, 1.050701
        %894 = vadd.xlane.f32.xlu0 %v893
        %v895 = vpop.xlane.xlu0 %894
        %v896 = vmul.f32 %v895, 0.03125
        %v897 = vmul.f32 %v893, %v893
        %898 = vadd.xlane.f32.xlu0 %v897
        %v899 = vpop.xlane.xlu0 %898
        %v900 = vmul.f32 %v899, 0.03125
        %v901 = vmul.f32 %v896, %v896
        %v902 = vsub.f32 %v900, %v901
        %v903 = vsub.f32 %v893, %v896
        %v904 = vadd.f32 %v902, 1e-05
        %v905 = vrsqrt.pop %v904
        %v906 = vmul.f32 %v903, %v905
        %v907 = vlaneseq
        %v908 = vshrl.u32 %v907, 7
        %v909 = vsub.s32 0, %v908
        %v910 = vrot.slane %v793, %v909
        %v911 = vmul.f32 %v906, %v910
        %v912 = vlaneseq
        %v913 = vshrl.u32 %v912, 7
        %v914 = vsub.s32 0, %v913
        %v915 = vrot.slane %v794, %v914
        %v916 = vadd.f32 %v911, %v915
        %v917 = vpack.c.bf16 %v916, %v916
        %s918 = scalar_lea.vmem [#allocation10], 128
        %v919 = vld [vmem:[%s918] sm:$0xf]
        %v920 = vld [vmem:[%s918 + $0x4] sm:$0xf]
        %v921 = vld [vmem:[%s918 + $0x8] sm:$0xf]
        %v922 = vld [vmem:[%s918 + $0xc] sm:$0xf]
        %v923 = vld [vmem:[%s918 + $0x10] sm:$0xf]
        %v924 = vld [vmem:[%s918 + $0x14] sm:$0xf]
        %v925 = vld [vmem:[%s918 + $0x18] sm:$0xf]
        %v926 = vld [vmem:[%s918 + $0x1c] sm:$0xf]
        %v927 = vld [vmem:[%s918 + $0x20] sm:$0xf]
        %v928 = vld [vmem:[%s918 + $0x24] sm:$0xf]
        %v929 = vld [vmem:[%s918 + $0x28] sm:$0xf]
        %v930 = vld [vmem:[%s918 + $0x2c] sm:$0xf]
        %v931 = vld [vmem:[%s918 + $0x30] sm:$0xf]
        %v932 = vld [vmem:[%s918 + $0x34] sm:$0xf]
        %v933 = vld [vmem:[%s918 + $0x38] sm:$0xf]
        %v934 = vld [vmem:[%s918 + $0x3c] sm:$0xf]
        %v935 = vld [vmem:[%s6 + $0x2] sm:$0x1]
        %v936 = vld [vmem:[%s7 + $0x2] sm:$0x1]
        %v937 = vld [vmem:[%s8 + $0x2] sm:$0x1]
        %v938 = vlaneseq
        %v939 = vshrl.u32 %v938, 7
        %v940 = vsub.s32 0, %v939
        %v941 = vrot.slane %v935, %v940
        %v958 = vunpack.c.l.b16 %v919
        %v959 = vunpack.c.l.b16 %v920
        %v960 = vunpack.c.l.b16 %v921
        %v961 = vunpack.c.l.b16 %v922
        %v962 = vunpack.c.l.b16 %v923
        %v963 = vunpack.c.l.b16 %v924
        %v964 = vunpack.c.l.b16 %v925
        %v965 = vunpack.c.l.b16 %v926
        %v966 = vunpack.c.l.b16 %v927
        %v967 = vunpack.c.l.b16 %v928
        %v968 = vunpack.c.l.b16 %v929
        %v969 = vunpack.c.l.b16 %v930
        %v970 = vunpack.c.l.b16 %v931
        %v971 = vunpack.c.l.b16 %v932
        %v972 = vunpack.c.l.b16 %v933
        %v973 = vunpack.c.l.b16 %v934
        %v974 = vpack.c.b16 %v959, %v958
        %v975 = vpack.c.b16 %v961, %v960
        %v976 = vpack.c.b16 %v963, %v962
        %v977 = vpack.c.b16 %v965, %v964
        %v978 = vpack.c.b16 %v967, %v966
        %v979 = vpack.c.b16 %v969, %v968
        %v980 = vpack.c.b16 %v971, %v970
        %v981 = vpack.c.b16 %v973, %v972
        %990 = vmatprep.subr.bf16.mxu0 0
        %991 = vmatpush1.bf16.msra.mxu0 %v981
        %992 = vmatprep.subr.bf16.mxu0 0
        %993 = vmatpush1.bf16.msra.mxu0 %v980
        %994 = vmatprep.subr.bf16.mxu0 0
        %995 = vmatpush1.bf16.msra.mxu0 %v979
        %996 = vmatprep.subr.bf16.mxu0 0
        %997 = vmatpush1.bf16.msra.mxu0 %v978
        %998 = vmatprep.subr.bf16.mxu0 0
        %999 = vmatpush1.bf16.msra.mxu0 %v977
        %1000 = vmatprep.subr.bf16.mxu0 0
        %1001 = vmatpush1.bf16.msra.mxu0 %v976
        %1002 = vmatprep.subr.bf16.mxu0 0
        %1003 = vmatpush1.bf16.msra.mxu0 %v975
        %1004 = vmatprep.subr.bf16.mxu0 0
        %1005 = vmatpush1.bf16.msra.mxu0 %v974
        %1006 = vmatprep.subr.bf16.mxu0 0
        %1007 = vmatpush2.bf16.msra.mxu0 0
        %1008 = vmatprep.subr.bf16.mxu0 0
        %1009 = vmatpush2.bf16.msra.mxu0 0
        %1010 = vmatprep.subr.bf16.mxu0 0
        %1011 = vmatpush2.bf16.msra.mxu0 0
        %1012 = vmatprep.subr.bf16.mxu0 0
        %1013 = vmatpush2.bf16.msra.mxu0 0
        %1014 = vmatprep.subr.bf16.mxu0 0
        %1015 = vmatpush2.bf16.msra.mxu0 0
        %1016 = vmatprep.subr.bf16.mxu0 0
        %1017 = vmatpush2.bf16.msra.mxu0 0
        %1018 = vmatprep.subr.bf16.mxu0 0
        %1019 = vmatpush2.bf16.msra.mxu0 0
        %1020 = vmatprep.subr.bf16.mxu0 0
        %1021 = vmatpush2.bf16.msra.mxu0 0
        %1022 = vmatprep.mubr.bf16.mxu0 0
        %1023 = vmatmul.mubr.bf16.gmra.mxu0 %v917
        %v1024 = vpop.f32.mrf.mxu0
        %v1025 = vadd.f32 %v941, %v1024
        %v1026 = vpop.f32.mrf.mxu0
        %v1027 = vpop.f32.mrf.mxu0
        %v1028 = vpop.f32.mrf.mxu0
        %1029 = vdwg.mxu0
        %vm1030 = vcmp.gt.f32.partialorder %v1025, 0.0
        %v1031 = vmul.f32 %v1025, 1.442695
        %v1032 = vpow.pop %v1031
        %v1033 = vsub.f32 %v1032, 1.0
        %v1034 = vmul.f32 %v1033, 1.6732632
        %v1035 = vsel %vm1030, %v1025, %v1034
        %v1036 = vmul.f32 %v1035, 1.050701
        %1037 = vadd.xlane.f32.xlu0 %v1036
        %v1038 = vpop.xlane.xlu0 %1037
        %v1039 = vmul.f32 %v1038, 0.03125
        %v1040 = vmul.f32 %v1036, %v1036
        %1041 = vadd.xlane.f32.xlu0 %v1040
        %v1042 = vpop.xlane.xlu0 %1041
        %v1043 = vmul.f32 %v1042, 0.03125
        %v1044 = vmul.f32 %v1039, %v1039
        %v1045 = vsub.f32 %v1043, %v1044
        %v1046 = vsub.f32 %v1036, %v1039
        %v1047 = vadd.f32 %v1045, 1e-05
        %v1048 = vrsqrt.pop %v1047
        %v1049 = vmul.f32 %v1046, %v1048
        %v1050 = vlaneseq
        %v1051 = vshrl.u32 %v1050, 7
        %v1052 = vsub.s32 0, %v1051
        %v1053 = vrot.slane %v936, %v1052
        %v1054 = vmul.f32 %v1049, %v1053
        %v1055 = vlaneseq
        %v1056 = vshrl.u32 %v1055, 7
        %v1057 = vsub.s32 0, %v1056
        %v1058 = vrot.slane %v937, %v1057
        %v1059 = vadd.f32 %v1054, %v1058
        %v1060 = vpack.c.bf16 %v1059, %v1059
        %v1061 = vld [vmem:[#allocation12] sm:$0xf]
        %v1062 = vld [vmem:[#allocation12 + $0x4] sm:$0xf]
        %v1063 = vld [vmem:[#allocation12 + $0x8] sm:$0xf]
        %v1064 = vld [vmem:[#allocation12 + $0xc] sm:$0xf]
        %v1065 = vld [vmem:[#allocation12 + $0x10] sm:$0xf]
        %v1066 = vld [vmem:[#allocation12 + $0x14] sm:$0xf]
        %v1067 = vld [vmem:[#allocation12 + $0x18] sm:$0xf]
        %v1068 = vld [vmem:[#allocation12 + $0x1c] sm:$0xf]
        %v1069 = vld [vmem:[#allocation12 + $0x20] sm:$0xf]
        %v1070 = vld [vmem:[#allocation12 + $0x24] sm:$0xf]
        %v1071 = vld [vmem:[#allocation12 + $0x28] sm:$0xf]
        %v1072 = vld [vmem:[#allocation12 + $0x2c] sm:$0xf]
        %v1073 = vld [vmem:[#allocation12 + $0x30] sm:$0xf]
        %v1074 = vld [vmem:[#allocation12 + $0x34] sm:$0xf]
        %v1075 = vld [vmem:[#allocation12 + $0x38] sm:$0xf]
        %v1076 = vld [vmem:[#allocation12 + $0x3c] sm:$0xf]
        %v1077 = vld [vmem:[%s10] sm:$0x1]
        %v1079 = vlaneseq
        %v1080 = vshrl.u32 %v1079, 7
        %v1081 = vsub.s32 0, %v1080
        %v1082 = vrot.slane %v1077, %v1081
        %v1100 = vunpack.c.l.b16 %v1061
        %v1101 = vunpack.c.l.b16 %v1062
        %v1102 = vunpack.c.l.b16 %v1063
        %v1103 = vunpack.c.l.b16 %v1064
        %v1104 = vunpack.c.l.b16 %v1065
        %v1105 = vunpack.c.l.b16 %v1066
        %v1106 = vunpack.c.l.b16 %v1067
        %v1107 = vunpack.c.l.b16 %v1068
        %v1108 = vunpack.c.l.b16 %v1069
        %v1109 = vunpack.c.l.b16 %v1070
        %v1110 = vunpack.c.l.b16 %v1071
        %v1111 = vunpack.c.l.b16 %v1072
        %v1112 = vunpack.c.l.b16 %v1073
        %v1113 = vunpack.c.l.b16 %v1074
        %v1114 = vunpack.c.l.b16 %v1075
        %v1115 = vunpack.c.l.b16 %v1076
        %v1116 = vpack.c.b16 %v1101, %v1100
        %v1117 = vpack.c.b16 %v1103, %v1102
        %v1118 = vpack.c.b16 %v1105, %v1104
        %v1119 = vpack.c.b16 %v1107, %v1106
        %v1120 = vpack.c.b16 %v1109, %v1108
        %v1121 = vpack.c.b16 %v1111, %v1110
        %v1122 = vpack.c.b16 %v1113, %v1112
        %v1123 = vpack.c.b16 %v1115, %v1114
        %1132 = vmatprep.subr.bf16.mxu0 0
        %1133 = vmatpush1.bf16.msra.mxu0 %v1123
        %1134 = vmatprep.subr.bf16.mxu0 0
        %1135 = vmatpush1.bf16.msra.mxu0 %v1122
        %1136 = vmatprep.subr.bf16.mxu0 0
        %1137 = vmatpush1.bf16.msra.mxu0 %v1121
        %1138 = vmatprep.subr.bf16.mxu0 0
        %1139 = vmatpush1.bf16.msra.mxu0 %v1120
        %1140 = vmatprep.subr.bf16.mxu0 0
        %1141 = vmatpush1.bf16.msra.mxu0 %v1119
        %1142 = vmatprep.subr.bf16.mxu0 0
        %1143 = vmatpush1.bf16.msra.mxu0 %v1118
        %1144 = vmatprep.subr.bf16.mxu0 0
        %1145 = vmatpush1.bf16.msra.mxu0 %v1117
        %1146 = vmatprep.subr.bf16.mxu0 0
        %1147 = vmatpush1.bf16.msra.mxu0 %v1116
        %1148 = vmatprep.subr.bf16.mxu0 0
        %1149 = vmatpush2.bf16.msra.mxu0 0
        %1150 = vmatprep.subr.bf16.mxu0 0
        %1151 = vmatpush2.bf16.msra.mxu0 0
        %1152 = vmatprep.subr.bf16.mxu0 0
        %1153 = vmatpush2.bf16.msra.mxu0 0
        %1154 = vmatprep.subr.bf16.mxu0 0
        %1155 = vmatpush2.bf16.msra.mxu0 0
        %1156 = vmatprep.subr.bf16.mxu0 0
        %1157 = vmatpush2.bf16.msra.mxu0 0
        %1158 = vmatprep.subr.bf16.mxu0 0
        %1159 = vmatpush2.bf16.msra.mxu0 0
        %1160 = vmatprep.subr.bf16.mxu0 0
        %1161 = vmatpush2.bf16.msra.mxu0 0
        %1162 = vmatprep.subr.bf16.mxu0 0
        %1163 = vmatpush2.bf16.msra.mxu0 0
        %1164 = vmatprep.mubr.bf16.mxu0 0
        %1165 = vmatmul.mubr.bf16.gmra.mxu0 %v1060
        %v1166 = vpop.f32.mrf.mxu0
        %v1167 = vadd.f32 %v1082, %v1166
        %v1168 = vpop.f32.mrf.mxu0
        %v1169 = vpop.f32.mrf.mxu0
        %v1170 = vpop.f32.mrf.mxu0
        %1171 = vdwg.mxu0
        %vm1172 = vcmask 7168
        %1173 = vst.msk [vmem:[%s482] sm:$0xff] %vm1172, %v1167
        %p1174 = scmp.lt.s32.totalorder %s28, 1
        %s1175 = scalar_select %p1174, %s28, 1
        %s1176 = smul.addr %s1175, 8
        %s1177 = scalar_lea.vmem %s11, %s1176
        // Predicated region
        $region93: #{tpu_custom_call.1} parent=63 // pred_check
          %p1178 = pneg %p282
        $region94: #{tpu_custom_call.1} parent=63 // pred_check_branch
          %1180 = sbr.rel (%p1178) target = $region96
        $region95: #{tpu_custom_call.1} parent=63 // pred_region
          _
        $region96: #{tpu_custom_call.1} parent=63 // pred_fallthru
          _
      $region64: #{tpu_custom_call.1} parent=5 // pred_fallthru
        _
      %p1181 = scmp.le.s32.totalorder 2, %s23
      // Predicated region
      $region97: #{tpu_custom_call.1} parent=5 // pred_check
        %p1182 = pneg %p1181
      $region98: #{tpu_custom_call.1} parent=5 // pred_check_branch
        %1184 = sbr.rel (%p1182) target = $region100
      $region99: #{tpu_custom_call.1} parent=5 // pred_region
        %s1185 = ssub.s32 %s23, 2
        // Predicated region
        $region101: #{tpu_custom_call.1} parent=99 // pred_check
          %p1186 = pneg %p288
        $region102: #{tpu_custom_call.1} parent=99 // pred_check_branch
          %1188 = sbr.rel (%p1186) target = $region104
        $region103: #{tpu_custom_call.1} parent=99 // pred_region
          %p1189 = scmp.lt.s32.totalorder %s29, 1
          %s1190 = scalar_select %p1189, %s29, 1
          %s1191 = smul.addr %s1190, 8
          %s1192 = scalar_lea.vmem %s11, %s1191
        $region104: #{tpu_custom_call.1} parent=99 // pred_fallthru
          _
      $region100: #{tpu_custom_call.1} parent=5 // pred_fallthru
        _
    $region6: #{tpu_custom_call.1} parent=1 // loop_footer
      %s27 = sadd.s32 1, %s23
    $region7: #{tpu_custom_call.1} parent=1 // loop_footer_branch
      %22 = sbr.rel target = $region3
    $region8: #{tpu_custom_call.1} parent=1 // loop_exit
      _
    %1193 = vsyncpa [#allocation3], 1
    %s1194 = scalar_lea.sflag [#allocation3], 1
    %1195 = vsyncpa %s1194, 1
    %1196 = vsyncpa [#allocation5], 1
    %1197 = vsyncpa [#allocation8], 1
    %1198 = vsyncpa [#allocation11], 1

</llo_original>
